<compile_context>
chip_gen: v7x
topology: tpu7x:2x2x1
jax: 0.10.0
libtpu: 0.0.40
codegen_flags: <defaults>
</compile_context>

<pallas_src>
import functools

import jax
import jax.numpy as jnp
from jax.experimental import pallas as pl
from jax.experimental.pallas import tpu as pltpu


# ---------------------------------------------------------------------------
# meaning=False : batched row-DMA gather (R rows per grid step)
# ---------------------------------------------------------------------------
def _gather_rows_kernel(idx_sref, tab_hbm, out_ref, buf, sems, *, rows_per_step):
    # idx_sref: (n_steps*R,) int32 in SMEM (scalar-prefetched)
    # tab_hbm : (F, E) table left in HBM (pl.ANY); rows fetched by manual DMA
    # out_ref : (R, E) VMEM output block
    # buf     : (R, E) VMEM landing buffer
    # sems    : (R,)   DMA semaphores
    step = pl.program_id(0)
    base = step * rows_per_step

    # Issue all R row DMAs up-front so they overlap each other.
    for r in range(rows_per_step):
        row = idx_sref[base + r]
        pltpu.make_async_copy(
            tab_hbm.at[pl.ds(row, 1), :],
            buf.at[pl.ds(r, 1), :],
            sems.at[r],
        ).start()

    for r in range(rows_per_step):
        pltpu.make_async_copy(
            tab_hbm.at[pl.ds(0, 1), :],        # same shape -> same byte count
            buf.at[pl.ds(r, 1), :],
            sems.at[r],
        ).wait()

    out_ref[...] = buf[...]


# ---------------------------------------------------------------------------
# meaning=True : batched row-DMA gather + per-batch-row accumulate (mean)
# ---------------------------------------------------------------------------
def _mean_gather_kernel(idx_sref, tab_hbm, out_ref, buf, sems, *,
                        batch_per_step, seq_len, inv_len):
    # idx_sref: (n_steps*bb*L,) int32 in SMEM
    # tab_hbm : (F, E) in HBM (pl.ANY)
    # out_ref : (bb, E) VMEM output block
    # buf     : (bb*L, E) VMEM landing buffer
    # sems    : (bb*L,)   DMA semaphores
    step = pl.program_id(0)
    rows_per_step = batch_per_step * seq_len
    base = step * rows_per_step

    for r in range(rows_per_step):
        row = idx_sref[base + r]
        pltpu.make_async_copy(
            tab_hbm.at[pl.ds(row, 1), :],
            buf.at[pl.ds(r, 1), :],
            sems.at[r],
        ).start()

    for r in range(rows_per_step):
        pltpu.make_async_copy(
            tab_hbm.at[pl.ds(0, 1), :],
            buf.at[pl.ds(r, 1), :],
            sems.at[r],
        ).wait()

    # Per-batch-row reduction over the L gathered embeddings (f32 accumulate).
    for b in range(batch_per_step):
        seg = buf[pl.ds(b * seq_len, seq_len), :]                 # (L, E)
        s = jnp.sum(seg.astype(jnp.float32), axis=0, keepdims=True)
        out_ref[pl.ds(b, 1), :] = (s * inv_len).astype(out_ref.dtype)


# ---------------------------------------------------------------------------
# Wrapper
# ---------------------------------------------------------------------------
def _round_up(x, m):
    return ((x + m - 1) // m) * m


@functools.partial(jax.jit, static_argnames=("meaning",))
def embedding_unit_layer(X, table, meaning=True):
    """Pallas implementation of EmbeddingUnitLayer.forward."""
    B, L = X.shape
    F, E = table.shape
    # Consistent OOB handling for both paths (torch would raise instead).
    idx = jnp.clip(X.astype(jnp.int32), 0, F - 1)

    vmem_limit = 32 * 1024 * 1024  # safe on v5e/v6e/v7x; working set is tiny

    if meaning:
        bb = 8                                   # batch rows per grid step
        n_steps = pl.cdiv(B, bb)
        b_pad = n_steps * bb
        idx_pad = jnp.zeros((b_pad, L), jnp.int32).at[:B, :].set(idx)
        flat_idx = idx_pad.reshape(-1)

        kernel = functools.partial(
            _mean_gather_kernel,
            batch_per_step=bb, seq_len=L, inv_len=1.0 / L)

        out = pl.pallas_call(
            kernel,
            out_shape=jax.ShapeDtypeStruct((b_pad, E), table.dtype),
            grid_spec=pltpu.PrefetchScalarGridSpec(
                num_scalar_prefetch=1,                      # flat_idx -> SMEM
                grid=(n_steps,),
                in_specs=[pl.BlockSpec(memory_space=pl.ANY)],   # table in HBM
                out_specs=pl.BlockSpec((bb, E), lambda i, idx_ref: (i, 0)),
                scratch_shapes=[
                    pltpu.VMEM((bb * L, E), table.dtype),
                    pltpu.SemaphoreType.DMA((bb * L,)),
                ],
            ),
            compiler_params=pltpu.CompilerParams(
                dimension_semantics=("parallel",),
                vmem_limit_bytes=vmem_limit,
            ),
        )(flat_idx, table)
        return out[:B]

    # meaning=False : batched row gather.
    total = B * L
    R = min(32, _round_up(total, 8))             # rows (tokens) per grid step
    n_steps = pl.cdiv(total, R)
    total_pad = n_steps * R
    flat_idx = jnp.zeros((total_pad,), jnp.int32).at[:total].set(idx.reshape(-1))

    kernel = functools.partial(_gather_rows_kernel, rows_per_step=R)
    out = pl.pallas_call(
        kernel,
        out_shape=jax.ShapeDtypeStruct((total_pad, E), table.dtype),
        grid_spec=pltpu.PrefetchScalarGridSpec(
            num_scalar_prefetch=1,                          # flat_idx -> SMEM
            grid=(n_steps,),
            in_specs=[pl.BlockSpec(memory_space=pl.ANY)],       # table in HBM
            out_specs=pl.BlockSpec((R, E), lambda i, idx_ref: (i, 0)),
            scratch_shapes=[
                pltpu.VMEM((R, E), table.dtype),
                pltpu.SemaphoreType.DMA((R,)),
            ],
        ),
        compiler_params=pltpu.CompilerParams(
            dimension_semantics=("parallel",),
            vmem_limit_bytes=vmem_limit,
        ),
    )(flat_idx, table)
    return out[:total].reshape(B, L, E)


if __name__ == "__main__":
    # Small, module-consistent shapes (exercise padding in both paths).
    features_size = 512    # vocabulary size of nn.Embedding
    embedding_size = 128   # embedding dim
    batch = 10
    seq = 7

    key = jax.random.PRNGKey(0)
    k_tab, k_idx = jax.random.split(key)

    # torch.nn.init.normal_(weight, std=0.0001)
    table = (jax.random.normal(k_tab, (features_size, embedding_size),
                               dtype=jnp.float32) * 1e-4)
    X = jax.random.randint(k_idx, (batch, seq), 0, features_size,
                           dtype=jnp.int32)

    # meaning=True path (default forward)
    out_mean = jax.block_until_ready(embedding_unit_layer(X, table, meaning=True))
    # meaning=False path
    out_full = jax.block_until_ready(embedding_unit_layer(X, table, meaning=False))

    # Reference check in plain JAX.
    ref_full = table[X]                     # (B, L, E)
    ref_mean = jnp.mean(ref_full, axis=1)   # (B, E)
    assert out_mean.shape == (batch, embedding_size)
    assert out_full.shape == (batch, seq, embedding_size)
    assert jnp.allclose(out_full, ref_full, atol=1e-6)
    assert jnp.allclose(out_mean, ref_mean, atol=1e-6)

    print("KERNEL_OK")
</pallas_src>

<mosaic_0001>
module attributes {stable_mosaic.version = 11 : i64} {
  func.func @_mean_gather_kernel(%arg0: i32, %arg1: memref<112xi32, #tpu.memory_space<smem>>, %arg2: memref<512x128xf32, #tpu.memory_space<any>>, %arg3: memref<8x128xf32, #tpu.memory_space<vmem>>, %arg4: memref<56x128xf32, #tpu.memory_space<vmem>>, %arg5: memref<56x!tpu.dma_semaphore, #tpu.memory_space<semaphore_mem>>) attributes {dimension_semantics = [#tpu.dimension_semantics<parallel>], iteration_bounds = array<i64: 2>, scalar_prefetch = 1 : i64, scratch_operands = 2 : i64, tpu.core_type = #tpu.core_type<tc>, window_params = [{}, {transform_indices = @transform_1, window_bounds = array<i64: 8, 128>}]} {
    %c56_i32 = arith.constant 56 : i32
    %0 = arith.muli %arg0, %c56_i32 : i32
    %c0_i32 = arith.constant 0 : i32
    %1 = arith.addi %0, %c0_i32 : i32
    %2 = arith.index_cast %1 : i32 to index
    %3 = memref.load %arg1[%2] : memref<112xi32, #tpu.memory_space<smem>>
    %c0_i32_0 = arith.constant 0 : i32
    %c0_i32_1 = arith.constant 0 : i32
    %4 = tpu.memref_slice %arg2[%3, %c0_i32_1] : memref<512x128xf32, #tpu.memory_space<any>> -> memref<1x128xf32, #tpu.memory_space<any>>
    %c0_i32_2 = arith.constant 0 : i32
    %c0_i32_3 = arith.constant 0 : i32
    %5 = tpu.memref_slice %arg4[%c0_i32_2, %c0_i32_3] : memref<56x128xf32, #tpu.memory_space<vmem>> -> memref<1x128xf32, #tpu.memory_space<vmem>>
    %6 = tpu.memref_slice %arg5[%c0_i32_0] : memref<56x!tpu.dma_semaphore, #tpu.memory_space<semaphore_mem>> -> memref<1x!tpu.dma_semaphore, #tpu.memory_space<semaphore_mem>>
    %7 = tpu.memref_squeeze %6 : memref<1x!tpu.dma_semaphore, #tpu.memory_space<semaphore_mem>> -> memref<!tpu.dma_semaphore, #tpu.memory_space<semaphore_mem>>
    tpu.enqueue_dma source(%4 : memref<1x128xf32, #tpu.memory_space<any>>) target(%5 : memref<1x128xf32, #tpu.memory_space<vmem>>) target_semaphore(%7 : memref<!tpu.dma_semaphore, #tpu.memory_space<semaphore_mem>>)
    %c1_i32 = arith.constant 1 : i32
    %8 = arith.addi %0, %c1_i32 : i32
    %9 = arith.index_cast %8 : i32 to index
    %10 = memref.load %arg1[%9] : memref<112xi32, #tpu.memory_space<smem>>
    %c1_i32_4 = arith.constant 1 : i32
    %c0_i32_5 = arith.constant 0 : i32
    %11 = tpu.memref_slice %arg2[%10, %c0_i32_5] : memref<512x128xf32, #tpu.memory_space<any>> -> memref<1x128xf32, #tpu.memory_space<any>>
    %c1_i32_6 = arith.constant 1 : i32
    %c0_i32_7 = arith.constant 0 : i32
    %12 = tpu.memref_slice %arg4[%c1_i32_6, %c0_i32_7] : memref<56x128xf32, #tpu.memory_space<vmem>> -> memref<1x128xf32, #tpu.memory_space<vmem>>
    %13 = tpu.memref_slice %arg5[%c1_i32_4] : memref<56x!tpu.dma_semaphore, #tpu.memory_space<semaphore_mem>> -> memref<1x!tpu.dma_semaphore, #tpu.memory_space<semaphore_mem>>
    %14 = tpu.memref_squeeze %13 : memref<1x!tpu.dma_semaphore, #tpu.memory_space<semaphore_mem>> -> memref<!tpu.dma_semaphore, #tpu.memory_space<semaphore_mem>>
    tpu.enqueue_dma source(%11 : memref<1x128xf32, #tpu.memory_space<any>>) target(%12 : memref<1x128xf32, #tpu.memory_space<vmem>>) target_semaphore(%14 : memref<!tpu.dma_semaphore, #tpu.memory_space<semaphore_mem>>)
    %c2_i32 = arith.constant 2 : i32
    %15 = arith.addi %0, %c2_i32 : i32
    %16 = arith.index_cast %15 : i32 to index
    %17 = memref.load %arg1[%16] : memref<112xi32, #tpu.memory_space<smem>>
    %c2_i32_8 = arith.constant 2 : i32
    %c0_i32_9 = arith.constant 0 : i32
    %18 = tpu.memref_slice %arg2[%17, %c0_i32_9] : memref<512x128xf32, #tpu.memory_space<any>> -> memref<1x128xf32, #tpu.memory_space<any>>
    %c2_i32_10 = arith.constant 2 : i32
    %c0_i32_11 = arith.constant 0 : i32
    %19 = tpu.memref_slice %arg4[%c2_i32_10, %c0_i32_11] : memref<56x128xf32, #tpu.memory_space<vmem>> -> memref<1x128xf32, #tpu.memory_space<vmem>>
    %20 = tpu.memref_slice %arg5[%c2_i32_8] : memref<56x!tpu.dma_semaphore, #tpu.memory_space<semaphore_mem>> -> memref<1x!tpu.dma_semaphore, #tpu.memory_space<semaphore_mem>>
    %21 = tpu.memref_squeeze %20 : memref<1x!tpu.dma_semaphore, #tpu.memory_space<semaphore_mem>> -> memref<!tpu.dma_semaphore, #tpu.memory_space<semaphore_mem>>
    tpu.enqueue_dma source(%18 : memref<1x128xf32, #tpu.memory_space<any>>) target(%19 : memref<1x128xf32, #tpu.memory_space<vmem>>) target_semaphore(%21 : memref<!tpu.dma_semaphore, #tpu.memory_space<semaphore_mem>>)
    %c3_i32 = arith.constant 3 : i32
    %22 = arith.addi %0, %c3_i32 : i32
    %23 = arith.index_cast %22 : i32 to index
    %24 = memref.load %arg1[%23] : memref<112xi32, #tpu.memory_space<smem>>
    %c3_i32_12 = arith.constant 3 : i32
    %c0_i32_13 = arith.constant 0 : i32
    %25 = tpu.memref_slice %arg2[%24, %c0_i32_13] : memref<512x128xf32, #tpu.memory_space<any>> -> memref<1x128xf32, #tpu.memory_space<any>>
    %c3_i32_14 = arith.constant 3 : i32
    %c0_i32_15 = arith.constant 0 : i32
    %26 = tpu.memref_slice %arg4[%c3_i32_14, %c0_i32_15] : memref<56x128xf32, #tpu.memory_space<vmem>> -> memref<1x128xf32, #tpu.memory_space<vmem>>
    %27 = tpu.memref_slice %arg5[%c3_i32_12] : memref<56x!tpu.dma_semaphore, #tpu.memory_space<semaphore_mem>> -> memref<1x!tpu.dma_semaphore, #tpu.memory_space<semaphore_mem>>
    %28 = tpu.memref_squeeze %27 : memref<1x!tpu.dma_semaphore, #tpu.memory_space<semaphore_mem>> -> memref<!tpu.dma_semaphore, #tpu.memory_space<semaphore_mem>>
    tpu.enqueue_dma source(%25 : memref<1x128xf32, #tpu.memory_space<any>>) target(%26 : memref<1x128xf32, #tpu.memory_space<vmem>>) target_semaphore(%28 : memref<!tpu.dma_semaphore, #tpu.memory_space<semaphore_mem>>)
    %c4_i32 = arith.constant 4 : i32
    %29 = arith.addi %0, %c4_i32 : i32
    %30 = arith.index_cast %29 : i32 to index
    %31 = memref.load %arg1[%30] : memref<112xi32, #tpu.memory_space<smem>>
    %c4_i32_16 = arith.constant 4 : i32
    %c0_i32_17 = arith.constant 0 : i32
    %32 = tpu.memref_slice %arg2[%31, %c0_i32_17] : memref<512x128xf32, #tpu.memory_space<any>> -> memref<1x128xf32, #tpu.memory_space<any>>
    %c4_i32_18 = arith.constant 4 : i32
    %c0_i32_19 = arith.constant 0 : i32
    %33 = tpu.memref_slice %arg4[%c4_i32_18, %c0_i32_19] : memref<56x128xf32, #tpu.memory_space<vmem>> -> memref<1x128xf32, #tpu.memory_space<vmem>>
    %34 = tpu.memref_slice %arg5[%c4_i32_16] : memref<56x!tpu.dma_semaphore, #tpu.memory_space<semaphore_mem>> -> memref<1x!tpu.dma_semaphore, #tpu.memory_space<semaphore_mem>>
    %35 = tpu.memref_squeeze %34 : memref<1x!tpu.dma_semaphore, #tpu.memory_space<semaphore_mem>> -> memref<!tpu.dma_semaphore, #tpu.memory_space<semaphore_mem>>
    tpu.enqueue_dma source(%32 : memref<1x128xf32, #tpu.memory_space<any>>) target(%33 : memref<1x128xf32, #tpu.memory_space<vmem>>) target_semaphore(%35 : memref<!tpu.dma_semaphore, #tpu.memory_space<semaphore_mem>>)
    %c5_i32 = arith.constant 5 : i32
    %36 = arith.addi %0, %c5_i32 : i32
    %37 = arith.index_cast %36 : i32 to index
    %38 = memref.load %arg1[%37] : memref<112xi32, #tpu.memory_space<smem>>
    %c5_i32_20 = arith.constant 5 : i32
    %c0_i32_21 = arith.constant 0 : i32
    %39 = tpu.memref_slice %arg2[%38, %c0_i32_21] : memref<512x128xf32, #tpu.memory_space<any>> -> memref<1x128xf32, #tpu.memory_space<any>>
    %c5_i32_22 = arith.constant 5 : i32
    %c0_i32_23 = arith.constant 0 : i32
    %40 = tpu.memref_slice %arg4[%c5_i32_22, %c0_i32_23] : memref<56x128xf32, #tpu.memory_space<vmem>> -> memref<1x128xf32, #tpu.memory_space<vmem>>
    %41 = tpu.memref_slice %arg5[%c5_i32_20] : memref<56x!tpu.dma_semaphore, #tpu.memory_space<semaphore_mem>> -> memref<1x!tpu.dma_semaphore, #tpu.memory_space<semaphore_mem>>
    %42 = tpu.memref_squeeze %41 : memref<1x!tpu.dma_semaphore, #tpu.memory_space<semaphore_mem>> -> memref<!tpu.dma_semaphore, #tpu.memory_space<semaphore_mem>>
    tpu.enqueue_dma source(%39 : memref<1x128xf32, #tpu.memory_space<any>>) target(%40 : memref<1x128xf32, #tpu.memory_space<vmem>>) target_semaphore(%42 : memref<!tpu.dma_semaphore, #tpu.memory_space<semaphore_mem>>)
    %c6_i32 = arith.constant 6 : i32
    %43 = arith.addi %0, %c6_i32 : i32
    %44 = arith.index_cast %43 : i32 to index
    %45 = memref.load %arg1[%44] : memref<112xi32, #tpu.memory_space<smem>>
    %c6_i32_24 = arith.constant 6 : i32
    %c0_i32_25 = arith.constant 0 : i32
    %46 = tpu.memref_slice %arg2[%45, %c0_i32_25] : memref<512x128xf32, #tpu.memory_space<any>> -> memref<1x128xf32, #tpu.memory_space<any>>
    %c6_i32_26 = arith.constant 6 : i32
    %c0_i32_27 = arith.constant 0 : i32
    %47 = tpu.memref_slice %arg4[%c6_i32_26, %c0_i32_27] : memref<56x128xf32, #tpu.memory_space<vmem>> -> memref<1x128xf32, #tpu.memory_space<vmem>>
    %48 = tpu.memref_slice %arg5[%c6_i32_24] : memref<56x!tpu.dma_semaphore, #tpu.memory_space<semaphore_mem>> -> memref<1x!tpu.dma_semaphore, #tpu.memory_space<semaphore_mem>>
    %49 = tpu.memref_squeeze %48 : memref<1x!tpu.dma_semaphore, #tpu.memory_space<semaphore_mem>> -> memref<!tpu.dma_semaphore, #tpu.memory_space<semaphore_mem>>
    tpu.enqueue_dma source(%46 : memref<1x128xf32, #tpu.memory_space<any>>) target(%47 : memref<1x128xf32, #tpu.memory_space<vmem>>) target_semaphore(%49 : memref<!tpu.dma_semaphore, #tpu.memory_space<semaphore_mem>>)
    %c7_i32 = arith.constant 7 : i32
    %50 = arith.addi %0, %c7_i32 : i32
    %51 = arith.index_cast %50 : i32 to index
    %52 = memref.load %arg1[%51] : memref<112xi32, #tpu.memory_space<smem>>
    %c7_i32_28 = arith.constant 7 : i32
    %c0_i32_29 = arith.constant 0 : i32
    %53 = tpu.memref_slice %arg2[%52, %c0_i32_29] : memref<512x128xf32, #tpu.memory_space<any>> -> memref<1x128xf32, #tpu.memory_space<any>>
    %c7_i32_30 = arith.constant 7 : i32
    %c0_i32_31 = arith.constant 0 : i32
    %54 = tpu.memref_slice %arg4[%c7_i32_30, %c0_i32_31] : memref<56x128xf32, #tpu.memory_space<vmem>> -> memref<1x128xf32, #tpu.memory_space<vmem>>
    %55 = tpu.memref_slice %arg5[%c7_i32_28] : memref<56x!tpu.dma_semaphore, #tpu.memory_space<semaphore_mem>> -> memref<1x!tpu.dma_semaphore, #tpu.memory_space<semaphore_mem>>
    %56 = tpu.memref_squeeze %55 : memref<1x!tpu.dma_semaphore, #tpu.memory_space<semaphore_mem>> -> memref<!tpu.dma_semaphore, #tpu.memory_space<semaphore_mem>>
    tpu.enqueue_dma source(%53 : memref<1x128xf32, #tpu.memory_space<any>>) target(%54 : memref<1x128xf32, #tpu.memory_space<vmem>>) target_semaphore(%56 : memref<!tpu.dma_semaphore, #tpu.memory_space<semaphore_mem>>)
    %c8_i32 = arith.constant 8 : i32
    %57 = arith.addi %0, %c8_i32 : i32
    %58 = arith.index_cast %57 : i32 to index
    %59 = memref.load %arg1[%58] : memref<112xi32, #tpu.memory_space<smem>>
    %c8_i32_32 = arith.constant 8 : i32
    %c0_i32_33 = arith.constant 0 : i32
    %60 = tpu.memref_slice %arg2[%59, %c0_i32_33] : memref<512x128xf32, #tpu.memory_space<any>> -> memref<1x128xf32, #tpu.memory_space<any>>
    %c8_i32_34 = arith.constant 8 : i32
    %c0_i32_35 = arith.constant 0 : i32
    %61 = tpu.memref_slice %arg4[%c8_i32_34, %c0_i32_35] : memref<56x128xf32, #tpu.memory_space<vmem>> -> memref<1x128xf32, #tpu.memory_space<vmem>>
    %62 = tpu.memref_slice %arg5[%c8_i32_32] : memref<56x!tpu.dma_semaphore, #tpu.memory_space<semaphore_mem>> -> memref<1x!tpu.dma_semaphore, #tpu.memory_space<semaphore_mem>>
    %63 = tpu.memref_squeeze %62 : memref<1x!tpu.dma_semaphore, #tpu.memory_space<semaphore_mem>> -> memref<!tpu.dma_semaphore, #tpu.memory_space<semaphore_mem>>
    tpu.enqueue_dma source(%60 : memref<1x128xf32, #tpu.memory_space<any>>) target(%61 : memref<1x128xf32, #tpu.memory_space<vmem>>) target_semaphore(%63 : memref<!tpu.dma_semaphore, #tpu.memory_space<semaphore_mem>>)
    %c9_i32 = arith.constant 9 : i32
    %64 = arith.addi %0, %c9_i32 : i32
    %65 = arith.index_cast %64 : i32 to index
    %66 = memref.load %arg1[%65] : memref<112xi32, #tpu.memory_space<smem>>
    %c9_i32_36 = arith.constant 9 : i32
    %c0_i32_37 = arith.constant 0 : i32
    %67 = tpu.memref_slice %arg2[%66, %c0_i32_37] : memref<512x128xf32, #tpu.memory_space<any>> -> memref<1x128xf32, #tpu.memory_space<any>>
    %c9_i32_38 = arith.constant 9 : i32
    %c0_i32_39 = arith.constant 0 : i32
    %68 = tpu.memref_slice %arg4[%c9_i32_38, %c0_i32_39] : memref<56x128xf32, #tpu.memory_space<vmem>> -> memref<1x128xf32, #tpu.memory_space<vmem>>
    %69 = tpu.memref_slice %arg5[%c9_i32_36] : memref<56x!tpu.dma_semaphore, #tpu.memory_space<semaphore_mem>> -> memref<1x!tpu.dma_semaphore, #tpu.memory_space<semaphore_mem>>
    %70 = tpu.memref_squeeze %69 : memref<1x!tpu.dma_semaphore, #tpu.memory_space<semaphore_mem>> -> memref<!tpu.dma_semaphore, #tpu.memory_space<semaphore_mem>>
    tpu.enqueue_dma source(%67 : memref<1x128xf32, #tpu.memory_space<any>>) target(%68 : memref<1x128xf32, #tpu.memory_space<vmem>>) target_semaphore(%70 : memref<!tpu.dma_semaphore, #tpu.memory_space<semaphore_mem>>)
    %c10_i32 = arith.constant 10 : i32
    %71 = arith.addi %0, %c10_i32 : i32
    %72 = arith.index_cast %71 : i32 to index
    %73 = memref.load %arg1[%72] : memref<112xi32, #tpu.memory_space<smem>>
    %c10_i32_40 = arith.constant 10 : i32
    %c0_i32_41 = arith.constant 0 : i32
    %74 = tpu.memref_slice %arg2[%73, %c0_i32_41] : memref<512x128xf32, #tpu.memory_space<any>> -> memref<1x128xf32, #tpu.memory_space<any>>
    %c10_i32_42 = arith.constant 10 : i32
    %c0_i32_43 = arith.constant 0 : i32
    %75 = tpu.memref_slice %arg4[%c10_i32_42, %c0_i32_43] : memref<56x128xf32, #tpu.memory_space<vmem>> -> memref<1x128xf32, #tpu.memory_space<vmem>>
    %76 = tpu.memref_slice %arg5[%c10_i32_40] : memref<56x!tpu.dma_semaphore, #tpu.memory_space<semaphore_mem>> -> memref<1x!tpu.dma_semaphore, #tpu.memory_space<semaphore_mem>>
    %77 = tpu.memref_squeeze %76 : memref<1x!tpu.dma_semaphore, #tpu.memory_space<semaphore_mem>> -> memref<!tpu.dma_semaphore, #tpu.memory_space<semaphore_mem>>
    tpu.enqueue_dma source(%74 : memref<1x128xf32, #tpu.memory_space<any>>) target(%75 : memref<1x128xf32, #tpu.memory_space<vmem>>) target_semaphore(%77 : memref<!tpu.dma_semaphore, #tpu.memory_space<semaphore_mem>>)
    %c11_i32 = arith.constant 11 : i32
    %78 = arith.addi %0, %c11_i32 : i32
    %79 = arith.index_cast %78 : i32 to index
    %80 = memref.load %arg1[%79] : memref<112xi32, #tpu.memory_space<smem>>
    %c11_i32_44 = arith.constant 11 : i32
    %c0_i32_45 = arith.constant 0 : i32
    %81 = tpu.memref_slice %arg2[%80, %c0_i32_45] : memref<512x128xf32, #tpu.memory_space<any>> -> memref<1x128xf32, #tpu.memory_space<any>>
    %c11_i32_46 = arith.constant 11 : i32
    %c0_i32_47 = arith.constant 0 : i32
    %82 = tpu.memref_slice %arg4[%c11_i32_46, %c0_i32_47] : memref<56x128xf32, #tpu.memory_space<vmem>> -> memref<1x128xf32, #tpu.memory_space<vmem>>
    %83 = tpu.memref_slice %arg5[%c11_i32_44] : memref<56x!tpu.dma_semaphore, #tpu.memory_space<semaphore_mem>> -> memref<1x!tpu.dma_semaphore, #tpu.memory_space<semaphore_mem>>
    %84 = tpu.memref_squeeze %83 : memref<1x!tpu.dma_semaphore, #tpu.memory_space<semaphore_mem>> -> memref<!tpu.dma_semaphore, #tpu.memory_space<semaphore_mem>>
    tpu.enqueue_dma source(%81 : memref<1x128xf32, #tpu.memory_space<any>>) target(%82 : memref<1x128xf32, #tpu.memory_space<vmem>>) target_semaphore(%84 : memref<!tpu.dma_semaphore, #tpu.memory_space<semaphore_mem>>)
    %c12_i32 = arith.constant 12 : i32
    %85 = arith.addi %0, %c12_i32 : i32
    %86 = arith.index_cast %85 : i32 to index
    %87 = memref.load %arg1[%86] : memref<112xi32, #tpu.memory_space<smem>>
    %c12_i32_48 = arith.constant 12 : i32
    %c0_i32_49 = arith.constant 0 : i32
    %88 = tpu.memref_slice %arg2[%87, %c0_i32_49] : memref<512x128xf32, #tpu.memory_space<any>> -> memref<1x128xf32, #tpu.memory_space<any>>
    %c12_i32_50 = arith.constant 12 : i32
    %c0_i32_51 = arith.constant 0 : i32
    %89 = tpu.memref_slice %arg4[%c12_i32_50, %c0_i32_51] : memref<56x128xf32, #tpu.memory_space<vmem>> -> memref<1x128xf32, #tpu.memory_space<vmem>>
    %90 = tpu.memref_slice %arg5[%c12_i32_48] : memref<56x!tpu.dma_semaphore, #tpu.memory_space<semaphore_mem>> -> memref<1x!tpu.dma_semaphore, #tpu.memory_space<semaphore_mem>>
    %91 = tpu.memref_squeeze %90 : memref<1x!tpu.dma_semaphore, #tpu.memory_space<semaphore_mem>> -> memref<!tpu.dma_semaphore, #tpu.memory_space<semaphore_mem>>
    tpu.enqueue_dma source(%88 : memref<1x128xf32, #tpu.memory_space<any>>) target(%89 : memref<1x128xf32, #tpu.memory_space<vmem>>) target_semaphore(%91 : memref<!tpu.dma_semaphore, #tpu.memory_space<semaphore_mem>>)
    %c13_i32 = arith.constant 13 : i32
    %92 = arith.addi %0, %c13_i32 : i32
    %93 = arith.index_cast %92 : i32 to index
    %94 = memref.load %arg1[%93] : memref<112xi32, #tpu.memory_space<smem>>
    %c13_i32_52 = arith.constant 13 : i32
    %c0_i32_53 = arith.constant 0 : i32
    %95 = tpu.memref_slice %arg2[%94, %c0_i32_53] : memref<512x128xf32, #tpu.memory_space<any>> -> memref<1x128xf32, #tpu.memory_space<any>>
    %c13_i32_54 = arith.constant 13 : i32
    %c0_i32_55 = arith.constant 0 : i32
    %96 = tpu.memref_slice %arg4[%c13_i32_54, %c0_i32_55] : memref<56x128xf32, #tpu.memory_space<vmem>> -> memref<1x128xf32, #tpu.memory_space<vmem>>
    %97 = tpu.memref_slice %arg5[%c13_i32_52] : memref<56x!tpu.dma_semaphore, #tpu.memory_space<semaphore_mem>> -> memref<1x!tpu.dma_semaphore, #tpu.memory_space<semaphore_mem>>
    %98 = tpu.memref_squeeze %97 : memref<1x!tpu.dma_semaphore, #tpu.memory_space<semaphore_mem>> -> memref<!tpu.dma_semaphore, #tpu.memory_space<semaphore_mem>>
    tpu.enqueue_dma source(%95 : memref<1x128xf32, #tpu.memory_space<any>>) target(%96 : memref<1x128xf32, #tpu.memory_space<vmem>>) target_semaphore(%98 : memref<!tpu.dma_semaphore, #tpu.memory_space<semaphore_mem>>)
    %c14_i32 = arith.constant 14 : i32
    %99 = arith.addi %0, %c14_i32 : i32
    %100 = arith.index_cast %99 : i32 to index
    %101 = memref.load %arg1[%100] : memref<112xi32, #tpu.memory_space<smem>>
    %c14_i32_56 = arith.constant 14 : i32
    %c0_i32_57 = arith.constant 0 : i32
    %102 = tpu.memref_slice %arg2[%101, %c0_i32_57] : memref<512x128xf32, #tpu.memory_space<any>> -> memref<1x128xf32, #tpu.memory_space<any>>
    %c14_i32_58 = arith.constant 14 : i32
    %c0_i32_59 = arith.constant 0 : i32
    %103 = tpu.memref_slice %arg4[%c14_i32_58, %c0_i32_59] : memref<56x128xf32, #tpu.memory_space<vmem>> -> memref<1x128xf32, #tpu.memory_space<vmem>>
    %104 = tpu.memref_slice %arg5[%c14_i32_56] : memref<56x!tpu.dma_semaphore, #tpu.memory_space<semaphore_mem>> -> memref<1x!tpu.dma_semaphore, #tpu.memory_space<semaphore_mem>>
    %105 = tpu.memref_squeeze %104 : memref<1x!tpu.dma_semaphore, #tpu.memory_space<semaphore_mem>> -> memref<!tpu.dma_semaphore, #tpu.memory_space<semaphore_mem>>
    tpu.enqueue_dma source(%102 : memref<1x128xf32, #tpu.memory_space<any>>) target(%103 : memref<1x128xf32, #tpu.memory_space<vmem>>) target_semaphore(%105 : memref<!tpu.dma_semaphore, #tpu.memory_space<semaphore_mem>>)
    %c15_i32 = arith.constant 15 : i32
    %106 = arith.addi %0, %c15_i32 : i32
    %107 = arith.index_cast %106 : i32 to index
    %108 = memref.load %arg1[%107] : memref<112xi32, #tpu.memory_space<smem>>
    %c15_i32_60 = arith.constant 15 : i32
    %c0_i32_61 = arith.constant 0 : i32
    %109 = tpu.memref_slice %arg2[%108, %c0_i32_61] : memref<512x128xf32, #tpu.memory_space<any>> -> memref<1x128xf32, #tpu.memory_space<any>>
    %c15_i32_62 = arith.constant 15 : i32
    %c0_i32_63 = arith.constant 0 : i32
    %110 = tpu.memref_slice %arg4[%c15_i32_62, %c0_i32_63] : memref<56x128xf32, #tpu.memory_space<vmem>> -> memref<1x128xf32, #tpu.memory_space<vmem>>
    %111 = tpu.memref_slice %arg5[%c15_i32_60] : memref<56x!tpu.dma_semaphore, #tpu.memory_space<semaphore_mem>> -> memref<1x!tpu.dma_semaphore, #tpu.memory_space<semaphore_mem>>
    %112 = tpu.memref_squeeze %111 : memref<1x!tpu.dma_semaphore, #tpu.memory_space<semaphore_mem>> -> memref<!tpu.dma_semaphore, #tpu.memory_space<semaphore_mem>>
    tpu.enqueue_dma source(%109 : memref<1x128xf32, #tpu.memory_space<any>>) target(%110 : memref<1x128xf32, #tpu.memory_space<vmem>>) target_semaphore(%112 : memref<!tpu.dma_semaphore, #tpu.memory_space<semaphore_mem>>)
    %c16_i32 = arith.constant 16 : i32
    %113 = arith.addi %0, %c16_i32 : i32
    %114 = arith.index_cast %113 : i32 to index
    %115 = memref.load %arg1[%114] : memref<112xi32, #tpu.memory_space<smem>>
    %c16_i32_64 = arith.constant 16 : i32
    %c0_i32_65 = arith.constant 0 : i32
    %116 = tpu.memref_slice %arg2[%115, %c0_i32_65] : memref<512x128xf32, #tpu.memory_space<any>> -> memref<1x128xf32, #tpu.memory_space<any>>
    %c16_i32_66 = arith.constant 16 : i32
    %c0_i32_67 = arith.constant 0 : i32
    %117 = tpu.memref_slice %arg4[%c16_i32_66, %c0_i32_67] : memref<56x128xf32, #tpu.memory_space<vmem>> -> memref<1x128xf32, #tpu.memory_space<vmem>>
    %118 = tpu.memref_slice %arg5[%c16_i32_64] : memref<56x!tpu.dma_semaphore, #tpu.memory_space<semaphore_mem>> -> memref<1x!tpu.dma_semaphore, #tpu.memory_space<semaphore_mem>>
    %119 = tpu.memref_squeeze %118 : memref<1x!tpu.dma_semaphore, #tpu.memory_space<semaphore_mem>> -> memref<!tpu.dma_semaphore, #tpu.memory_space<semaphore_mem>>
    tpu.enqueue_dma source(%116 : memref<1x128xf32, #tpu.memory_space<any>>) target(%117 : memref<1x128xf32, #tpu.memory_space<vmem>>) target_semaphore(%119 : memref<!tpu.dma_semaphore, #tpu.memory_space<semaphore_mem>>)
    %c17_i32 = arith.constant 17 : i32
    %120 = arith.addi %0, %c17_i32 : i32
    %121 = arith.index_cast %120 : i32 to index
    %122 = memref.load %arg1[%121] : memref<112xi32, #tpu.memory_space<smem>>
    %c17_i32_68 = arith.constant 17 : i32
    %c0_i32_69 = arith.constant 0 : i32
    %123 = tpu.memref_slice %arg2[%122, %c0_i32_69] : memref<512x128xf32, #tpu.memory_space<any>> -> memref<1x128xf32, #tpu.memory_space<any>>
    %c17_i32_70 = arith.constant 17 : i32
    %c0_i32_71 = arith.constant 0 : i32
    %124 = tpu.memref_slice %arg4[%c17_i32_70, %c0_i32_71] : memref<56x128xf32, #tpu.memory_space<vmem>> -> memref<1x128xf32, #tpu.memory_space<vmem>>
    %125 = tpu.memref_slice %arg5[%c17_i32_68] : memref<56x!tpu.dma_semaphore, #tpu.memory_space<semaphore_mem>> -> memref<1x!tpu.dma_semaphore, #tpu.memory_space<semaphore_mem>>
    %126 = tpu.memref_squeeze %125 : memref<1x!tpu.dma_semaphore, #tpu.memory_space<semaphore_mem>> -> memref<!tpu.dma_semaphore, #tpu.memory_space<semaphore_mem>>
    tpu.enqueue_dma source(%123 : memref<1x128xf32, #tpu.memory_space<any>>) target(%124 : memref<1x128xf32, #tpu.memory_space<vmem>>) target_semaphore(%126 : memref<!tpu.dma_semaphore, #tpu.memory_space<semaphore_mem>>)
    %c18_i32 = arith.constant 18 : i32
    %127 = arith.addi %0, %c18_i32 : i32
    %128 = arith.index_cast %127 : i32 to index
    %129 = memref.load %arg1[%128] : memref<112xi32, #tpu.memory_space<smem>>
    %c18_i32_72 = arith.constant 18 : i32
    %c0_i32_73 = arith.constant 0 : i32
    %130 = tpu.memref_slice %arg2[%129, %c0_i32_73] : memref<512x128xf32, #tpu.memory_space<any>> -> memref<1x128xf32, #tpu.memory_space<any>>
    %c18_i32_74 = arith.constant 18 : i32
    %c0_i32_75 = arith.constant 0 : i32
    %131 = tpu.memref_slice %arg4[%c18_i32_74, %c0_i32_75] : memref<56x128xf32, #tpu.memory_space<vmem>> -> memref<1x128xf32, #tpu.memory_space<vmem>>
    %132 = tpu.memref_slice %arg5[%c18_i32_72] : memref<56x!tpu.dma_semaphore, #tpu.memory_space<semaphore_mem>> -> memref<1x!tpu.dma_semaphore, #tpu.memory_space<semaphore_mem>>
    %133 = tpu.memref_squeeze %132 : memref<1x!tpu.dma_semaphore, #tpu.memory_space<semaphore_mem>> -> memref<!tpu.dma_semaphore, #tpu.memory_space<semaphore_mem>>
    tpu.enqueue_dma source(%130 : memref<1x128xf32, #tpu.memory_space<any>>) target(%131 : memref<1x128xf32, #tpu.memory_space<vmem>>) target_semaphore(%133 : memref<!tpu.dma_semaphore, #tpu.memory_space<semaphore_mem>>)
    %c19_i32 = arith.constant 19 : i32
    %134 = arith.addi %0, %c19_i32 : i32
    %135 = arith.index_cast %134 : i32 to index
    %136 = memref.load %arg1[%135] : memref<112xi32, #tpu.memory_space<smem>>
    %c19_i32_76 = arith.constant 19 : i32
    %c0_i32_77 = arith.constant 0 : i32
    %137 = tpu.memref_slice %arg2[%136, %c0_i32_77] : memref<512x128xf32, #tpu.memory_space<any>> -> memref<1x128xf32, #tpu.memory_space<any>>
    %c19_i32_78 = arith.constant 19 : i32
    %c0_i32_79 = arith.constant 0 : i32
    %138 = tpu.memref_slice %arg4[%c19_i32_78, %c0_i32_79] : memref<56x128xf32, #tpu.memory_space<vmem>> -> memref<1x128xf32, #tpu.memory_space<vmem>>
    %139 = tpu.memref_slice %arg5[%c19_i32_76] : memref<56x!tpu.dma_semaphore, #tpu.memory_space<semaphore_mem>> -> memref<1x!tpu.dma_semaphore, #tpu.memory_space<semaphore_mem>>
    %140 = tpu.memref_squeeze %139 : memref<1x!tpu.dma_semaphore, #tpu.memory_space<semaphore_mem>> -> memref<!tpu.dma_semaphore, #tpu.memory_space<semaphore_mem>>
    tpu.enqueue_dma source(%137 : memref<1x128xf32, #tpu.memory_space<any>>) target(%138 : memref<1x128xf32, #tpu.memory_space<vmem>>) target_semaphore(%140 : memref<!tpu.dma_semaphore, #tpu.memory_space<semaphore_mem>>)
    %c20_i32 = arith.constant 20 : i32
    %141 = arith.addi %0, %c20_i32 : i32
    %142 = arith.index_cast %141 : i32 to index
    %143 = memref.load %arg1[%142] : memref<112xi32, #tpu.memory_space<smem>>
    %c20_i32_80 = arith.constant 20 : i32
    %c0_i32_81 = arith.constant 0 : i32
    %144 = tpu.memref_slice %arg2[%143, %c0_i32_81] : memref<512x128xf32, #tpu.memory_space<any>> -> memref<1x128xf32, #tpu.memory_space<any>>
    %c20_i32_82 = arith.constant 20 : i32
    %c0_i32_83 = arith.constant 0 : i32
    %145 = tpu.memref_slice %arg4[%c20_i32_82, %c0_i32_83] : memref<56x128xf32, #tpu.memory_space<vmem>> -> memref<1x128xf32, #tpu.memory_space<vmem>>
    %146 = tpu.memref_slice %arg5[%c20_i32_80] : memref<56x!tpu.dma_semaphore, #tpu.memory_space<semaphore_mem>> -> memref<1x!tpu.dma_semaphore, #tpu.memory_space<semaphore_mem>>
    %147 = tpu.memref_squeeze %146 : memref<1x!tpu.dma_semaphore, #tpu.memory_space<semaphore_mem>> -> memref<!tpu.dma_semaphore, #tpu.memory_space<semaphore_mem>>
    tpu.enqueue_dma source(%144 : memref<1x128xf32, #tpu.memory_space<any>>) target(%145 : memref<1x128xf32, #tpu.memory_space<vmem>>) target_semaphore(%147 : memref<!tpu.dma_semaphore, #tpu.memory_space<semaphore_mem>>)
    %c21_i32 = arith.constant 21 : i32
    %148 = arith.addi %0, %c21_i32 : i32
    %149 = arith.index_cast %148 : i32 to index
    %150 = memref.load %arg1[%149] : memref<112xi32, #tpu.memory_space<smem>>
    %c21_i32_84 = arith.constant 21 : i32
    %c0_i32_85 = arith.constant 0 : i32
    %151 = tpu.memref_slice %arg2[%150, %c0_i32_85] : memref<512x128xf32, #tpu.memory_space<any>> -> memref<1x128xf32, #tpu.memory_space<any>>
    %c21_i32_86 = arith.constant 21 : i32
    %c0_i32_87 = arith.constant 0 : i32
    %152 = tpu.memref_slice %arg4[%c21_i32_86, %c0_i32_87] : memref<56x128xf32, #tpu.memory_space<vmem>> -> memref<1x128xf32, #tpu.memory_space<vmem>>
    %153 = tpu.memref_slice %arg5[%c21_i32_84] : memref<56x!tpu.dma_semaphore, #tpu.memory_space<semaphore_mem>> -> memref<1x!tpu.dma_semaphore, #tpu.memory_space<semaphore_mem>>
    %154 = tpu.memref_squeeze %153 : memref<1x!tpu.dma_semaphore, #tpu.memory_space<semaphore_mem>> -> memref<!tpu.dma_semaphore, #tpu.memory_space<semaphore_mem>>
    tpu.enqueue_dma source(%151 : memref<1x128xf32, #tpu.memory_space<any>>) target(%152 : memref<1x128xf32, #tpu.memory_space<vmem>>) target_semaphore(%154 : memref<!tpu.dma_semaphore, #tpu.memory_space<semaphore_mem>>)
    %c22_i32 = arith.constant 22 : i32
    %155 = arith.addi %0, %c22_i32 : i32
    %156 = arith.index_cast %155 : i32 to index
    %157 = memref.load %arg1[%156] : memref<112xi32, #tpu.memory_space<smem>>
    %c22_i32_88 = arith.constant 22 : i32
    %c0_i32_89 = arith.constant 0 : i32
    %158 = tpu.memref_slice %arg2[%157, %c0_i32_89] : memref<512x128xf32, #tpu.memory_space<any>> -> memref<1x128xf32, #tpu.memory_space<any>>
    %c22_i32_90 = arith.constant 22 : i32
    %c0_i32_91 = arith.constant 0 : i32
    %159 = tpu.memref_slice %arg4[%c22_i32_90, %c0_i32_91] : memref<56x128xf32, #tpu.memory_space<vmem>> -> memref<1x128xf32, #tpu.memory_space<vmem>>
    %160 = tpu.memref_slice %arg5[%c22_i32_88] : memref<56x!tpu.dma_semaphore, #tpu.memory_space<semaphore_mem>> -> memref<1x!tpu.dma_semaphore, #tpu.memory_space<semaphore_mem>>
    %161 = tpu.memref_squeeze %160 : memref<1x!tpu.dma_semaphore, #tpu.memory_space<semaphore_mem>> -> memref<!tpu.dma_semaphore, #tpu.memory_space<semaphore_mem>>
    tpu.enqueue_dma source(%158 : memref<1x128xf32, #tpu.memory_space<any>>) target(%159 : memref<1x128xf32, #tpu.memory_space<vmem>>) target_semaphore(%161 : memref<!tpu.dma_semaphore, #tpu.memory_space<semaphore_mem>>)
    %c23_i32 = arith.constant 23 : i32
    %162 = arith.addi %0, %c23_i32 : i32
    %163 = arith.index_cast %162 : i32 to index
    %164 = memref.load %arg1[%163] : memref<112xi32, #tpu.memory_space<smem>>
    %c23_i32_92 = arith.constant 23 : i32
    %c0_i32_93 = arith.constant 0 : i32
    %165 = tpu.memref_slice %arg2[%164, %c0_i32_93] : memref<512x128xf32, #tpu.memory_space<any>> -> memref<1x128xf32, #tpu.memory_space<any>>
    %c23_i32_94 = arith.constant 23 : i32
    %c0_i32_95 = arith.constant 0 : i32
    %166 = tpu.memref_slice %arg4[%c23_i32_94, %c0_i32_95] : memref<56x128xf32, #tpu.memory_space<vmem>> -> memref<1x128xf32, #tpu.memory_space<vmem>>
    %167 = tpu.memref_slice %arg5[%c23_i32_92] : memref<56x!tpu.dma_semaphore, #tpu.memory_space<semaphore_mem>> -> memref<1x!tpu.dma_semaphore, #tpu.memory_space<semaphore_mem>>
    %168 = tpu.memref_squeeze %167 : memref<1x!tpu.dma_semaphore, #tpu.memory_space<semaphore_mem>> -> memref<!tpu.dma_semaphore, #tpu.memory_space<semaphore_mem>>
    tpu.enqueue_dma source(%165 : memref<1x128xf32, #tpu.memory_space<any>>) target(%166 : memref<1x128xf32, #tpu.memory_space<vmem>>) target_semaphore(%168 : memref<!tpu.dma_semaphore, #tpu.memory_space<semaphore_mem>>)
    %c24_i32 = arith.constant 24 : i32
    %169 = arith.addi %0, %c24_i32 : i32
    %170 = arith.index_cast %169 : i32 to index
    %171 = memref.load %arg1[%170] : memref<112xi32, #tpu.memory_space<smem>>
    %c24_i32_96 = arith.constant 24 : i32
    %c0_i32_97 = arith.constant 0 : i32
    %172 = tpu.memref_slice %arg2[%171, %c0_i32_97] : memref<512x128xf32, #tpu.memory_space<any>> -> memref<1x128xf32, #tpu.memory_space<any>>
    %c24_i32_98 = arith.constant 24 : i32
    %c0_i32_99 = arith.constant 0 : i32
    %173 = tpu.memref_slice %arg4[%c24_i32_98, %c0_i32_99] : memref<56x128xf32, #tpu.memory_space<vmem>> -> memref<1x128xf32, #tpu.memory_space<vmem>>
    %174 = tpu.memref_slice %arg5[%c24_i32_96] : memref<56x!tpu.dma_semaphore, #tpu.memory_space<semaphore_mem>> -> memref<1x!tpu.dma_semaphore, #tpu.memory_space<semaphore_mem>>
    %175 = tpu.memref_squeeze %174 : memref<1x!tpu.dma_semaphore, #tpu.memory_space<semaphore_mem>> -> memref<!tpu.dma_semaphore, #tpu.memory_space<semaphore_mem>>
    tpu.enqueue_dma source(%172 : memref<1x128xf32, #tpu.memory_space<any>>) target(%173 : memref<1x128xf32, #tpu.memory_space<vmem>>) target_semaphore(%175 : memref<!tpu.dma_semaphore, #tpu.memory_space<semaphore_mem>>)
    %c25_i32 = arith.constant 25 : i32
    %176 = arith.addi %0, %c25_i32 : i32
    %177 = arith.index_cast %176 : i32 to index
    %178 = memref.load %arg1[%177] : memref<112xi32, #tpu.memory_space<smem>>
    %c25_i32_100 = arith.constant 25 : i32
    %c0_i32_101 = arith.constant 0 : i32
    %179 = tpu.memref_slice %arg2[%178, %c0_i32_101] : memref<512x128xf32, #tpu.memory_space<any>> -> memref<1x128xf32, #tpu.memory_space<any>>
    %c25_i32_102 = arith.constant 25 : i32
    %c0_i32_103 = arith.constant 0 : i32
    %180 = tpu.memref_slice %arg4[%c25_i32_102, %c0_i32_103] : memref<56x128xf32, #tpu.memory_space<vmem>> -> memref<1x128xf32, #tpu.memory_space<vmem>>
    %181 = tpu.memref_slice %arg5[%c25_i32_100] : memref<56x!tpu.dma_semaphore, #tpu.memory_space<semaphore_mem>> -> memref<1x!tpu.dma_semaphore, #tpu.memory_space<semaphore_mem>>
    %182 = tpu.memref_squeeze %181 : memref<1x!tpu.dma_semaphore, #tpu.memory_space<semaphore_mem>> -> memref<!tpu.dma_semaphore, #tpu.memory_space<semaphore_mem>>
    tpu.enqueue_dma source(%179 : memref<1x128xf32, #tpu.memory_space<any>>) target(%180 : memref<1x128xf32, #tpu.memory_space<vmem>>) target_semaphore(%182 : memref<!tpu.dma_semaphore, #tpu.memory_space<semaphore_mem>>)
    %c26_i32 = arith.constant 26 : i32
    %183 = arith.addi %0, %c26_i32 : i32
    %184 = arith.index_cast %183 : i32 to index
    %185 = memref.load %arg1[%184] : memref<112xi32, #tpu.memory_space<smem>>
    %c26_i32_104 = arith.constant 26 : i32
    %c0_i32_105 = arith.constant 0 : i32
    %186 = tpu.memref_slice %arg2[%185, %c0_i32_105] : memref<512x128xf32, #tpu.memory_space<any>> -> memref<1x128xf32, #tpu.memory_space<any>>
    %c26_i32_106 = arith.constant 26 : i32
    %c0_i32_107 = arith.constant 0 : i32
    %187 = tpu.memref_slice %arg4[%c26_i32_106, %c0_i32_107] : memref<56x128xf32, #tpu.memory_space<vmem>> -> memref<1x128xf32, #tpu.memory_space<vmem>>
    %188 = tpu.memref_slice %arg5[%c26_i32_104] : memref<56x!tpu.dma_semaphore, #tpu.memory_space<semaphore_mem>> -> memref<1x!tpu.dma_semaphore, #tpu.memory_space<semaphore_mem>>
    %189 = tpu.memref_squeeze %188 : memref<1x!tpu.dma_semaphore, #tpu.memory_space<semaphore_mem>> -> memref<!tpu.dma_semaphore, #tpu.memory_space<semaphore_mem>>
    tpu.enqueue_dma source(%186 : memref<1x128xf32, #tpu.memory_space<any>>) target(%187 : memref<1x128xf32, #tpu.memory_space<vmem>>) target_semaphore(%189 : memref<!tpu.dma_semaphore, #tpu.memory_space<semaphore_mem>>)
    %c27_i32 = arith.constant 27 : i32
    %190 = arith.addi %0, %c27_i32 : i32
    %191 = arith.index_cast %190 : i32 to index
    %192 = memref.load %arg1[%191] : memref<112xi32, #tpu.memory_space<smem>>
    %c27_i32_108 = arith.constant 27 : i32
    %c0_i32_109 = arith.constant 0 : i32
    %193 = tpu.memref_slice %arg2[%192, %c0_i32_109] : memref<512x128xf32, #tpu.memory_space<any>> -> memref<1x128xf32, #tpu.memory_space<any>>
    %c27_i32_110 = arith.constant 27 : i32
    %c0_i32_111 = arith.constant 0 : i32
    %194 = tpu.memref_slice %arg4[%c27_i32_110, %c0_i32_111] : memref<56x128xf32, #tpu.memory_space<vmem>> -> memref<1x128xf32, #tpu.memory_space<vmem>>
    %195 = tpu.memref_slice %arg5[%c27_i32_108] : memref<56x!tpu.dma_semaphore, #tpu.memory_space<semaphore_mem>> -> memref<1x!tpu.dma_semaphore, #tpu.memory_space<semaphore_mem>>
    %196 = tpu.memref_squeeze %195 : memref<1x!tpu.dma_semaphore, #tpu.memory_space<semaphore_mem>> -> memref<!tpu.dma_semaphore, #tpu.memory_space<semaphore_mem>>
    tpu.enqueue_dma source(%193 : memref<1x128xf32, #tpu.memory_space<any>>) target(%194 : memref<1x128xf32, #tpu.memory_space<vmem>>) target_semaphore(%196 : memref<!tpu.dma_semaphore, #tpu.memory_space<semaphore_mem>>)
    %c28_i32 = arith.constant 28 : i32
    %197 = arith.addi %0, %c28_i32 : i32
    %198 = arith.index_cast %197 : i32 to index
    %199 = memref.load %arg1[%198] : memref<112xi32, #tpu.memory_space<smem>>
    %c28_i32_112 = arith.constant 28 : i32
    %c0_i32_113 = arith.constant 0 : i32
    %200 = tpu.memref_slice %arg2[%199, %c0_i32_113] : memref<512x128xf32, #tpu.memory_space<any>> -> memref<1x128xf32, #tpu.memory_space<any>>
    %c28_i32_114 = arith.constant 28 : i32
    %c0_i32_115 = arith.constant 0 : i32
    %201 = tpu.memref_slice %arg4[%c28_i32_114, %c0_i32_115] : memref<56x128xf32, #tpu.memory_space<vmem>> -> memref<1x128xf32, #tpu.memory_space<vmem>>
    %202 = tpu.memref_slice %arg5[%c28_i32_112] : memref<56x!tpu.dma_semaphore, #tpu.memory_space<semaphore_mem>> -> memref<1x!tpu.dma_semaphore, #tpu.memory_space<semaphore_mem>>
    %203 = tpu.memref_squeeze %202 : memref<1x!tpu.dma_semaphore, #tpu.memory_space<semaphore_mem>> -> memref<!tpu.dma_semaphore, #tpu.memory_space<semaphore_mem>>
    tpu.enqueue_dma source(%200 : memref<1x128xf32, #tpu.memory_space<any>>) target(%201 : memref<1x128xf32, #tpu.memory_space<vmem>>) target_semaphore(%203 : memref<!tpu.dma_semaphore, #tpu.memory_space<semaphore_mem>>)
    %c29_i32 = arith.constant 29 : i32
    %204 = arith.addi %0, %c29_i32 : i32
    %205 = arith.index_cast %204 : i32 to index
    %206 = memref.load %arg1[%205] : memref<112xi32, #tpu.memory_space<smem>>
    %c29_i32_116 = arith.constant 29 : i32
    %c0_i32_117 = arith.constant 0 : i32
    %207 = tpu.memref_slice %arg2[%206, %c0_i32_117] : memref<512x128xf32, #tpu.memory_space<any>> -> memref<1x128xf32, #tpu.memory_space<any>>
    %c29_i32_118 = arith.constant 29 : i32
    %c0_i32_119 = arith.constant 0 : i32
    %208 = tpu.memref_slice %arg4[%c29_i32_118, %c0_i32_119] : memref<56x128xf32, #tpu.memory_space<vmem>> -> memref<1x128xf32, #tpu.memory_space<vmem>>
    %209 = tpu.memref_slice %arg5[%c29_i32_116] : memref<56x!tpu.dma_semaphore, #tpu.memory_space<semaphore_mem>> -> memref<1x!tpu.dma_semaphore, #tpu.memory_space<semaphore_mem>>
    %210 = tpu.memref_squeeze %209 : memref<1x!tpu.dma_semaphore, #tpu.memory_space<semaphore_mem>> -> memref<!tpu.dma_semaphore, #tpu.memory_space<semaphore_mem>>
    tpu.enqueue_dma source(%207 : memref<1x128xf32, #tpu.memory_space<any>>) target(%208 : memref<1x128xf32, #tpu.memory_space<vmem>>) target_semaphore(%210 : memref<!tpu.dma_semaphore, #tpu.memory_space<semaphore_mem>>)
    %c30_i32 = arith.constant 30 : i32
    %211 = arith.addi %0, %c30_i32 : i32
    %212 = arith.index_cast %211 : i32 to index
    %213 = memref.load %arg1[%212] : memref<112xi32, #tpu.memory_space<smem>>
    %c30_i32_120 = arith.constant 30 : i32
    %c0_i32_121 = arith.constant 0 : i32
    %214 = tpu.memref_slice %arg2[%213, %c0_i32_121] : memref<512x128xf32, #tpu.memory_space<any>> -> memref<1x128xf32, #tpu.memory_space<any>>
    %c30_i32_122 = arith.constant 30 : i32
    %c0_i32_123 = arith.constant 0 : i32
    %215 = tpu.memref_slice %arg4[%c30_i32_122, %c0_i32_123] : memref<56x128xf32, #tpu.memory_space<vmem>> -> memref<1x128xf32, #tpu.memory_space<vmem>>
    %216 = tpu.memref_slice %arg5[%c30_i32_120] : memref<56x!tpu.dma_semaphore, #tpu.memory_space<semaphore_mem>> -> memref<1x!tpu.dma_semaphore, #tpu.memory_space<semaphore_mem>>
    %217 = tpu.memref_squeeze %216 : memref<1x!tpu.dma_semaphore, #tpu.memory_space<semaphore_mem>> -> memref<!tpu.dma_semaphore, #tpu.memory_space<semaphore_mem>>
    tpu.enqueue_dma source(%214 : memref<1x128xf32, #tpu.memory_space<any>>) target(%215 : memref<1x128xf32, #tpu.memory_space<vmem>>) target_semaphore(%217 : memref<!tpu.dma_semaphore, #tpu.memory_space<semaphore_mem>>)
    %c31_i32 = arith.constant 31 : i32
    %218 = arith.addi %0, %c31_i32 : i32
    %219 = arith.index_cast %218 : i32 to index
    %220 = memref.load %arg1[%219] : memref<112xi32, #tpu.memory_space<smem>>
    %c31_i32_124 = arith.constant 31 : i32
    %c0_i32_125 = arith.constant 0 : i32
    %221 = tpu.memref_slice %arg2[%220, %c0_i32_125] : memref<512x128xf32, #tpu.memory_space<any>> -> memref<1x128xf32, #tpu.memory_space<any>>
    %c31_i32_126 = arith.constant 31 : i32
    %c0_i32_127 = arith.constant 0 : i32
    %222 = tpu.memref_slice %arg4[%c31_i32_126, %c0_i32_127] : memref<56x128xf32, #tpu.memory_space<vmem>> -> memref<1x128xf32, #tpu.memory_space<vmem>>
    %223 = tpu.memref_slice %arg5[%c31_i32_124] : memref<56x!tpu.dma_semaphore, #tpu.memory_space<semaphore_mem>> -> memref<1x!tpu.dma_semaphore, #tpu.memory_space<semaphore_mem>>
    %224 = tpu.memref_squeeze %223 : memref<1x!tpu.dma_semaphore, #tpu.memory_space<semaphore_mem>> -> memref<!tpu.dma_semaphore, #tpu.memory_space<semaphore_mem>>
    tpu.enqueue_dma source(%221 : memref<1x128xf32, #tpu.memory_space<any>>) target(%222 : memref<1x128xf32, #tpu.memory_space<vmem>>) target_semaphore(%224 : memref<!tpu.dma_semaphore, #tpu.memory_space<semaphore_mem>>)
    %c32_i32 = arith.constant 32 : i32
    %225 = arith.addi %0, %c32_i32 : i32
    %226 = arith.index_cast %225 : i32 to index
    %227 = memref.load %arg1[%226] : memref<112xi32, #tpu.memory_space<smem>>
    %c32_i32_128 = arith.constant 32 : i32
    %c0_i32_129 = arith.constant 0 : i32
    %228 = tpu.memref_slice %arg2[%227, %c0_i32_129] : memref<512x128xf32, #tpu.memory_space<any>> -> memref<1x128xf32, #tpu.memory_space<any>>
    %c32_i32_130 = arith.constant 32 : i32
    %c0_i32_131 = arith.constant 0 : i32
    %229 = tpu.memref_slice %arg4[%c32_i32_130, %c0_i32_131] : memref<56x128xf32, #tpu.memory_space<vmem>> -> memref<1x128xf32, #tpu.memory_space<vmem>>
    %230 = tpu.memref_slice %arg5[%c32_i32_128] : memref<56x!tpu.dma_semaphore, #tpu.memory_space<semaphore_mem>> -> memref<1x!tpu.dma_semaphore, #tpu.memory_space<semaphore_mem>>
    %231 = tpu.memref_squeeze %230 : memref<1x!tpu.dma_semaphore, #tpu.memory_space<semaphore_mem>> -> memref<!tpu.dma_semaphore, #tpu.memory_space<semaphore_mem>>
    tpu.enqueue_dma source(%228 : memref<1x128xf32, #tpu.memory_space<any>>) target(%229 : memref<1x128xf32, #tpu.memory_space<vmem>>) target_semaphore(%231 : memref<!tpu.dma_semaphore, #tpu.memory_space<semaphore_mem>>)
    %c33_i32 = arith.constant 33 : i32
    %232 = arith.addi %0, %c33_i32 : i32
    %233 = arith.index_cast %232 : i32 to index
    %234 = memref.load %arg1[%233] : memref<112xi32, #tpu.memory_space<smem>>
    %c33_i32_132 = arith.constant 33 : i32
    %c0_i32_133 = arith.constant 0 : i32
    %235 = tpu.memref_slice %arg2[%234, %c0_i32_133] : memref<512x128xf32, #tpu.memory_space<any>> -> memref<1x128xf32, #tpu.memory_space<any>>
    %c33_i32_134 = arith.constant 33 : i32
    %c0_i32_135 = arith.constant 0 : i32
    %236 = tpu.memref_slice %arg4[%c33_i32_134, %c0_i32_135] : memref<56x128xf32, #tpu.memory_space<vmem>> -> memref<1x128xf32, #tpu.memory_space<vmem>>
    %237 = tpu.memref_slice %arg5[%c33_i32_132] : memref<56x!tpu.dma_semaphore, #tpu.memory_space<semaphore_mem>> -> memref<1x!tpu.dma_semaphore, #tpu.memory_space<semaphore_mem>>
    %238 = tpu.memref_squeeze %237 : memref<1x!tpu.dma_semaphore, #tpu.memory_space<semaphore_mem>> -> memref<!tpu.dma_semaphore, #tpu.memory_space<semaphore_mem>>
    tpu.enqueue_dma source(%235 : memref<1x128xf32, #tpu.memory_space<any>>) target(%236 : memref<1x128xf32, #tpu.memory_space<vmem>>) target_semaphore(%238 : memref<!tpu.dma_semaphore, #tpu.memory_space<semaphore_mem>>)
    %c34_i32 = arith.constant 34 : i32
    %239 = arith.addi %0, %c34_i32 : i32
    %240 = arith.index_cast %239 : i32 to index
    %241 = memref.load %arg1[%240] : memref<112xi32, #tpu.memory_space<smem>>
    %c34_i32_136 = arith.constant 34 : i32
    %c0_i32_137 = arith.constant 0 : i32
    %242 = tpu.memref_slice %arg2[%241, %c0_i32_137] : memref<512x128xf32, #tpu.memory_space<any>> -> memref<1x128xf32, #tpu.memory_space<any>>
    %c34_i32_138 = arith.constant 34 : i32
    %c0_i32_139 = arith.constant 0 : i32
    %243 = tpu.memref_slice %arg4[%c34_i32_138, %c0_i32_139] : memref<56x128xf32, #tpu.memory_space<vmem>> -> memref<1x128xf32, #tpu.memory_space<vmem>>
    %244 = tpu.memref_slice %arg5[%c34_i32_136] : memref<56x!tpu.dma_semaphore, #tpu.memory_space<semaphore_mem>> -> memref<1x!tpu.dma_semaphore, #tpu.memory_space<semaphore_mem>>
    %245 = tpu.memref_squeeze %244 : memref<1x!tpu.dma_semaphore, #tpu.memory_space<semaphore_mem>> -> memref<!tpu.dma_semaphore, #tpu.memory_space<semaphore_mem>>
    tpu.enqueue_dma source(%242 : memref<1x128xf32, #tpu.memory_space<any>>) target(%243 : memref<1x128xf32, #tpu.memory_space<vmem>>) target_semaphore(%245 : memref<!tpu.dma_semaphore, #tpu.memory_space<semaphore_mem>>)
    %c35_i32 = arith.constant 35 : i32
    %246 = arith.addi %0, %c35_i32 : i32
    %247 = arith.index_cast %246 : i32 to index
    %248 = memref.load %arg1[%247] : memref<112xi32, #tpu.memory_space<smem>>
    %c35_i32_140 = arith.constant 35 : i32
    %c0_i32_141 = arith.constant 0 : i32
    %249 = tpu.memref_slice %arg2[%248, %c0_i32_141] : memref<512x128xf32, #tpu.memory_space<any>> -> memref<1x128xf32, #tpu.memory_space<any>>
    %c35_i32_142 = arith.constant 35 : i32
    %c0_i32_143 = arith.constant 0 : i32
    %250 = tpu.memref_slice %arg4[%c35_i32_142, %c0_i32_143] : memref<56x128xf32, #tpu.memory_space<vmem>> -> memref<1x128xf32, #tpu.memory_space<vmem>>
    %251 = tpu.memref_slice %arg5[%c35_i32_140] : memref<56x!tpu.dma_semaphore, #tpu.memory_space<semaphore_mem>> -> memref<1x!tpu.dma_semaphore, #tpu.memory_space<semaphore_mem>>
    %252 = tpu.memref_squeeze %251 : memref<1x!tpu.dma_semaphore, #tpu.memory_space<semaphore_mem>> -> memref<!tpu.dma_semaphore, #tpu.memory_space<semaphore_mem>>
    tpu.enqueue_dma source(%249 : memref<1x128xf32, #tpu.memory_space<any>>) target(%250 : memref<1x128xf32, #tpu.memory_space<vmem>>) target_semaphore(%252 : memref<!tpu.dma_semaphore, #tpu.memory_space<semaphore_mem>>)
    %c36_i32 = arith.constant 36 : i32
    %253 = arith.addi %0, %c36_i32 : i32
    %254 = arith.index_cast %253 : i32 to index
    %255 = memref.load %arg1[%254] : memref<112xi32, #tpu.memory_space<smem>>
    %c36_i32_144 = arith.constant 36 : i32
    %c0_i32_145 = arith.constant 0 : i32
    %256 = tpu.memref_slice %arg2[%255, %c0_i32_145] : memref<512x128xf32, #tpu.memory_space<any>> -> memref<1x128xf32, #tpu.memory_space<any>>
    %c36_i32_146 = arith.constant 36 : i32
    %c0_i32_147 = arith.constant 0 : i32
    %257 = tpu.memref_slice %arg4[%c36_i32_146, %c0_i32_147] : memref<56x128xf32, #tpu.memory_space<vmem>> -> memref<1x128xf32, #tpu.memory_space<vmem>>
    %258 = tpu.memref_slice %arg5[%c36_i32_144] : memref<56x!tpu.dma_semaphore, #tpu.memory_space<semaphore_mem>> -> memref<1x!tpu.dma_semaphore, #tpu.memory_space<semaphore_mem>>
    %259 = tpu.memref_squeeze %258 : memref<1x!tpu.dma_semaphore, #tpu.memory_space<semaphore_mem>> -> memref<!tpu.dma_semaphore, #tpu.memory_space<semaphore_mem>>
    tpu.enqueue_dma source(%256 : memref<1x128xf32, #tpu.memory_space<any>>) target(%257 : memref<1x128xf32, #tpu.memory_space<vmem>>) target_semaphore(%259 : memref<!tpu.dma_semaphore, #tpu.memory_space<semaphore_mem>>)
    %c37_i32 = arith.constant 37 : i32
    %260 = arith.addi %0, %c37_i32 : i32
    %261 = arith.index_cast %260 : i32 to index
    %262 = memref.load %arg1[%261] : memref<112xi32, #tpu.memory_space<smem>>
    %c37_i32_148 = arith.constant 37 : i32
    %c0_i32_149 = arith.constant 0 : i32
    %263 = tpu.memref_slice %arg2[%262, %c0_i32_149] : memref<512x128xf32, #tpu.memory_space<any>> -> memref<1x128xf32, #tpu.memory_space<any>>
    %c37_i32_150 = arith.constant 37 : i32
    %c0_i32_151 = arith.constant 0 : i32
    %264 = tpu.memref_slice %arg4[%c37_i32_150, %c0_i32_151] : memref<56x128xf32, #tpu.memory_space<vmem>> -> memref<1x128xf32, #tpu.memory_space<vmem>>
    %265 = tpu.memref_slice %arg5[%c37_i32_148] : memref<56x!tpu.dma_semaphore, #tpu.memory_space<semaphore_mem>> -> memref<1x!tpu.dma_semaphore, #tpu.memory_space<semaphore_mem>>
    %266 = tpu.memref_squeeze %265 : memref<1x!tpu.dma_semaphore, #tpu.memory_space<semaphore_mem>> -> memref<!tpu.dma_semaphore, #tpu.memory_space<semaphore_mem>>
    tpu.enqueue_dma source(%263 : memref<1x128xf32, #tpu.memory_space<any>>) target(%264 : memref<1x128xf32, #tpu.memory_space<vmem>>) target_semaphore(%266 : memref<!tpu.dma_semaphore, #tpu.memory_space<semaphore_mem>>)
    %c38_i32 = arith.constant 38 : i32
    %267 = arith.addi %0, %c38_i32 : i32
    %268 = arith.index_cast %267 : i32 to index
    %269 = memref.load %arg1[%268] : memref<112xi32, #tpu.memory_space<smem>>
    %c38_i32_152 = arith.constant 38 : i32
    %c0_i32_153 = arith.constant 0 : i32
    %270 = tpu.memref_slice %arg2[%269, %c0_i32_153] : memref<512x128xf32, #tpu.memory_space<any>> -> memref<1x128xf32, #tpu.memory_space<any>>
    %c38_i32_154 = arith.constant 38 : i32
    %c0_i32_155 = arith.constant 0 : i32
    %271 = tpu.memref_slice %arg4[%c38_i32_154, %c0_i32_155] : memref<56x128xf32, #tpu.memory_space<vmem>> -> memref<1x128xf32, #tpu.memory_space<vmem>>
    %272 = tpu.memref_slice %arg5[%c38_i32_152] : memref<56x!tpu.dma_semaphore, #tpu.memory_space<semaphore_mem>> -> memref<1x!tpu.dma_semaphore, #tpu.memory_space<semaphore_mem>>
    %273 = tpu.memref_squeeze %272 : memref<1x!tpu.dma_semaphore, #tpu.memory_space<semaphore_mem>> -> memref<!tpu.dma_semaphore, #tpu.memory_space<semaphore_mem>>
    tpu.enqueue_dma source(%270 : memref<1x128xf32, #tpu.memory_space<any>>) target(%271 : memref<1x128xf32, #tpu.memory_space<vmem>>) target_semaphore(%273 : memref<!tpu.dma_semaphore, #tpu.memory_space<semaphore_mem>>)
    %c39_i32 = arith.constant 39 : i32
    %274 = arith.addi %0, %c39_i32 : i32
    %275 = arith.index_cast %274 : i32 to index
    %276 = memref.load %arg1[%275] : memref<112xi32, #tpu.memory_space<smem>>
    %c39_i32_156 = arith.constant 39 : i32
    %c0_i32_157 = arith.constant 0 : i32
    %277 = tpu.memref_slice %arg2[%276, %c0_i32_157] : memref<512x128xf32, #tpu.memory_space<any>> -> memref<1x128xf32, #tpu.memory_space<any>>
    %c39_i32_158 = arith.constant 39 : i32
    %c0_i32_159 = arith.constant 0 : i32
    %278 = tpu.memref_slice %arg4[%c39_i32_158, %c0_i32_159] : memref<56x128xf32, #tpu.memory_space<vmem>> -> memref<1x128xf32, #tpu.memory_space<vmem>>
    %279 = tpu.memref_slice %arg5[%c39_i32_156] : memref<56x!tpu.dma_semaphore, #tpu.memory_space<semaphore_mem>> -> memref<1x!tpu.dma_semaphore, #tpu.memory_space<semaphore_mem>>
    %280 = tpu.memref_squeeze %279 : memref<1x!tpu.dma_semaphore, #tpu.memory_space<semaphore_mem>> -> memref<!tpu.dma_semaphore, #tpu.memory_space<semaphore_mem>>
    tpu.enqueue_dma source(%277 : memref<1x128xf32, #tpu.memory_space<any>>) target(%278 : memref<1x128xf32, #tpu.memory_space<vmem>>) target_semaphore(%280 : memref<!tpu.dma_semaphore, #tpu.memory_space<semaphore_mem>>)
    %c40_i32 = arith.constant 40 : i32
    %281 = arith.addi %0, %c40_i32 : i32
    %282 = arith.index_cast %281 : i32 to index
    %283 = memref.load %arg1[%282] : memref<112xi32, #tpu.memory_space<smem>>
    %c40_i32_160 = arith.constant 40 : i32
    %c0_i32_161 = arith.constant 0 : i32
    %284 = tpu.memref_slice %arg2[%283, %c0_i32_161] : memref<512x128xf32, #tpu.memory_space<any>> -> memref<1x128xf32, #tpu.memory_space<any>>
    %c40_i32_162 = arith.constant 40 : i32
    %c0_i32_163 = arith.constant 0 : i32
    %285 = tpu.memref_slice %arg4[%c40_i32_162, %c0_i32_163] : memref<56x128xf32, #tpu.memory_space<vmem>> -> memref<1x128xf32, #tpu.memory_space<vmem>>
    %286 = tpu.memref_slice %arg5[%c40_i32_160] : memref<56x!tpu.dma_semaphore, #tpu.memory_space<semaphore_mem>> -> memref<1x!tpu.dma_semaphore, #tpu.memory_space<semaphore_mem>>
    %287 = tpu.memref_squeeze %286 : memref<1x!tpu.dma_semaphore, #tpu.memory_space<semaphore_mem>> -> memref<!tpu.dma_semaphore, #tpu.memory_space<semaphore_mem>>
    tpu.enqueue_dma source(%284 : memref<1x128xf32, #tpu.memory_space<any>>) target(%285 : memref<1x128xf32, #tpu.memory_space<vmem>>) target_semaphore(%287 : memref<!tpu.dma_semaphore, #tpu.memory_space<semaphore_mem>>)
    %c41_i32 = arith.constant 41 : i32
    %288 = arith.addi %0, %c41_i32 : i32
    %289 = arith.index_cast %288 : i32 to index
    %290 = memref.load %arg1[%289] : memref<112xi32, #tpu.memory_space<smem>>
    %c41_i32_164 = arith.constant 41 : i32
    %c0_i32_165 = arith.constant 0 : i32
    %291 = tpu.memref_slice %arg2[%290, %c0_i32_165] : memref<512x128xf32, #tpu.memory_space<any>> -> memref<1x128xf32, #tpu.memory_space<any>>
    %c41_i32_166 = arith.constant 41 : i32
    %c0_i32_167 = arith.constant 0 : i32
    %292 = tpu.memref_slice %arg4[%c41_i32_166, %c0_i32_167] : memref<56x128xf32, #tpu.memory_space<vmem>> -> memref<1x128xf32, #tpu.memory_space<vmem>>
    %293 = tpu.memref_slice %arg5[%c41_i32_164] : memref<56x!tpu.dma_semaphore, #tpu.memory_space<semaphore_mem>> -> memref<1x!tpu.dma_semaphore, #tpu.memory_space<semaphore_mem>>
    %294 = tpu.memref_squeeze %293 : memref<1x!tpu.dma_semaphore, #tpu.memory_space<semaphore_mem>> -> memref<!tpu.dma_semaphore, #tpu.memory_space<semaphore_mem>>
    tpu.enqueue_dma source(%291 : memref<1x128xf32, #tpu.memory_space<any>>) target(%292 : memref<1x128xf32, #tpu.memory_space<vmem>>) target_semaphore(%294 : memref<!tpu.dma_semaphore, #tpu.memory_space<semaphore_mem>>)
    %c42_i32 = arith.constant 42 : i32
    %295 = arith.addi %0, %c42_i32 : i32
    %296 = arith.index_cast %295 : i32 to index
    %297 = memref.load %arg1[%296] : memref<112xi32, #tpu.memory_space<smem>>
    %c42_i32_168 = arith.constant 42 : i32
    %c0_i32_169 = arith.constant 0 : i32
    %298 = tpu.memref_slice %arg2[%297, %c0_i32_169] : memref<512x128xf32, #tpu.memory_space<any>> -> memref<1x128xf32, #tpu.memory_space<any>>
    %c42_i32_170 = arith.constant 42 : i32
    %c0_i32_171 = arith.constant 0 : i32
    %299 = tpu.memref_slice %arg4[%c42_i32_170, %c0_i32_171] : memref<56x128xf32, #tpu.memory_space<vmem>> -> memref<1x128xf32, #tpu.memory_space<vmem>>
    %300 = tpu.memref_slice %arg5[%c42_i32_168] : memref<56x!tpu.dma_semaphore, #tpu.memory_space<semaphore_mem>> -> memref<1x!tpu.dma_semaphore, #tpu.memory_space<semaphore_mem>>
    %301 = tpu.memref_squeeze %300 : memref<1x!tpu.dma_semaphore, #tpu.memory_space<semaphore_mem>> -> memref<!tpu.dma_semaphore, #tpu.memory_space<semaphore_mem>>
    tpu.enqueue_dma source(%298 : memref<1x128xf32, #tpu.memory_space<any>>) target(%299 : memref<1x128xf32, #tpu.memory_space<vmem>>) target_semaphore(%301 : memref<!tpu.dma_semaphore, #tpu.memory_space<semaphore_mem>>)
    %c43_i32 = arith.constant 43 : i32
    %302 = arith.addi %0, %c43_i32 : i32
    %303 = arith.index_cast %302 : i32 to index
    %304 = memref.load %arg1[%303] : memref<112xi32, #tpu.memory_space<smem>>
    %c43_i32_172 = arith.constant 43 : i32
    %c0_i32_173 = arith.constant 0 : i32
    %305 = tpu.memref_slice %arg2[%304, %c0_i32_173] : memref<512x128xf32, #tpu.memory_space<any>> -> memref<1x128xf32, #tpu.memory_space<any>>
    %c43_i32_174 = arith.constant 43 : i32
    %c0_i32_175 = arith.constant 0 : i32
    %306 = tpu.memref_slice %arg4[%c43_i32_174, %c0_i32_175] : memref<56x128xf32, #tpu.memory_space<vmem>> -> memref<1x128xf32, #tpu.memory_space<vmem>>
    %307 = tpu.memref_slice %arg5[%c43_i32_172] : memref<56x!tpu.dma_semaphore, #tpu.memory_space<semaphore_mem>> -> memref<1x!tpu.dma_semaphore, #tpu.memory_space<semaphore_mem>>
    %308 = tpu.memref_squeeze %307 : memref<1x!tpu.dma_semaphore, #tpu.memory_space<semaphore_mem>> -> memref<!tpu.dma_semaphore, #tpu.memory_space<semaphore_mem>>
    tpu.enqueue_dma source(%305 : memref<1x128xf32, #tpu.memory_space<any>>) target(%306 : memref<1x128xf32, #tpu.memory_space<vmem>>) target_semaphore(%308 : memref<!tpu.dma_semaphore, #tpu.memory_space<semaphore_mem>>)
    %c44_i32 = arith.constant 44 : i32
    %309 = arith.addi %0, %c44_i32 : i32
    %310 = arith.index_cast %309 : i32 to index
    %311 = memref.load %arg1[%310] : memref<112xi32, #tpu.memory_space<smem>>
    %c44_i32_176 = arith.constant 44 : i32
    %c0_i32_177 = arith.constant 0 : i32
    %312 = tpu.memref_slice %arg2[%311, %c0_i32_177] : memref<512x128xf32, #tpu.memory_space<any>> -> memref<1x128xf32, #tpu.memory_space<any>>
    %c44_i32_178 = arith.constant 44 : i32
    %c0_i32_179 = arith.constant 0 : i32
    %313 = tpu.memref_slice %arg4[%c44_i32_178, %c0_i32_179] : memref<56x128xf32, #tpu.memory_space<vmem>> -> memref<1x128xf32, #tpu.memory_space<vmem>>
    %314 = tpu.memref_slice %arg5[%c44_i32_176] : memref<56x!tpu.dma_semaphore, #tpu.memory_space<semaphore_mem>> -> memref<1x!tpu.dma_semaphore, #tpu.memory_space<semaphore_mem>>
    %315 = tpu.memref_squeeze %314 : memref<1x!tpu.dma_semaphore, #tpu.memory_space<semaphore_mem>> -> memref<!tpu.dma_semaphore, #tpu.memory_space<semaphore_mem>>
    tpu.enqueue_dma source(%312 : memref<1x128xf32, #tpu.memory_space<any>>) target(%313 : memref<1x128xf32, #tpu.memory_space<vmem>>) target_semaphore(%315 : memref<!tpu.dma_semaphore, #tpu.memory_space<semaphore_mem>>)
    %c45_i32 = arith.constant 45 : i32
    %316 = arith.addi %0, %c45_i32 : i32
    %317 = arith.index_cast %316 : i32 to index
    %318 = memref.load %arg1[%317] : memref<112xi32, #tpu.memory_space<smem>>
    %c45_i32_180 = arith.constant 45 : i32
    %c0_i32_181 = arith.constant 0 : i32
    %319 = tpu.memref_slice %arg2[%318, %c0_i32_181] : memref<512x128xf32, #tpu.memory_space<any>> -> memref<1x128xf32, #tpu.memory_space<any>>
    %c45_i32_182 = arith.constant 45 : i32
    %c0_i32_183 = arith.constant 0 : i32
    %320 = tpu.memref_slice %arg4[%c45_i32_182, %c0_i32_183] : memref<56x128xf32, #tpu.memory_space<vmem>> -> memref<1x128xf32, #tpu.memory_space<vmem>>
    %321 = tpu.memref_slice %arg5[%c45_i32_180] : memref<56x!tpu.dma_semaphore, #tpu.memory_space<semaphore_mem>> -> memref<1x!tpu.dma_semaphore, #tpu.memory_space<semaphore_mem>>
    %322 = tpu.memref_squeeze %321 : memref<1x!tpu.dma_semaphore, #tpu.memory_space<semaphore_mem>> -> memref<!tpu.dma_semaphore, #tpu.memory_space<semaphore_mem>>
    tpu.enqueue_dma source(%319 : memref<1x128xf32, #tpu.memory_space<any>>) target(%320 : memref<1x128xf32, #tpu.memory_space<vmem>>) target_semaphore(%322 : memref<!tpu.dma_semaphore, #tpu.memory_space<semaphore_mem>>)
    %c46_i32 = arith.constant 46 : i32
    %323 = arith.addi %0, %c46_i32 : i32
    %324 = arith.index_cast %323 : i32 to index
    %325 = memref.load %arg1[%324] : memref<112xi32, #tpu.memory_space<smem>>
    %c46_i32_184 = arith.constant 46 : i32
    %c0_i32_185 = arith.constant 0 : i32
    %326 = tpu.memref_slice %arg2[%325, %c0_i32_185] : memref<512x128xf32, #tpu.memory_space<any>> -> memref<1x128xf32, #tpu.memory_space<any>>
    %c46_i32_186 = arith.constant 46 : i32
    %c0_i32_187 = arith.constant 0 : i32
    %327 = tpu.memref_slice %arg4[%c46_i32_186, %c0_i32_187] : memref<56x128xf32, #tpu.memory_space<vmem>> -> memref<1x128xf32, #tpu.memory_space<vmem>>
    %328 = tpu.memref_slice %arg5[%c46_i32_184] : memref<56x!tpu.dma_semaphore, #tpu.memory_space<semaphore_mem>> -> memref<1x!tpu.dma_semaphore, #tpu.memory_space<semaphore_mem>>
    %329 = tpu.memref_squeeze %328 : memref<1x!tpu.dma_semaphore, #tpu.memory_space<semaphore_mem>> -> memref<!tpu.dma_semaphore, #tpu.memory_space<semaphore_mem>>
    tpu.enqueue_dma source(%326 : memref<1x128xf32, #tpu.memory_space<any>>) target(%327 : memref<1x128xf32, #tpu.memory_space<vmem>>) target_semaphore(%329 : memref<!tpu.dma_semaphore, #tpu.memory_space<semaphore_mem>>)
    %c47_i32 = arith.constant 47 : i32
    %330 = arith.addi %0, %c47_i32 : i32
    %331 = arith.index_cast %330 : i32 to index
    %332 = memref.load %arg1[%331] : memref<112xi32, #tpu.memory_space<smem>>
    %c47_i32_188 = arith.constant 47 : i32
    %c0_i32_189 = arith.constant 0 : i32
    %333 = tpu.memref_slice %arg2[%332, %c0_i32_189] : memref<512x128xf32, #tpu.memory_space<any>> -> memref<1x128xf32, #tpu.memory_space<any>>
    %c47_i32_190 = arith.constant 47 : i32
    %c0_i32_191 = arith.constant 0 : i32
    %334 = tpu.memref_slice %arg4[%c47_i32_190, %c0_i32_191] : memref<56x128xf32, #tpu.memory_space<vmem>> -> memref<1x128xf32, #tpu.memory_space<vmem>>
    %335 = tpu.memref_slice %arg5[%c47_i32_188] : memref<56x!tpu.dma_semaphore, #tpu.memory_space<semaphore_mem>> -> memref<1x!tpu.dma_semaphore, #tpu.memory_space<semaphore_mem>>
    %336 = tpu.memref_squeeze %335 : memref<1x!tpu.dma_semaphore, #tpu.memory_space<semaphore_mem>> -> memref<!tpu.dma_semaphore, #tpu.memory_space<semaphore_mem>>
    tpu.enqueue_dma source(%333 : memref<1x128xf32, #tpu.memory_space<any>>) target(%334 : memref<1x128xf32, #tpu.memory_space<vmem>>) target_semaphore(%336 : memref<!tpu.dma_semaphore, #tpu.memory_space<semaphore_mem>>)
    %c48_i32 = arith.constant 48 : i32
    %337 = arith.addi %0, %c48_i32 : i32
    %338 = arith.index_cast %337 : i32 to index
    %339 = memref.load %arg1[%338] : memref<112xi32, #tpu.memory_space<smem>>
    %c48_i32_192 = arith.constant 48 : i32
    %c0_i32_193 = arith.constant 0 : i32
    %340 = tpu.memref_slice %arg2[%339, %c0_i32_193] : memref<512x128xf32, #tpu.memory_space<any>> -> memref<1x128xf32, #tpu.memory_space<any>>
    %c48_i32_194 = arith.constant 48 : i32
    %c0_i32_195 = arith.constant 0 : i32
    %341 = tpu.memref_slice %arg4[%c48_i32_194, %c0_i32_195] : memref<56x128xf32, #tpu.memory_space<vmem>> -> memref<1x128xf32, #tpu.memory_space<vmem>>
    %342 = tpu.memref_slice %arg5[%c48_i32_192] : memref<56x!tpu.dma_semaphore, #tpu.memory_space<semaphore_mem>> -> memref<1x!tpu.dma_semaphore, #tpu.memory_space<semaphore_mem>>
    %343 = tpu.memref_squeeze %342 : memref<1x!tpu.dma_semaphore, #tpu.memory_space<semaphore_mem>> -> memref<!tpu.dma_semaphore, #tpu.memory_space<semaphore_mem>>
    tpu.enqueue_dma source(%340 : memref<1x128xf32, #tpu.memory_space<any>>) target(%341 : memref<1x128xf32, #tpu.memory_space<vmem>>) target_semaphore(%343 : memref<!tpu.dma_semaphore, #tpu.memory_space<semaphore_mem>>)
    %c49_i32 = arith.constant 49 : i32
    %344 = arith.addi %0, %c49_i32 : i32
    %345 = arith.index_cast %344 : i32 to index
    %346 = memref.load %arg1[%345] : memref<112xi32, #tpu.memory_space<smem>>
    %c49_i32_196 = arith.constant 49 : i32
    %c0_i32_197 = arith.constant 0 : i32
    %347 = tpu.memref_slice %arg2[%346, %c0_i32_197] : memref<512x128xf32, #tpu.memory_space<any>> -> memref<1x128xf32, #tpu.memory_space<any>>
    %c49_i32_198 = arith.constant 49 : i32
    %c0_i32_199 = arith.constant 0 : i32
    %348 = tpu.memref_slice %arg4[%c49_i32_198, %c0_i32_199] : memref<56x128xf32, #tpu.memory_space<vmem>> -> memref<1x128xf32, #tpu.memory_space<vmem>>
    %349 = tpu.memref_slice %arg5[%c49_i32_196] : memref<56x!tpu.dma_semaphore, #tpu.memory_space<semaphore_mem>> -> memref<1x!tpu.dma_semaphore, #tpu.memory_space<semaphore_mem>>
    %350 = tpu.memref_squeeze %349 : memref<1x!tpu.dma_semaphore, #tpu.memory_space<semaphore_mem>> -> memref<!tpu.dma_semaphore, #tpu.memory_space<semaphore_mem>>
    tpu.enqueue_dma source(%347 : memref<1x128xf32, #tpu.memory_space<any>>) target(%348 : memref<1x128xf32, #tpu.memory_space<vmem>>) target_semaphore(%350 : memref<!tpu.dma_semaphore, #tpu.memory_space<semaphore_mem>>)
    %c50_i32 = arith.constant 50 : i32
    %351 = arith.addi %0, %c50_i32 : i32
    %352 = arith.index_cast %351 : i32 to index
    %353 = memref.load %arg1[%352] : memref<112xi32, #tpu.memory_space<smem>>
    %c50_i32_200 = arith.constant 50 : i32
    %c0_i32_201 = arith.constant 0 : i32
    %354 = tpu.memref_slice %arg2[%353, %c0_i32_201] : memref<512x128xf32, #tpu.memory_space<any>> -> memref<1x128xf32, #tpu.memory_space<any>>
    %c50_i32_202 = arith.constant 50 : i32
    %c0_i32_203 = arith.constant 0 : i32
    %355 = tpu.memref_slice %arg4[%c50_i32_202, %c0_i32_203] : memref<56x128xf32, #tpu.memory_space<vmem>> -> memref<1x128xf32, #tpu.memory_space<vmem>>
    %356 = tpu.memref_slice %arg5[%c50_i32_200] : memref<56x!tpu.dma_semaphore, #tpu.memory_space<semaphore_mem>> -> memref<1x!tpu.dma_semaphore, #tpu.memory_space<semaphore_mem>>
    %357 = tpu.memref_squeeze %356 : memref<1x!tpu.dma_semaphore, #tpu.memory_space<semaphore_mem>> -> memref<!tpu.dma_semaphore, #tpu.memory_space<semaphore_mem>>
    tpu.enqueue_dma source(%354 : memref<1x128xf32, #tpu.memory_space<any>>) target(%355 : memref<1x128xf32, #tpu.memory_space<vmem>>) target_semaphore(%357 : memref<!tpu.dma_semaphore, #tpu.memory_space<semaphore_mem>>)
    %c51_i32 = arith.constant 51 : i32
    %358 = arith.addi %0, %c51_i32 : i32
    %359 = arith.index_cast %358 : i32 to index
    %360 = memref.load %arg1[%359] : memref<112xi32, #tpu.memory_space<smem>>
    %c51_i32_204 = arith.constant 51 : i32
    %c0_i32_205 = arith.constant 0 : i32
    %361 = tpu.memref_slice %arg2[%360, %c0_i32_205] : memref<512x128xf32, #tpu.memory_space<any>> -> memref<1x128xf32, #tpu.memory_space<any>>
    %c51_i32_206 = arith.constant 51 : i32
    %c0_i32_207 = arith.constant 0 : i32
    %362 = tpu.memref_slice %arg4[%c51_i32_206, %c0_i32_207] : memref<56x128xf32, #tpu.memory_space<vmem>> -> memref<1x128xf32, #tpu.memory_space<vmem>>
    %363 = tpu.memref_slice %arg5[%c51_i32_204] : memref<56x!tpu.dma_semaphore, #tpu.memory_space<semaphore_mem>> -> memref<1x!tpu.dma_semaphore, #tpu.memory_space<semaphore_mem>>
    %364 = tpu.memref_squeeze %363 : memref<1x!tpu.dma_semaphore, #tpu.memory_space<semaphore_mem>> -> memref<!tpu.dma_semaphore, #tpu.memory_space<semaphore_mem>>
    tpu.enqueue_dma source(%361 : memref<1x128xf32, #tpu.memory_space<any>>) target(%362 : memref<1x128xf32, #tpu.memory_space<vmem>>) target_semaphore(%364 : memref<!tpu.dma_semaphore, #tpu.memory_space<semaphore_mem>>)
    %c52_i32 = arith.constant 52 : i32
    %365 = arith.addi %0, %c52_i32 : i32
    %366 = arith.index_cast %365 : i32 to index
    %367 = memref.load %arg1[%366] : memref<112xi32, #tpu.memory_space<smem>>
    %c52_i32_208 = arith.constant 52 : i32
    %c0_i32_209 = arith.constant 0 : i32
    %368 = tpu.memref_slice %arg2[%367, %c0_i32_209] : memref<512x128xf32, #tpu.memory_space<any>> -> memref<1x128xf32, #tpu.memory_space<any>>
    %c52_i32_210 = arith.constant 52 : i32
    %c0_i32_211 = arith.constant 0 : i32
    %369 = tpu.memref_slice %arg4[%c52_i32_210, %c0_i32_211] : memref<56x128xf32, #tpu.memory_space<vmem>> -> memref<1x128xf32, #tpu.memory_space<vmem>>
    %370 = tpu.memref_slice %arg5[%c52_i32_208] : memref<56x!tpu.dma_semaphore, #tpu.memory_space<semaphore_mem>> -> memref<1x!tpu.dma_semaphore, #tpu.memory_space<semaphore_mem>>
    %371 = tpu.memref_squeeze %370 : memref<1x!tpu.dma_semaphore, #tpu.memory_space<semaphore_mem>> -> memref<!tpu.dma_semaphore, #tpu.memory_space<semaphore_mem>>
    tpu.enqueue_dma source(%368 : memref<1x128xf32, #tpu.memory_space<any>>) target(%369 : memref<1x128xf32, #tpu.memory_space<vmem>>) target_semaphore(%371 : memref<!tpu.dma_semaphore, #tpu.memory_space<semaphore_mem>>)
    %c53_i32 = arith.constant 53 : i32
    %372 = arith.addi %0, %c53_i32 : i32
    %373 = arith.index_cast %372 : i32 to index
    %374 = memref.load %arg1[%373] : memref<112xi32, #tpu.memory_space<smem>>
    %c53_i32_212 = arith.constant 53 : i32
    %c0_i32_213 = arith.constant 0 : i32
    %375 = tpu.memref_slice %arg2[%374, %c0_i32_213] : memref<512x128xf32, #tpu.memory_space<any>> -> memref<1x128xf32, #tpu.memory_space<any>>
    %c53_i32_214 = arith.constant 53 : i32
    %c0_i32_215 = arith.constant 0 : i32
    %376 = tpu.memref_slice %arg4[%c53_i32_214, %c0_i32_215] : memref<56x128xf32, #tpu.memory_space<vmem>> -> memref<1x128xf32, #tpu.memory_space<vmem>>
    %377 = tpu.memref_slice %arg5[%c53_i32_212] : memref<56x!tpu.dma_semaphore, #tpu.memory_space<semaphore_mem>> -> memref<1x!tpu.dma_semaphore, #tpu.memory_space<semaphore_mem>>
    %378 = tpu.memref_squeeze %377 : memref<1x!tpu.dma_semaphore, #tpu.memory_space<semaphore_mem>> -> memref<!tpu.dma_semaphore, #tpu.memory_space<semaphore_mem>>
    tpu.enqueue_dma source(%375 : memref<1x128xf32, #tpu.memory_space<any>>) target(%376 : memref<1x128xf32, #tpu.memory_space<vmem>>) target_semaphore(%378 : memref<!tpu.dma_semaphore, #tpu.memory_space<semaphore_mem>>)
    %c54_i32 = arith.constant 54 : i32
    %379 = arith.addi %0, %c54_i32 : i32
    %380 = arith.index_cast %379 : i32 to index
    %381 = memref.load %arg1[%380] : memref<112xi32, #tpu.memory_space<smem>>
    %c54_i32_216 = arith.constant 54 : i32
    %c0_i32_217 = arith.constant 0 : i32
    %382 = tpu.memref_slice %arg2[%381, %c0_i32_217] : memref<512x128xf32, #tpu.memory_space<any>> -> memref<1x128xf32, #tpu.memory_space<any>>
    %c54_i32_218 = arith.constant 54 : i32
    %c0_i32_219 = arith.constant 0 : i32
    %383 = tpu.memref_slice %arg4[%c54_i32_218, %c0_i32_219] : memref<56x128xf32, #tpu.memory_space<vmem>> -> memref<1x128xf32, #tpu.memory_space<vmem>>
    %384 = tpu.memref_slice %arg5[%c54_i32_216] : memref<56x!tpu.dma_semaphore, #tpu.memory_space<semaphore_mem>> -> memref<1x!tpu.dma_semaphore, #tpu.memory_space<semaphore_mem>>
    %385 = tpu.memref_squeeze %384 : memref<1x!tpu.dma_semaphore, #tpu.memory_space<semaphore_mem>> -> memref<!tpu.dma_semaphore, #tpu.memory_space<semaphore_mem>>
    tpu.enqueue_dma source(%382 : memref<1x128xf32, #tpu.memory_space<any>>) target(%383 : memref<1x128xf32, #tpu.memory_space<vmem>>) target_semaphore(%385 : memref<!tpu.dma_semaphore, #tpu.memory_space<semaphore_mem>>)
    %c55_i32 = arith.constant 55 : i32
    %386 = arith.addi %0, %c55_i32 : i32
    %387 = arith.index_cast %386 : i32 to index
    %388 = memref.load %arg1[%387] : memref<112xi32, #tpu.memory_space<smem>>
    %c55_i32_220 = arith.constant 55 : i32
    %c0_i32_221 = arith.constant 0 : i32
    %389 = tpu.memref_slice %arg2[%388, %c0_i32_221] : memref<512x128xf32, #tpu.memory_space<any>> -> memref<1x128xf32, #tpu.memory_space<any>>
    %c55_i32_222 = arith.constant 55 : i32
    %c0_i32_223 = arith.constant 0 : i32
    %390 = tpu.memref_slice %arg4[%c55_i32_222, %c0_i32_223] : memref<56x128xf32, #tpu.memory_space<vmem>> -> memref<1x128xf32, #tpu.memory_space<vmem>>
    %391 = tpu.memref_slice %arg5[%c55_i32_220] : memref<56x!tpu.dma_semaphore, #tpu.memory_space<semaphore_mem>> -> memref<1x!tpu.dma_semaphore, #tpu.memory_space<semaphore_mem>>
    %392 = tpu.memref_squeeze %391 : memref<1x!tpu.dma_semaphore, #tpu.memory_space<semaphore_mem>> -> memref<!tpu.dma_semaphore, #tpu.memory_space<semaphore_mem>>
    tpu.enqueue_dma source(%389 : memref<1x128xf32, #tpu.memory_space<any>>) target(%390 : memref<1x128xf32, #tpu.memory_space<vmem>>) target_semaphore(%392 : memref<!tpu.dma_semaphore, #tpu.memory_space<semaphore_mem>>)
    %c0_i32_224 = arith.constant 0 : i32
    %c0_i32_225 = arith.constant 0 : i32
    %c0_i32_226 = arith.constant 0 : i32
    %393 = tpu.memref_slice %arg2[%c0_i32_225, %c0_i32_226] : memref<512x128xf32, #tpu.memory_space<any>> -> memref<1x128xf32, #tpu.memory_space<any>>
    %c0_i32_227 = arith.constant 0 : i32
    %c0_i32_228 = arith.constant 0 : i32
    %394 = tpu.memref_slice %arg4[%c0_i32_227, %c0_i32_228] : memref<56x128xf32, #tpu.memory_space<vmem>> -> memref<1x128xf32, #tpu.memory_space<vmem>>
    %395 = tpu.memref_slice %arg5[%c0_i32_224] : memref<56x!tpu.dma_semaphore, #tpu.memory_space<semaphore_mem>> -> memref<1x!tpu.dma_semaphore, #tpu.memory_space<semaphore_mem>>
    %396 = tpu.memref_squeeze %395 : memref<1x!tpu.dma_semaphore, #tpu.memory_space<semaphore_mem>> -> memref<!tpu.dma_semaphore, #tpu.memory_space<semaphore_mem>>
    tpu.wait_dma2 semaphore(%396 : memref<!tpu.dma_semaphore, #tpu.memory_space<semaphore_mem>>) src(%393 : memref<1x128xf32, #tpu.memory_space<any>>) dst(%394 : memref<1x128xf32, #tpu.memory_space<vmem>>)
    %c1_i32_229 = arith.constant 1 : i32
    %c0_i32_230 = arith.constant 0 : i32
    %c0_i32_231 = arith.constant 0 : i32
    %397 = tpu.memref_slice %arg2[%c0_i32_230, %c0_i32_231] : memref<512x128xf32, #tpu.memory_space<any>> -> memref<1x128xf32, #tpu.memory_space<any>>
    %c1_i32_232 = arith.constant 1 : i32
    %c0_i32_233 = arith.constant 0 : i32
    %398 = tpu.memref_slice %arg4[%c1_i32_232, %c0_i32_233] : memref<56x128xf32, #tpu.memory_space<vmem>> -> memref<1x128xf32, #tpu.memory_space<vmem>>
    %399 = tpu.memref_slice %arg5[%c1_i32_229] : memref<56x!tpu.dma_semaphore, #tpu.memory_space<semaphore_mem>> -> memref<1x!tpu.dma_semaphore, #tpu.memory_space<semaphore_mem>>
    %400 = tpu.memref_squeeze %399 : memref<1x!tpu.dma_semaphore, #tpu.memory_space<semaphore_mem>> -> memref<!tpu.dma_semaphore, #tpu.memory_space<semaphore_mem>>
    tpu.wait_dma2 semaphore(%400 : memref<!tpu.dma_semaphore, #tpu.memory_space<semaphore_mem>>) src(%397 : memref<1x128xf32, #tpu.memory_space<any>>) dst(%398 : memref<1x128xf32, #tpu.memory_space<vmem>>)
    %c2_i32_234 = arith.constant 2 : i32
    %c0_i32_235 = arith.constant 0 : i32
    %c0_i32_236 = arith.constant 0 : i32
    %401 = tpu.memref_slice %arg2[%c0_i32_235, %c0_i32_236] : memref<512x128xf32, #tpu.memory_space<any>> -> memref<1x128xf32, #tpu.memory_space<any>>
    %c2_i32_237 = arith.constant 2 : i32
    %c0_i32_238 = arith.constant 0 : i32
    %402 = tpu.memref_slice %arg4[%c2_i32_237, %c0_i32_238] : memref<56x128xf32, #tpu.memory_space<vmem>> -> memref<1x128xf32, #tpu.memory_space<vmem>>
    %403 = tpu.memref_slice %arg5[%c2_i32_234] : memref<56x!tpu.dma_semaphore, #tpu.memory_space<semaphore_mem>> -> memref<1x!tpu.dma_semaphore, #tpu.memory_space<semaphore_mem>>
    %404 = tpu.memref_squeeze %403 : memref<1x!tpu.dma_semaphore, #tpu.memory_space<semaphore_mem>> -> memref<!tpu.dma_semaphore, #tpu.memory_space<semaphore_mem>>
    tpu.wait_dma2 semaphore(%404 : memref<!tpu.dma_semaphore, #tpu.memory_space<semaphore_mem>>) src(%401 : memref<1x128xf32, #tpu.memory_space<any>>) dst(%402 : memref<1x128xf32, #tpu.memory_space<vmem>>)
    %c3_i32_239 = arith.constant 3 : i32
    %c0_i32_240 = arith.constant 0 : i32
    %c0_i32_241 = arith.constant 0 : i32
    %405 = tpu.memref_slice %arg2[%c0_i32_240, %c0_i32_241] : memref<512x128xf32, #tpu.memory_space<any>> -> memref<1x128xf32, #tpu.memory_space<any>>
    %c3_i32_242 = arith.constant 3 : i32
    %c0_i32_243 = arith.constant 0 : i32
    %406 = tpu.memref_slice %arg4[%c3_i32_242, %c0_i32_243] : memref<56x128xf32, #tpu.memory_space<vmem>> -> memref<1x128xf32, #tpu.memory_space<vmem>>
    %407 = tpu.memref_slice %arg5[%c3_i32_239] : memref<56x!tpu.dma_semaphore, #tpu.memory_space<semaphore_mem>> -> memref<1x!tpu.dma_semaphore, #tpu.memory_space<semaphore_mem>>
    %408 = tpu.memref_squeeze %407 : memref<1x!tpu.dma_semaphore, #tpu.memory_space<semaphore_mem>> -> memref<!tpu.dma_semaphore, #tpu.memory_space<semaphore_mem>>
    tpu.wait_dma2 semaphore(%408 : memref<!tpu.dma_semaphore, #tpu.memory_space<semaphore_mem>>) src(%405 : memref<1x128xf32, #tpu.memory_space<any>>) dst(%406 : memref<1x128xf32, #tpu.memory_space<vmem>>)
    %c4_i32_244 = arith.constant 4 : i32
    %c0_i32_245 = arith.constant 0 : i32
    %c0_i32_246 = arith.constant 0 : i32
    %409 = tpu.memref_slice %arg2[%c0_i32_245, %c0_i32_246] : memref<512x128xf32, #tpu.memory_space<any>> -> memref<1x128xf32, #tpu.memory_space<any>>
    %c4_i32_247 = arith.constant 4 : i32
    %c0_i32_248 = arith.constant 0 : i32
    %410 = tpu.memref_slice %arg4[%c4_i32_247, %c0_i32_248] : memref<56x128xf32, #tpu.memory_space<vmem>> -> memref<1x128xf32, #tpu.memory_space<vmem>>
    %411 = tpu.memref_slice %arg5[%c4_i32_244] : memref<56x!tpu.dma_semaphore, #tpu.memory_space<semaphore_mem>> -> memref<1x!tpu.dma_semaphore, #tpu.memory_space<semaphore_mem>>
    %412 = tpu.memref_squeeze %411 : memref<1x!tpu.dma_semaphore, #tpu.memory_space<semaphore_mem>> -> memref<!tpu.dma_semaphore, #tpu.memory_space<semaphore_mem>>
    tpu.wait_dma2 semaphore(%412 : memref<!tpu.dma_semaphore, #tpu.memory_space<semaphore_mem>>) src(%409 : memref<1x128xf32, #tpu.memory_space<any>>) dst(%410 : memref<1x128xf32, #tpu.memory_space<vmem>>)
    %c5_i32_249 = arith.constant 5 : i32
    %c0_i32_250 = arith.constant 0 : i32
    %c0_i32_251 = arith.constant 0 : i32
    %413 = tpu.memref_slice %arg2[%c0_i32_250, %c0_i32_251] : memref<512x128xf32, #tpu.memory_space<any>> -> memref<1x128xf32, #tpu.memory_space<any>>
    %c5_i32_252 = arith.constant 5 : i32
    %c0_i32_253 = arith.constant 0 : i32
    %414 = tpu.memref_slice %arg4[%c5_i32_252, %c0_i32_253] : memref<56x128xf32, #tpu.memory_space<vmem>> -> memref<1x128xf32, #tpu.memory_space<vmem>>
    %415 = tpu.memref_slice %arg5[%c5_i32_249] : memref<56x!tpu.dma_semaphore, #tpu.memory_space<semaphore_mem>> -> memref<1x!tpu.dma_semaphore, #tpu.memory_space<semaphore_mem>>
    %416 = tpu.memref_squeeze %415 : memref<1x!tpu.dma_semaphore, #tpu.memory_space<semaphore_mem>> -> memref<!tpu.dma_semaphore, #tpu.memory_space<semaphore_mem>>
    tpu.wait_dma2 semaphore(%416 : memref<!tpu.dma_semaphore, #tpu.memory_space<semaphore_mem>>) src(%413 : memref<1x128xf32, #tpu.memory_space<any>>) dst(%414 : memref<1x128xf32, #tpu.memory_space<vmem>>)
    %c6_i32_254 = arith.constant 6 : i32
    %c0_i32_255 = arith.constant 0 : i32
    %c0_i32_256 = arith.constant 0 : i32
    %417 = tpu.memref_slice %arg2[%c0_i32_255, %c0_i32_256] : memref<512x128xf32, #tpu.memory_space<any>> -> memref<1x128xf32, #tpu.memory_space<any>>
    %c6_i32_257 = arith.constant 6 : i32
    %c0_i32_258 = arith.constant 0 : i32
    %418 = tpu.memref_slice %arg4[%c6_i32_257, %c0_i32_258] : memref<56x128xf32, #tpu.memory_space<vmem>> -> memref<1x128xf32, #tpu.memory_space<vmem>>
    %419 = tpu.memref_slice %arg5[%c6_i32_254] : memref<56x!tpu.dma_semaphore, #tpu.memory_space<semaphore_mem>> -> memref<1x!tpu.dma_semaphore, #tpu.memory_space<semaphore_mem>>
    %420 = tpu.memref_squeeze %419 : memref<1x!tpu.dma_semaphore, #tpu.memory_space<semaphore_mem>> -> memref<!tpu.dma_semaphore, #tpu.memory_space<semaphore_mem>>
    tpu.wait_dma2 semaphore(%420 : memref<!tpu.dma_semaphore, #tpu.memory_space<semaphore_mem>>) src(%417 : memref<1x128xf32, #tpu.memory_space<any>>) dst(%418 : memref<1x128xf32, #tpu.memory_space<vmem>>)
    %c7_i32_259 = arith.constant 7 : i32
    %c0_i32_260 = arith.constant 0 : i32
    %c0_i32_261 = arith.constant 0 : i32
    %421 = tpu.memref_slice %arg2[%c0_i32_260, %c0_i32_261] : memref<512x128xf32, #tpu.memory_space<any>> -> memref<1x128xf32, #tpu.memory_space<any>>
    %c7_i32_262 = arith.constant 7 : i32
    %c0_i32_263 = arith.constant 0 : i32
    %422 = tpu.memref_slice %arg4[%c7_i32_262, %c0_i32_263] : memref<56x128xf32, #tpu.memory_space<vmem>> -> memref<1x128xf32, #tpu.memory_space<vmem>>
    %423 = tpu.memref_slice %arg5[%c7_i32_259] : memref<56x!tpu.dma_semaphore, #tpu.memory_space<semaphore_mem>> -> memref<1x!tpu.dma_semaphore, #tpu.memory_space<semaphore_mem>>
    %424 = tpu.memref_squeeze %423 : memref<1x!tpu.dma_semaphore, #tpu.memory_space<semaphore_mem>> -> memref<!tpu.dma_semaphore, #tpu.memory_space<semaphore_mem>>
    tpu.wait_dma2 semaphore(%424 : memref<!tpu.dma_semaphore, #tpu.memory_space<semaphore_mem>>) src(%421 : memref<1x128xf32, #tpu.memory_space<any>>) dst(%422 : memref<1x128xf32, #tpu.memory_space<vmem>>)
    %c8_i32_264 = arith.constant 8 : i32
    %c0_i32_265 = arith.constant 0 : i32
    %c0_i32_266 = arith.constant 0 : i32
    %425 = tpu.memref_slice %arg2[%c0_i32_265, %c0_i32_266] : memref<512x128xf32, #tpu.memory_space<any>> -> memref<1x128xf32, #tpu.memory_space<any>>
    %c8_i32_267 = arith.constant 8 : i32
    %c0_i32_268 = arith.constant 0 : i32
    %426 = tpu.memref_slice %arg4[%c8_i32_267, %c0_i32_268] : memref<56x128xf32, #tpu.memory_space<vmem>> -> memref<1x128xf32, #tpu.memory_space<vmem>>
    %427 = tpu.memref_slice %arg5[%c8_i32_264] : memref<56x!tpu.dma_semaphore, #tpu.memory_space<semaphore_mem>> -> memref<1x!tpu.dma_semaphore, #tpu.memory_space<semaphore_mem>>
    %428 = tpu.memref_squeeze %427 : memref<1x!tpu.dma_semaphore, #tpu.memory_space<semaphore_mem>> -> memref<!tpu.dma_semaphore, #tpu.memory_space<semaphore_mem>>
    tpu.wait_dma2 semaphore(%428 : memref<!tpu.dma_semaphore, #tpu.memory_space<semaphore_mem>>) src(%425 : memref<1x128xf32, #tpu.memory_space<any>>) dst(%426 : memref<1x128xf32, #tpu.memory_space<vmem>>)
    %c9_i32_269 = arith.constant 9 : i32
    %c0_i32_270 = arith.constant 0 : i32
    %c0_i32_271 = arith.constant 0 : i32
    %429 = tpu.memref_slice %arg2[%c0_i32_270, %c0_i32_271] : memref<512x128xf32, #tpu.memory_space<any>> -> memref<1x128xf32, #tpu.memory_space<any>>
    %c9_i32_272 = arith.constant 9 : i32
    %c0_i32_273 = arith.constant 0 : i32
    %430 = tpu.memref_slice %arg4[%c9_i32_272, %c0_i32_273] : memref<56x128xf32, #tpu.memory_space<vmem>> -> memref<1x128xf32, #tpu.memory_space<vmem>>
    %431 = tpu.memref_slice %arg5[%c9_i32_269] : memref<56x!tpu.dma_semaphore, #tpu.memory_space<semaphore_mem>> -> memref<1x!tpu.dma_semaphore, #tpu.memory_space<semaphore_mem>>
    %432 = tpu.memref_squeeze %431 : memref<1x!tpu.dma_semaphore, #tpu.memory_space<semaphore_mem>> -> memref<!tpu.dma_semaphore, #tpu.memory_space<semaphore_mem>>
    tpu.wait_dma2 semaphore(%432 : memref<!tpu.dma_semaphore, #tpu.memory_space<semaphore_mem>>) src(%429 : memref<1x128xf32, #tpu.memory_space<any>>) dst(%430 : memref<1x128xf32, #tpu.memory_space<vmem>>)
    %c10_i32_274 = arith.constant 10 : i32
    %c0_i32_275 = arith.constant 0 : i32
    %c0_i32_276 = arith.constant 0 : i32
    %433 = tpu.memref_slice %arg2[%c0_i32_275, %c0_i32_276] : memref<512x128xf32, #tpu.memory_space<any>> -> memref<1x128xf32, #tpu.memory_space<any>>
    %c10_i32_277 = arith.constant 10 : i32
    %c0_i32_278 = arith.constant 0 : i32
    %434 = tpu.memref_slice %arg4[%c10_i32_277, %c0_i32_278] : memref<56x128xf32, #tpu.memory_space<vmem>> -> memref<1x128xf32, #tpu.memory_space<vmem>>
    %435 = tpu.memref_slice %arg5[%c10_i32_274] : memref<56x!tpu.dma_semaphore, #tpu.memory_space<semaphore_mem>> -> memref<1x!tpu.dma_semaphore, #tpu.memory_space<semaphore_mem>>
    %436 = tpu.memref_squeeze %435 : memref<1x!tpu.dma_semaphore, #tpu.memory_space<semaphore_mem>> -> memref<!tpu.dma_semaphore, #tpu.memory_space<semaphore_mem>>
    tpu.wait_dma2 semaphore(%436 : memref<!tpu.dma_semaphore, #tpu.memory_space<semaphore_mem>>) src(%433 : memref<1x128xf32, #tpu.memory_space<any>>) dst(%434 : memref<1x128xf32, #tpu.memory_space<vmem>>)
    %c11_i32_279 = arith.constant 11 : i32
    %c0_i32_280 = arith.constant 0 : i32
    %c0_i32_281 = arith.constant 0 : i32
    %437 = tpu.memref_slice %arg2[%c0_i32_280, %c0_i32_281] : memref<512x128xf32, #tpu.memory_space<any>> -> memref<1x128xf32, #tpu.memory_space<any>>
    %c11_i32_282 = arith.constant 11 : i32
    %c0_i32_283 = arith.constant 0 : i32
    %438 = tpu.memref_slice %arg4[%c11_i32_282, %c0_i32_283] : memref<56x128xf32, #tpu.memory_space<vmem>> -> memref<1x128xf32, #tpu.memory_space<vmem>>
    %439 = tpu.memref_slice %arg5[%c11_i32_279] : memref<56x!tpu.dma_semaphore, #tpu.memory_space<semaphore_mem>> -> memref<1x!tpu.dma_semaphore, #tpu.memory_space<semaphore_mem>>
    %440 = tpu.memref_squeeze %439 : memref<1x!tpu.dma_semaphore, #tpu.memory_space<semaphore_mem>> -> memref<!tpu.dma_semaphore, #tpu.memory_space<semaphore_mem>>
    tpu.wait_dma2 semaphore(%440 : memref<!tpu.dma_semaphore, #tpu.memory_space<semaphore_mem>>) src(%437 : memref<1x128xf32, #tpu.memory_space<any>>) dst(%438 : memref<1x128xf32, #tpu.memory_space<vmem>>)
    %c12_i32_284 = arith.constant 12 : i32
    %c0_i32_285 = arith.constant 0 : i32
    %c0_i32_286 = arith.constant 0 : i32
    %441 = tpu.memref_slice %arg2[%c0_i32_285, %c0_i32_286] : memref<512x128xf32, #tpu.memory_space<any>> -> memref<1x128xf32, #tpu.memory_space<any>>
    %c12_i32_287 = arith.constant 12 : i32
    %c0_i32_288 = arith.constant 0 : i32
    %442 = tpu.memref_slice %arg4[%c12_i32_287, %c0_i32_288] : memref<56x128xf32, #tpu.memory_space<vmem>> -> memref<1x128xf32, #tpu.memory_space<vmem>>
    %443 = tpu.memref_slice %arg5[%c12_i32_284] : memref<56x!tpu.dma_semaphore, #tpu.memory_space<semaphore_mem>> -> memref<1x!tpu.dma_semaphore, #tpu.memory_space<semaphore_mem>>
    %444 = tpu.memref_squeeze %443 : memref<1x!tpu.dma_semaphore, #tpu.memory_space<semaphore_mem>> -> memref<!tpu.dma_semaphore, #tpu.memory_space<semaphore_mem>>
    tpu.wait_dma2 semaphore(%444 : memref<!tpu.dma_semaphore, #tpu.memory_space<semaphore_mem>>) src(%441 : memref<1x128xf32, #tpu.memory_space<any>>) dst(%442 : memref<1x128xf32, #tpu.memory_space<vmem>>)
    %c13_i32_289 = arith.constant 13 : i32
    %c0_i32_290 = arith.constant 0 : i32
    %c0_i32_291 = arith.constant 0 : i32
    %445 = tpu.memref_slice %arg2[%c0_i32_290, %c0_i32_291] : memref<512x128xf32, #tpu.memory_space<any>> -> memref<1x128xf32, #tpu.memory_space<any>>
    %c13_i32_292 = arith.constant 13 : i32
    %c0_i32_293 = arith.constant 0 : i32
    %446 = tpu.memref_slice %arg4[%c13_i32_292, %c0_i32_293] : memref<56x128xf32, #tpu.memory_space<vmem>> -> memref<1x128xf32, #tpu.memory_space<vmem>>
    %447 = tpu.memref_slice %arg5[%c13_i32_289] : memref<56x!tpu.dma_semaphore, #tpu.memory_space<semaphore_mem>> -> memref<1x!tpu.dma_semaphore, #tpu.memory_space<semaphore_mem>>
    %448 = tpu.memref_squeeze %447 : memref<1x!tpu.dma_semaphore, #tpu.memory_space<semaphore_mem>> -> memref<!tpu.dma_semaphore, #tpu.memory_space<semaphore_mem>>
    tpu.wait_dma2 semaphore(%448 : memref<!tpu.dma_semaphore, #tpu.memory_space<semaphore_mem>>) src(%445 : memref<1x128xf32, #tpu.memory_space<any>>) dst(%446 : memref<1x128xf32, #tpu.memory_space<vmem>>)
    %c14_i32_294 = arith.constant 14 : i32
    %c0_i32_295 = arith.constant 0 : i32
    %c0_i32_296 = arith.constant 0 : i32
    %449 = tpu.memref_slice %arg2[%c0_i32_295, %c0_i32_296] : memref<512x128xf32, #tpu.memory_space<any>> -> memref<1x128xf32, #tpu.memory_space<any>>
    %c14_i32_297 = arith.constant 14 : i32
    %c0_i32_298 = arith.constant 0 : i32
    %450 = tpu.memref_slice %arg4[%c14_i32_297, %c0_i32_298] : memref<56x128xf32, #tpu.memory_space<vmem>> -> memref<1x128xf32, #tpu.memory_space<vmem>>
    %451 = tpu.memref_slice %arg5[%c14_i32_294] : memref<56x!tpu.dma_semaphore, #tpu.memory_space<semaphore_mem>> -> memref<1x!tpu.dma_semaphore, #tpu.memory_space<semaphore_mem>>
    %452 = tpu.memref_squeeze %451 : memref<1x!tpu.dma_semaphore, #tpu.memory_space<semaphore_mem>> -> memref<!tpu.dma_semaphore, #tpu.memory_space<semaphore_mem>>
    tpu.wait_dma2 semaphore(%452 : memref<!tpu.dma_semaphore, #tpu.memory_space<semaphore_mem>>) src(%449 : memref<1x128xf32, #tpu.memory_space<any>>) dst(%450 : memref<1x128xf32, #tpu.memory_space<vmem>>)
    %c15_i32_299 = arith.constant 15 : i32
    %c0_i32_300 = arith.constant 0 : i32
    %c0_i32_301 = arith.constant 0 : i32
    %453 = tpu.memref_slice %arg2[%c0_i32_300, %c0_i32_301] : memref<512x128xf32, #tpu.memory_space<any>> -> memref<1x128xf32, #tpu.memory_space<any>>
    %c15_i32_302 = arith.constant 15 : i32
    %c0_i32_303 = arith.constant 0 : i32
    %454 = tpu.memref_slice %arg4[%c15_i32_302, %c0_i32_303] : memref<56x128xf32, #tpu.memory_space<vmem>> -> memref<1x128xf32, #tpu.memory_space<vmem>>
    %455 = tpu.memref_slice %arg5[%c15_i32_299] : memref<56x!tpu.dma_semaphore, #tpu.memory_space<semaphore_mem>> -> memref<1x!tpu.dma_semaphore, #tpu.memory_space<semaphore_mem>>
    %456 = tpu.memref_squeeze %455 : memref<1x!tpu.dma_semaphore, #tpu.memory_space<semaphore_mem>> -> memref<!tpu.dma_semaphore, #tpu.memory_space<semaphore_mem>>
    tpu.wait_dma2 semaphore(%456 : memref<!tpu.dma_semaphore, #tpu.memory_space<semaphore_mem>>) src(%453 : memref<1x128xf32, #tpu.memory_space<any>>) dst(%454 : memref<1x128xf32, #tpu.memory_space<vmem>>)
    %c16_i32_304 = arith.constant 16 : i32
    %c0_i32_305 = arith.constant 0 : i32
    %c0_i32_306 = arith.constant 0 : i32
    %457 = tpu.memref_slice %arg2[%c0_i32_305, %c0_i32_306] : memref<512x128xf32, #tpu.memory_space<any>> -> memref<1x128xf32, #tpu.memory_space<any>>
    %c16_i32_307 = arith.constant 16 : i32
    %c0_i32_308 = arith.constant 0 : i32
    %458 = tpu.memref_slice %arg4[%c16_i32_307, %c0_i32_308] : memref<56x128xf32, #tpu.memory_space<vmem>> -> memref<1x128xf32, #tpu.memory_space<vmem>>
    %459 = tpu.memref_slice %arg5[%c16_i32_304] : memref<56x!tpu.dma_semaphore, #tpu.memory_space<semaphore_mem>> -> memref<1x!tpu.dma_semaphore, #tpu.memory_space<semaphore_mem>>
    %460 = tpu.memref_squeeze %459 : memref<1x!tpu.dma_semaphore, #tpu.memory_space<semaphore_mem>> -> memref<!tpu.dma_semaphore, #tpu.memory_space<semaphore_mem>>
    tpu.wait_dma2 semaphore(%460 : memref<!tpu.dma_semaphore, #tpu.memory_space<semaphore_mem>>) src(%457 : memref<1x128xf32, #tpu.memory_space<any>>) dst(%458 : memref<1x128xf32, #tpu.memory_space<vmem>>)
    %c17_i32_309 = arith.constant 17 : i32
    %c0_i32_310 = arith.constant 0 : i32
    %c0_i32_311 = arith.constant 0 : i32
    %461 = tpu.memref_slice %arg2[%c0_i32_310, %c0_i32_311] : memref<512x128xf32, #tpu.memory_space<any>> -> memref<1x128xf32, #tpu.memory_space<any>>
    %c17_i32_312 = arith.constant 17 : i32
    %c0_i32_313 = arith.constant 0 : i32
    %462 = tpu.memref_slice %arg4[%c17_i32_312, %c0_i32_313] : memref<56x128xf32, #tpu.memory_space<vmem>> -> memref<1x128xf32, #tpu.memory_space<vmem>>
    %463 = tpu.memref_slice %arg5[%c17_i32_309] : memref<56x!tpu.dma_semaphore, #tpu.memory_space<semaphore_mem>> -> memref<1x!tpu.dma_semaphore, #tpu.memory_space<semaphore_mem>>
    %464 = tpu.memref_squeeze %463 : memref<1x!tpu.dma_semaphore, #tpu.memory_space<semaphore_mem>> -> memref<!tpu.dma_semaphore, #tpu.memory_space<semaphore_mem>>
    tpu.wait_dma2 semaphore(%464 : memref<!tpu.dma_semaphore, #tpu.memory_space<semaphore_mem>>) src(%461 : memref<1x128xf32, #tpu.memory_space<any>>) dst(%462 : memref<1x128xf32, #tpu.memory_space<vmem>>)
    %c18_i32_314 = arith.constant 18 : i32
    %c0_i32_315 = arith.constant 0 : i32
    %c0_i32_316 = arith.constant 0 : i32
    %465 = tpu.memref_slice %arg2[%c0_i32_315, %c0_i32_316] : memref<512x128xf32, #tpu.memory_space<any>> -> memref<1x128xf32, #tpu.memory_space<any>>
    %c18_i32_317 = arith.constant 18 : i32
    %c0_i32_318 = arith.constant 0 : i32
    %466 = tpu.memref_slice %arg4[%c18_i32_317, %c0_i32_318] : memref<56x128xf32, #tpu.memory_space<vmem>> -> memref<1x128xf32, #tpu.memory_space<vmem>>
    %467 = tpu.memref_slice %arg5[%c18_i32_314] : memref<56x!tpu.dma_semaphore, #tpu.memory_space<semaphore_mem>> -> memref<1x!tpu.dma_semaphore, #tpu.memory_space<semaphore_mem>>
    %468 = tpu.memref_squeeze %467 : memref<1x!tpu.dma_semaphore, #tpu.memory_space<semaphore_mem>> -> memref<!tpu.dma_semaphore, #tpu.memory_space<semaphore_mem>>
    tpu.wait_dma2 semaphore(%468 : memref<!tpu.dma_semaphore, #tpu.memory_space<semaphore_mem>>) src(%465 : memref<1x128xf32, #tpu.memory_space<any>>) dst(%466 : memref<1x128xf32, #tpu.memory_space<vmem>>)
    %c19_i32_319 = arith.constant 19 : i32
    %c0_i32_320 = arith.constant 0 : i32
    %c0_i32_321 = arith.constant 0 : i32
    %469 = tpu.memref_slice %arg2[%c0_i32_320, %c0_i32_321] : memref<512x128xf32, #tpu.memory_space<any>> -> memref<1x128xf32, #tpu.memory_space<any>>
    %c19_i32_322 = arith.constant 19 : i32
    %c0_i32_323 = arith.constant 0 : i32
    %470 = tpu.memref_slice %arg4[%c19_i32_322, %c0_i32_323] : memref<56x128xf32, #tpu.memory_space<vmem>> -> memref<1x128xf32, #tpu.memory_space<vmem>>
    %471 = tpu.memref_slice %arg5[%c19_i32_319] : memref<56x!tpu.dma_semaphore, #tpu.memory_space<semaphore_mem>> -> memref<1x!tpu.dma_semaphore, #tpu.memory_space<semaphore_mem>>
    %472 = tpu.memref_squeeze %471 : memref<1x!tpu.dma_semaphore, #tpu.memory_space<semaphore_mem>> -> memref<!tpu.dma_semaphore, #tpu.memory_space<semaphore_mem>>
    tpu.wait_dma2 semaphore(%472 : memref<!tpu.dma_semaphore, #tpu.memory_space<semaphore_mem>>) src(%469 : memref<1x128xf32, #tpu.memory_space<any>>) dst(%470 : memref<1x128xf32, #tpu.memory_space<vmem>>)
    %c20_i32_324 = arith.constant 20 : i32
    %c0_i32_325 = arith.constant 0 : i32
    %c0_i32_326 = arith.constant 0 : i32
    %473 = tpu.memref_slice %arg2[%c0_i32_325, %c0_i32_326] : memref<512x128xf32, #tpu.memory_space<any>> -> memref<1x128xf32, #tpu.memory_space<any>>
    %c20_i32_327 = arith.constant 20 : i32
    %c0_i32_328 = arith.constant 0 : i32
    %474 = tpu.memref_slice %arg4[%c20_i32_327, %c0_i32_328] : memref<56x128xf32, #tpu.memory_space<vmem>> -> memref<1x128xf32, #tpu.memory_space<vmem>>
    %475 = tpu.memref_slice %arg5[%c20_i32_324] : memref<56x!tpu.dma_semaphore, #tpu.memory_space<semaphore_mem>> -> memref<1x!tpu.dma_semaphore, #tpu.memory_space<semaphore_mem>>
    %476 = tpu.memref_squeeze %475 : memref<1x!tpu.dma_semaphore, #tpu.memory_space<semaphore_mem>> -> memref<!tpu.dma_semaphore, #tpu.memory_space<semaphore_mem>>
    tpu.wait_dma2 semaphore(%476 : memref<!tpu.dma_semaphore, #tpu.memory_space<semaphore_mem>>) src(%473 : memref<1x128xf32, #tpu.memory_space<any>>) dst(%474 : memref<1x128xf32, #tpu.memory_space<vmem>>)
    %c21_i32_329 = arith.constant 21 : i32
    %c0_i32_330 = arith.constant 0 : i32
    %c0_i32_331 = arith.constant 0 : i32
    %477 = tpu.memref_slice %arg2[%c0_i32_330, %c0_i32_331] : memref<512x128xf32, #tpu.memory_space<any>> -> memref<1x128xf32, #tpu.memory_space<any>>
    %c21_i32_332 = arith.constant 21 : i32
    %c0_i32_333 = arith.constant 0 : i32
    %478 = tpu.memref_slice %arg4[%c21_i32_332, %c0_i32_333] : memref<56x128xf32, #tpu.memory_space<vmem>> -> memref<1x128xf32, #tpu.memory_space<vmem>>
    %479 = tpu.memref_slice %arg5[%c21_i32_329] : memref<56x!tpu.dma_semaphore, #tpu.memory_space<semaphore_mem>> -> memref<1x!tpu.dma_semaphore, #tpu.memory_space<semaphore_mem>>
    %480 = tpu.memref_squeeze %479 : memref<1x!tpu.dma_semaphore, #tpu.memory_space<semaphore_mem>> -> memref<!tpu.dma_semaphore, #tpu.memory_space<semaphore_mem>>
    tpu.wait_dma2 semaphore(%480 : memref<!tpu.dma_semaphore, #tpu.memory_space<semaphore_mem>>) src(%477 : memref<1x128xf32, #tpu.memory_space<any>>) dst(%478 : memref<1x128xf32, #tpu.memory_space<vmem>>)
    %c22_i32_334 = arith.constant 22 : i32
    %c0_i32_335 = arith.constant 0 : i32
    %c0_i32_336 = arith.constant 0 : i32
    %481 = tpu.memref_slice %arg2[%c0_i32_335, %c0_i32_336] : memref<512x128xf32, #tpu.memory_space<any>> -> memref<1x128xf32, #tpu.memory_space<any>>
    %c22_i32_337 = arith.constant 22 : i32
    %c0_i32_338 = arith.constant 0 : i32
    %482 = tpu.memref_slice %arg4[%c22_i32_337, %c0_i32_338] : memref<56x128xf32, #tpu.memory_space<vmem>> -> memref<1x128xf32, #tpu.memory_space<vmem>>
    %483 = tpu.memref_slice %arg5[%c22_i32_334] : memref<56x!tpu.dma_semaphore, #tpu.memory_space<semaphore_mem>> -> memref<1x!tpu.dma_semaphore, #tpu.memory_space<semaphore_mem>>
    %484 = tpu.memref_squeeze %483 : memref<1x!tpu.dma_semaphore, #tpu.memory_space<semaphore_mem>> -> memref<!tpu.dma_semaphore, #tpu.memory_space<semaphore_mem>>
    tpu.wait_dma2 semaphore(%484 : memref<!tpu.dma_semaphore, #tpu.memory_space<semaphore_mem>>) src(%481 : memref<1x128xf32, #tpu.memory_space<any>>) dst(%482 : memref<1x128xf32, #tpu.memory_space<vmem>>)
    %c23_i32_339 = arith.constant 23 : i32
    %c0_i32_340 = arith.constant 0 : i32
    %c0_i32_341 = arith.constant 0 : i32
    %485 = tpu.memref_slice %arg2[%c0_i32_340, %c0_i32_341] : memref<512x128xf32, #tpu.memory_space<any>> -> memref<1x128xf32, #tpu.memory_space<any>>
    %c23_i32_342 = arith.constant 23 : i32
    %c0_i32_343 = arith.constant 0 : i32
    %486 = tpu.memref_slice %arg4[%c23_i32_342, %c0_i32_343] : memref<56x128xf32, #tpu.memory_space<vmem>> -> memref<1x128xf32, #tpu.memory_space<vmem>>
    %487 = tpu.memref_slice %arg5[%c23_i32_339] : memref<56x!tpu.dma_semaphore, #tpu.memory_space<semaphore_mem>> -> memref<1x!tpu.dma_semaphore, #tpu.memory_space<semaphore_mem>>
    %488 = tpu.memref_squeeze %487 : memref<1x!tpu.dma_semaphore, #tpu.memory_space<semaphore_mem>> -> memref<!tpu.dma_semaphore, #tpu.memory_space<semaphore_mem>>
    tpu.wait_dma2 semaphore(%488 : memref<!tpu.dma_semaphore, #tpu.memory_space<semaphore_mem>>) src(%485 : memref<1x128xf32, #tpu.memory_space<any>>) dst(%486 : memref<1x128xf32, #tpu.memory_space<vmem>>)
    %c24_i32_344 = arith.constant 24 : i32
    %c0_i32_345 = arith.constant 0 : i32
    %c0_i32_346 = arith.constant 0 : i32
    %489 = tpu.memref_slice %arg2[%c0_i32_345, %c0_i32_346] : memref<512x128xf32, #tpu.memory_space<any>> -> memref<1x128xf32, #tpu.memory_space<any>>
    %c24_i32_347 = arith.constant 24 : i32
    %c0_i32_348 = arith.constant 0 : i32
    %490 = tpu.memref_slice %arg4[%c24_i32_347, %c0_i32_348] : memref<56x128xf32, #tpu.memory_space<vmem>> -> memref<1x128xf32, #tpu.memory_space<vmem>>
    %491 = tpu.memref_slice %arg5[%c24_i32_344] : memref<56x!tpu.dma_semaphore, #tpu.memory_space<semaphore_mem>> -> memref<1x!tpu.dma_semaphore, #tpu.memory_space<semaphore_mem>>
    %492 = tpu.memref_squeeze %491 : memref<1x!tpu.dma_semaphore, #tpu.memory_space<semaphore_mem>> -> memref<!tpu.dma_semaphore, #tpu.memory_space<semaphore_mem>>
    tpu.wait_dma2 semaphore(%492 : memref<!tpu.dma_semaphore, #tpu.memory_space<semaphore_mem>>) src(%489 : memref<1x128xf32, #tpu.memory_space<any>>) dst(%490 : memref<1x128xf32, #tpu.memory_space<vmem>>)
    %c25_i32_349 = arith.constant 25 : i32
    %c0_i32_350 = arith.constant 0 : i32
    %c0_i32_351 = arith.constant 0 : i32
    %493 = tpu.memref_slice %arg2[%c0_i32_350, %c0_i32_351] : memref<512x128xf32, #tpu.memory_space<any>> -> memref<1x128xf32, #tpu.memory_space<any>>
    %c25_i32_352 = arith.constant 25 : i32
    %c0_i32_353 = arith.constant 0 : i32
    %494 = tpu.memref_slice %arg4[%c25_i32_352, %c0_i32_353] : memref<56x128xf32, #tpu.memory_space<vmem>> -> memref<1x128xf32, #tpu.memory_space<vmem>>
    %495 = tpu.memref_slice %arg5[%c25_i32_349] : memref<56x!tpu.dma_semaphore, #tpu.memory_space<semaphore_mem>> -> memref<1x!tpu.dma_semaphore, #tpu.memory_space<semaphore_mem>>
    %496 = tpu.memref_squeeze %495 : memref<1x!tpu.dma_semaphore, #tpu.memory_space<semaphore_mem>> -> memref<!tpu.dma_semaphore, #tpu.memory_space<semaphore_mem>>
    tpu.wait_dma2 semaphore(%496 : memref<!tpu.dma_semaphore, #tpu.memory_space<semaphore_mem>>) src(%493 : memref<1x128xf32, #tpu.memory_space<any>>) dst(%494 : memref<1x128xf32, #tpu.memory_space<vmem>>)
    %c26_i32_354 = arith.constant 26 : i32
    %c0_i32_355 = arith.constant 0 : i32
    %c0_i32_356 = arith.constant 0 : i32
    %497 = tpu.memref_slice %arg2[%c0_i32_355, %c0_i32_356] : memref<512x128xf32, #tpu.memory_space<any>> -> memref<1x128xf32, #tpu.memory_space<any>>
    %c26_i32_357 = arith.constant 26 : i32
    %c0_i32_358 = arith.constant 0 : i32
    %498 = tpu.memref_slice %arg4[%c26_i32_357, %c0_i32_358] : memref<56x128xf32, #tpu.memory_space<vmem>> -> memref<1x128xf32, #tpu.memory_space<vmem>>
    %499 = tpu.memref_slice %arg5[%c26_i32_354] : memref<56x!tpu.dma_semaphore, #tpu.memory_space<semaphore_mem>> -> memref<1x!tpu.dma_semaphore, #tpu.memory_space<semaphore_mem>>
    %500 = tpu.memref_squeeze %499 : memref<1x!tpu.dma_semaphore, #tpu.memory_space<semaphore_mem>> -> memref<!tpu.dma_semaphore, #tpu.memory_space<semaphore_mem>>
    tpu.wait_dma2 semaphore(%500 : memref<!tpu.dma_semaphore, #tpu.memory_space<semaphore_mem>>) src(%497 : memref<1x128xf32, #tpu.memory_space<any>>) dst(%498 : memref<1x128xf32, #tpu.memory_space<vmem>>)
    %c27_i32_359 = arith.constant 27 : i32
    %c0_i32_360 = arith.constant 0 : i32
    %c0_i32_361 = arith.constant 0 : i32
    %501 = tpu.memref_slice %arg2[%c0_i32_360, %c0_i32_361] : memref<512x128xf32, #tpu.memory_space<any>> -> memref<1x128xf32, #tpu.memory_space<any>>
    %c27_i32_362 = arith.constant 27 : i32
    %c0_i32_363 = arith.constant 0 : i32
    %502 = tpu.memref_slice %arg4[%c27_i32_362, %c0_i32_363] : memref<56x128xf32, #tpu.memory_space<vmem>> -> memref<1x128xf32, #tpu.memory_space<vmem>>
    %503 = tpu.memref_slice %arg5[%c27_i32_359] : memref<56x!tpu.dma_semaphore, #tpu.memory_space<semaphore_mem>> -> memref<1x!tpu.dma_semaphore, #tpu.memory_space<semaphore_mem>>
    %504 = tpu.memref_squeeze %503 : memref<1x!tpu.dma_semaphore, #tpu.memory_space<semaphore_mem>> -> memref<!tpu.dma_semaphore, #tpu.memory_space<semaphore_mem>>
    tpu.wait_dma2 semaphore(%504 : memref<!tpu.dma_semaphore, #tpu.memory_space<semaphore_mem>>) src(%501 : memref<1x128xf32, #tpu.memory_space<any>>) dst(%502 : memref<1x128xf32, #tpu.memory_space<vmem>>)
    %c28_i32_364 = arith.constant 28 : i32
    %c0_i32_365 = arith.constant 0 : i32
    %c0_i32_366 = arith.constant 0 : i32
    %505 = tpu.memref_slice %arg2[%c0_i32_365, %c0_i32_366] : memref<512x128xf32, #tpu.memory_space<any>> -> memref<1x128xf32, #tpu.memory_space<any>>
    %c28_i32_367 = arith.constant 28 : i32
    %c0_i32_368 = arith.constant 0 : i32
    %506 = tpu.memref_slice %arg4[%c28_i32_367, %c0_i32_368] : memref<56x128xf32, #tpu.memory_space<vmem>> -> memref<1x128xf32, #tpu.memory_space<vmem>>
    %507 = tpu.memref_slice %arg5[%c28_i32_364] : memref<56x!tpu.dma_semaphore, #tpu.memory_space<semaphore_mem>> -> memref<1x!tpu.dma_semaphore, #tpu.memory_space<semaphore_mem>>
    %508 = tpu.memref_squeeze %507 : memref<1x!tpu.dma_semaphore, #tpu.memory_space<semaphore_mem>> -> memref<!tpu.dma_semaphore, #tpu.memory_space<semaphore_mem>>
    tpu.wait_dma2 semaphore(%508 : memref<!tpu.dma_semaphore, #tpu.memory_space<semaphore_mem>>) src(%505 : memref<1x128xf32, #tpu.memory_space<any>>) dst(%506 : memref<1x128xf32, #tpu.memory_space<vmem>>)
    %c29_i32_369 = arith.constant 29 : i32
    %c0_i32_370 = arith.constant 0 : i32
    %c0_i32_371 = arith.constant 0 : i32
    %509 = tpu.memref_slice %arg2[%c0_i32_370, %c0_i32_371] : memref<512x128xf32, #tpu.memory_space<any>> -> memref<1x128xf32, #tpu.memory_space<any>>
    %c29_i32_372 = arith.constant 29 : i32
    %c0_i32_373 = arith.constant 0 : i32
    %510 = tpu.memref_slice %arg4[%c29_i32_372, %c0_i32_373] : memref<56x128xf32, #tpu.memory_space<vmem>> -> memref<1x128xf32, #tpu.memory_space<vmem>>
    %511 = tpu.memref_slice %arg5[%c29_i32_369] : memref<56x!tpu.dma_semaphore, #tpu.memory_space<semaphore_mem>> -> memref<1x!tpu.dma_semaphore, #tpu.memory_space<semaphore_mem>>
    %512 = tpu.memref_squeeze %511 : memref<1x!tpu.dma_semaphore, #tpu.memory_space<semaphore_mem>> -> memref<!tpu.dma_semaphore, #tpu.memory_space<semaphore_mem>>
    tpu.wait_dma2 semaphore(%512 : memref<!tpu.dma_semaphore, #tpu.memory_space<semaphore_mem>>) src(%509 : memref<1x128xf32, #tpu.memory_space<any>>) dst(%510 : memref<1x128xf32, #tpu.memory_space<vmem>>)
    %c30_i32_374 = arith.constant 30 : i32
    %c0_i32_375 = arith.constant 0 : i32
    %c0_i32_376 = arith.constant 0 : i32
    %513 = tpu.memref_slice %arg2[%c0_i32_375, %c0_i32_376] : memref<512x128xf32, #tpu.memory_space<any>> -> memref<1x128xf32, #tpu.memory_space<any>>
    %c30_i32_377 = arith.constant 30 : i32
    %c0_i32_378 = arith.constant 0 : i32
    %514 = tpu.memref_slice %arg4[%c30_i32_377, %c0_i32_378] : memref<56x128xf32, #tpu.memory_space<vmem>> -> memref<1x128xf32, #tpu.memory_space<vmem>>
    %515 = tpu.memref_slice %arg5[%c30_i32_374] : memref<56x!tpu.dma_semaphore, #tpu.memory_space<semaphore_mem>> -> memref<1x!tpu.dma_semaphore, #tpu.memory_space<semaphore_mem>>
    %516 = tpu.memref_squeeze %515 : memref<1x!tpu.dma_semaphore, #tpu.memory_space<semaphore_mem>> -> memref<!tpu.dma_semaphore, #tpu.memory_space<semaphore_mem>>
    tpu.wait_dma2 semaphore(%516 : memref<!tpu.dma_semaphore, #tpu.memory_space<semaphore_mem>>) src(%513 : memref<1x128xf32, #tpu.memory_space<any>>) dst(%514 : memref<1x128xf32, #tpu.memory_space<vmem>>)
    %c31_i32_379 = arith.constant 31 : i32
    %c0_i32_380 = arith.constant 0 : i32
    %c0_i32_381 = arith.constant 0 : i32
    %517 = tpu.memref_slice %arg2[%c0_i32_380, %c0_i32_381] : memref<512x128xf32, #tpu.memory_space<any>> -> memref<1x128xf32, #tpu.memory_space<any>>
    %c31_i32_382 = arith.constant 31 : i32
    %c0_i32_383 = arith.constant 0 : i32
    %518 = tpu.memref_slice %arg4[%c31_i32_382, %c0_i32_383] : memref<56x128xf32, #tpu.memory_space<vmem>> -> memref<1x128xf32, #tpu.memory_space<vmem>>
    %519 = tpu.memref_slice %arg5[%c31_i32_379] : memref<56x!tpu.dma_semaphore, #tpu.memory_space<semaphore_mem>> -> memref<1x!tpu.dma_semaphore, #tpu.memory_space<semaphore_mem>>
    %520 = tpu.memref_squeeze %519 : memref<1x!tpu.dma_semaphore, #tpu.memory_space<semaphore_mem>> -> memref<!tpu.dma_semaphore, #tpu.memory_space<semaphore_mem>>
    tpu.wait_dma2 semaphore(%520 : memref<!tpu.dma_semaphore, #tpu.memory_space<semaphore_mem>>) src(%517 : memref<1x128xf32, #tpu.memory_space<any>>) dst(%518 : memref<1x128xf32, #tpu.memory_space<vmem>>)
    %c32_i32_384 = arith.constant 32 : i32
    %c0_i32_385 = arith.constant 0 : i32
    %c0_i32_386 = arith.constant 0 : i32
    %521 = tpu.memref_slice %arg2[%c0_i32_385, %c0_i32_386] : memref<512x128xf32, #tpu.memory_space<any>> -> memref<1x128xf32, #tpu.memory_space<any>>
    %c32_i32_387 = arith.constant 32 : i32
    %c0_i32_388 = arith.constant 0 : i32
    %522 = tpu.memref_slice %arg4[%c32_i32_387, %c0_i32_388] : memref<56x128xf32, #tpu.memory_space<vmem>> -> memref<1x128xf32, #tpu.memory_space<vmem>>
    %523 = tpu.memref_slice %arg5[%c32_i32_384] : memref<56x!tpu.dma_semaphore, #tpu.memory_space<semaphore_mem>> -> memref<1x!tpu.dma_semaphore, #tpu.memory_space<semaphore_mem>>
    %524 = tpu.memref_squeeze %523 : memref<1x!tpu.dma_semaphore, #tpu.memory_space<semaphore_mem>> -> memref<!tpu.dma_semaphore, #tpu.memory_space<semaphore_mem>>
    tpu.wait_dma2 semaphore(%524 : memref<!tpu.dma_semaphore, #tpu.memory_space<semaphore_mem>>) src(%521 : memref<1x128xf32, #tpu.memory_space<any>>) dst(%522 : memref<1x128xf32, #tpu.memory_space<vmem>>)
    %c33_i32_389 = arith.constant 33 : i32
    %c0_i32_390 = arith.constant 0 : i32
    %c0_i32_391 = arith.constant 0 : i32
    %525 = tpu.memref_slice %arg2[%c0_i32_390, %c0_i32_391] : memref<512x128xf32, #tpu.memory_space<any>> -> memref<1x128xf32, #tpu.memory_space<any>>
    %c33_i32_392 = arith.constant 33 : i32
    %c0_i32_393 = arith.constant 0 : i32
    %526 = tpu.memref_slice %arg4[%c33_i32_392, %c0_i32_393] : memref<56x128xf32, #tpu.memory_space<vmem>> -> memref<1x128xf32, #tpu.memory_space<vmem>>
    %527 = tpu.memref_slice %arg5[%c33_i32_389] : memref<56x!tpu.dma_semaphore, #tpu.memory_space<semaphore_mem>> -> memref<1x!tpu.dma_semaphore, #tpu.memory_space<semaphore_mem>>
    %528 = tpu.memref_squeeze %527 : memref<1x!tpu.dma_semaphore, #tpu.memory_space<semaphore_mem>> -> memref<!tpu.dma_semaphore, #tpu.memory_space<semaphore_mem>>
    tpu.wait_dma2 semaphore(%528 : memref<!tpu.dma_semaphore, #tpu.memory_space<semaphore_mem>>) src(%525 : memref<1x128xf32, #tpu.memory_space<any>>) dst(%526 : memref<1x128xf32, #tpu.memory_space<vmem>>)
    %c34_i32_394 = arith.constant 34 : i32
    %c0_i32_395 = arith.constant 0 : i32
    %c0_i32_396 = arith.constant 0 : i32
    %529 = tpu.memref_slice %arg2[%c0_i32_395, %c0_i32_396] : memref<512x128xf32, #tpu.memory_space<any>> -> memref<1x128xf32, #tpu.memory_space<any>>
    %c34_i32_397 = arith.constant 34 : i32
    %c0_i32_398 = arith.constant 0 : i32
    %530 = tpu.memref_slice %arg4[%c34_i32_397, %c0_i32_398] : memref<56x128xf32, #tpu.memory_space<vmem>> -> memref<1x128xf32, #tpu.memory_space<vmem>>
    %531 = tpu.memref_slice %arg5[%c34_i32_394] : memref<56x!tpu.dma_semaphore, #tpu.memory_space<semaphore_mem>> -> memref<1x!tpu.dma_semaphore, #tpu.memory_space<semaphore_mem>>
    %532 = tpu.memref_squeeze %531 : memref<1x!tpu.dma_semaphore, #tpu.memory_space<semaphore_mem>> -> memref<!tpu.dma_semaphore, #tpu.memory_space<semaphore_mem>>
    tpu.wait_dma2 semaphore(%532 : memref<!tpu.dma_semaphore, #tpu.memory_space<semaphore_mem>>) src(%529 : memref<1x128xf32, #tpu.memory_space<any>>) dst(%530 : memref<1x128xf32, #tpu.memory_space<vmem>>)
    %c35_i32_399 = arith.constant 35 : i32
    %c0_i32_400 = arith.constant 0 : i32
    %c0_i32_401 = arith.constant 0 : i32
    %533 = tpu.memref_slice %arg2[%c0_i32_400, %c0_i32_401] : memref<512x128xf32, #tpu.memory_space<any>> -> memref<1x128xf32, #tpu.memory_space<any>>
    %c35_i32_402 = arith.constant 35 : i32
    %c0_i32_403 = arith.constant 0 : i32
    %534 = tpu.memref_slice %arg4[%c35_i32_402, %c0_i32_403] : memref<56x128xf32, #tpu.memory_space<vmem>> -> memref<1x128xf32, #tpu.memory_space<vmem>>
    %535 = tpu.memref_slice %arg5[%c35_i32_399] : memref<56x!tpu.dma_semaphore, #tpu.memory_space<semaphore_mem>> -> memref<1x!tpu.dma_semaphore, #tpu.memory_space<semaphore_mem>>
    %536 = tpu.memref_squeeze %535 : memref<1x!tpu.dma_semaphore, #tpu.memory_space<semaphore_mem>> -> memref<!tpu.dma_semaphore, #tpu.memory_space<semaphore_mem>>
    tpu.wait_dma2 semaphore(%536 : memref<!tpu.dma_semaphore, #tpu.memory_space<semaphore_mem>>) src(%533 : memref<1x128xf32, #tpu.memory_space<any>>) dst(%534 : memref<1x128xf32, #tpu.memory_space<vmem>>)
    %c36_i32_404 = arith.constant 36 : i32
    %c0_i32_405 = arith.constant 0 : i32
    %c0_i32_406 = arith.constant 0 : i32
    %537 = tpu.memref_slice %arg2[%c0_i32_405, %c0_i32_406] : memref<512x128xf32, #tpu.memory_space<any>> -> memref<1x128xf32, #tpu.memory_space<any>>
    %c36_i32_407 = arith.constant 36 : i32
    %c0_i32_408 = arith.constant 0 : i32
    %538 = tpu.memref_slice %arg4[%c36_i32_407, %c0_i32_408] : memref<56x128xf32, #tpu.memory_space<vmem>> -> memref<1x128xf32, #tpu.memory_space<vmem>>
    %539 = tpu.memref_slice %arg5[%c36_i32_404] : memref<56x!tpu.dma_semaphore, #tpu.memory_space<semaphore_mem>> -> memref<1x!tpu.dma_semaphore, #tpu.memory_space<semaphore_mem>>
    %540 = tpu.memref_squeeze %539 : memref<1x!tpu.dma_semaphore, #tpu.memory_space<semaphore_mem>> -> memref<!tpu.dma_semaphore, #tpu.memory_space<semaphore_mem>>
    tpu.wait_dma2 semaphore(%540 : memref<!tpu.dma_semaphore, #tpu.memory_space<semaphore_mem>>) src(%537 : memref<1x128xf32, #tpu.memory_space<any>>) dst(%538 : memref<1x128xf32, #tpu.memory_space<vmem>>)
    %c37_i32_409 = arith.constant 37 : i32
    %c0_i32_410 = arith.constant 0 : i32
    %c0_i32_411 = arith.constant 0 : i32
    %541 = tpu.memref_slice %arg2[%c0_i32_410, %c0_i32_411] : memref<512x128xf32, #tpu.memory_space<any>> -> memref<1x128xf32, #tpu.memory_space<any>>
    %c37_i32_412 = arith.constant 37 : i32
    %c0_i32_413 = arith.constant 0 : i32
    %542 = tpu.memref_slice %arg4[%c37_i32_412, %c0_i32_413] : memref<56x128xf32, #tpu.memory_space<vmem>> -> memref<1x128xf32, #tpu.memory_space<vmem>>
    %543 = tpu.memref_slice %arg5[%c37_i32_409] : memref<56x!tpu.dma_semaphore, #tpu.memory_space<semaphore_mem>> -> memref<1x!tpu.dma_semaphore, #tpu.memory_space<semaphore_mem>>
    %544 = tpu.memref_squeeze %543 : memref<1x!tpu.dma_semaphore, #tpu.memory_space<semaphore_mem>> -> memref<!tpu.dma_semaphore, #tpu.memory_space<semaphore_mem>>
    tpu.wait_dma2 semaphore(%544 : memref<!tpu.dma_semaphore, #tpu.memory_space<semaphore_mem>>) src(%541 : memref<1x128xf32, #tpu.memory_space<any>>) dst(%542 : memref<1x128xf32, #tpu.memory_space<vmem>>)
    %c38_i32_414 = arith.constant 38 : i32
    %c0_i32_415 = arith.constant 0 : i32
    %c0_i32_416 = arith.constant 0 : i32
    %545 = tpu.memref_slice %arg2[%c0_i32_415, %c0_i32_416] : memref<512x128xf32, #tpu.memory_space<any>> -> memref<1x128xf32, #tpu.memory_space<any>>
    %c38_i32_417 = arith.constant 38 : i32
    %c0_i32_418 = arith.constant 0 : i32
    %546 = tpu.memref_slice %arg4[%c38_i32_417, %c0_i32_418] : memref<56x128xf32, #tpu.memory_space<vmem>> -> memref<1x128xf32, #tpu.memory_space<vmem>>
    %547 = tpu.memref_slice %arg5[%c38_i32_414] : memref<56x!tpu.dma_semaphore, #tpu.memory_space<semaphore_mem>> -> memref<1x!tpu.dma_semaphore, #tpu.memory_space<semaphore_mem>>
    %548 = tpu.memref_squeeze %547 : memref<1x!tpu.dma_semaphore, #tpu.memory_space<semaphore_mem>> -> memref<!tpu.dma_semaphore, #tpu.memory_space<semaphore_mem>>
    tpu.wait_dma2 semaphore(%548 : memref<!tpu.dma_semaphore, #tpu.memory_space<semaphore_mem>>) src(%545 : memref<1x128xf32, #tpu.memory_space<any>>) dst(%546 : memref<1x128xf32, #tpu.memory_space<vmem>>)
    %c39_i32_419 = arith.constant 39 : i32
    %c0_i32_420 = arith.constant 0 : i32
    %c0_i32_421 = arith.constant 0 : i32
    %549 = tpu.memref_slice %arg2[%c0_i32_420, %c0_i32_421] : memref<512x128xf32, #tpu.memory_space<any>> -> memref<1x128xf32, #tpu.memory_space<any>>
    %c39_i32_422 = arith.constant 39 : i32
    %c0_i32_423 = arith.constant 0 : i32
    %550 = tpu.memref_slice %arg4[%c39_i32_422, %c0_i32_423] : memref<56x128xf32, #tpu.memory_space<vmem>> -> memref<1x128xf32, #tpu.memory_space<vmem>>
    %551 = tpu.memref_slice %arg5[%c39_i32_419] : memref<56x!tpu.dma_semaphore, #tpu.memory_space<semaphore_mem>> -> memref<1x!tpu.dma_semaphore, #tpu.memory_space<semaphore_mem>>
    %552 = tpu.memref_squeeze %551 : memref<1x!tpu.dma_semaphore, #tpu.memory_space<semaphore_mem>> -> memref<!tpu.dma_semaphore, #tpu.memory_space<semaphore_mem>>
    tpu.wait_dma2 semaphore(%552 : memref<!tpu.dma_semaphore, #tpu.memory_space<semaphore_mem>>) src(%549 : memref<1x128xf32, #tpu.memory_space<any>>) dst(%550 : memref<1x128xf32, #tpu.memory_space<vmem>>)
    %c40_i32_424 = arith.constant 40 : i32
    %c0_i32_425 = arith.constant 0 : i32
    %c0_i32_426 = arith.constant 0 : i32
    %553 = tpu.memref_slice %arg2[%c0_i32_425, %c0_i32_426] : memref<512x128xf32, #tpu.memory_space<any>> -> memref<1x128xf32, #tpu.memory_space<any>>
    %c40_i32_427 = arith.constant 40 : i32
    %c0_i32_428 = arith.constant 0 : i32
    %554 = tpu.memref_slice %arg4[%c40_i32_427, %c0_i32_428] : memref<56x128xf32, #tpu.memory_space<vmem>> -> memref<1x128xf32, #tpu.memory_space<vmem>>
    %555 = tpu.memref_slice %arg5[%c40_i32_424] : memref<56x!tpu.dma_semaphore, #tpu.memory_space<semaphore_mem>> -> memref<1x!tpu.dma_semaphore, #tpu.memory_space<semaphore_mem>>
    %556 = tpu.memref_squeeze %555 : memref<1x!tpu.dma_semaphore, #tpu.memory_space<semaphore_mem>> -> memref<!tpu.dma_semaphore, #tpu.memory_space<semaphore_mem>>
    tpu.wait_dma2 semaphore(%556 : memref<!tpu.dma_semaphore, #tpu.memory_space<semaphore_mem>>) src(%553 : memref<1x128xf32, #tpu.memory_space<any>>) dst(%554 : memref<1x128xf32, #tpu.memory_space<vmem>>)
    %c41_i32_429 = arith.constant 41 : i32
    %c0_i32_430 = arith.constant 0 : i32
    %c0_i32_431 = arith.constant 0 : i32
    %557 = tpu.memref_slice %arg2[%c0_i32_430, %c0_i32_431] : memref<512x128xf32, #tpu.memory_space<any>> -> memref<1x128xf32, #tpu.memory_space<any>>
    %c41_i32_432 = arith.constant 41 : i32
    %c0_i32_433 = arith.constant 0 : i32
    %558 = tpu.memref_slice %arg4[%c41_i32_432, %c0_i32_433] : memref<56x128xf32, #tpu.memory_space<vmem>> -> memref<1x128xf32, #tpu.memory_space<vmem>>
    %559 = tpu.memref_slice %arg5[%c41_i32_429] : memref<56x!tpu.dma_semaphore, #tpu.memory_space<semaphore_mem>> -> memref<1x!tpu.dma_semaphore, #tpu.memory_space<semaphore_mem>>
    %560 = tpu.memref_squeeze %559 : memref<1x!tpu.dma_semaphore, #tpu.memory_space<semaphore_mem>> -> memref<!tpu.dma_semaphore, #tpu.memory_space<semaphore_mem>>
    tpu.wait_dma2 semaphore(%560 : memref<!tpu.dma_semaphore, #tpu.memory_space<semaphore_mem>>) src(%557 : memref<1x128xf32, #tpu.memory_space<any>>) dst(%558 : memref<1x128xf32, #tpu.memory_space<vmem>>)
    %c42_i32_434 = arith.constant 42 : i32
    %c0_i32_435 = arith.constant 0 : i32
    %c0_i32_436 = arith.constant 0 : i32
    %561 = tpu.memref_slice %arg2[%c0_i32_435, %c0_i32_436] : memref<512x128xf32, #tpu.memory_space<any>> -> memref<1x128xf32, #tpu.memory_space<any>>
    %c42_i32_437 = arith.constant 42 : i32
    %c0_i32_438 = arith.constant 0 : i32
    %562 = tpu.memref_slice %arg4[%c42_i32_437, %c0_i32_438] : memref<56x128xf32, #tpu.memory_space<vmem>> -> memref<1x128xf32, #tpu.memory_space<vmem>>
    %563 = tpu.memref_slice %arg5[%c42_i32_434] : memref<56x!tpu.dma_semaphore, #tpu.memory_space<semaphore_mem>> -> memref<1x!tpu.dma_semaphore, #tpu.memory_space<semaphore_mem>>
    %564 = tpu.memref_squeeze %563 : memref<1x!tpu.dma_semaphore, #tpu.memory_space<semaphore_mem>> -> memref<!tpu.dma_semaphore, #tpu.memory_space<semaphore_mem>>
    tpu.wait_dma2 semaphore(%564 : memref<!tpu.dma_semaphore, #tpu.memory_space<semaphore_mem>>) src(%561 : memref<1x128xf32, #tpu.memory_space<any>>) dst(%562 : memref<1x128xf32, #tpu.memory_space<vmem>>)
    %c43_i32_439 = arith.constant 43 : i32
    %c0_i32_440 = arith.constant 0 : i32
    %c0_i32_441 = arith.constant 0 : i32
    %565 = tpu.memref_slice %arg2[%c0_i32_440, %c0_i32_441] : memref<512x128xf32, #tpu.memory_space<any>> -> memref<1x128xf32, #tpu.memory_space<any>>
    %c43_i32_442 = arith.constant 43 : i32
    %c0_i32_443 = arith.constant 0 : i32
    %566 = tpu.memref_slice %arg4[%c43_i32_442, %c0_i32_443] : memref<56x128xf32, #tpu.memory_space<vmem>> -> memref<1x128xf32, #tpu.memory_space<vmem>>
    %567 = tpu.memref_slice %arg5[%c43_i32_439] : memref<56x!tpu.dma_semaphore, #tpu.memory_space<semaphore_mem>> -> memref<1x!tpu.dma_semaphore, #tpu.memory_space<semaphore_mem>>
    %568 = tpu.memref_squeeze %567 : memref<1x!tpu.dma_semaphore, #tpu.memory_space<semaphore_mem>> -> memref<!tpu.dma_semaphore, #tpu.memory_space<semaphore_mem>>
    tpu.wait_dma2 semaphore(%568 : memref<!tpu.dma_semaphore, #tpu.memory_space<semaphore_mem>>) src(%565 : memref<1x128xf32, #tpu.memory_space<any>>) dst(%566 : memref<1x128xf32, #tpu.memory_space<vmem>>)
    %c44_i32_444 = arith.constant 44 : i32
    %c0_i32_445 = arith.constant 0 : i32
    %c0_i32_446 = arith.constant 0 : i32
    %569 = tpu.memref_slice %arg2[%c0_i32_445, %c0_i32_446] : memref<512x128xf32, #tpu.memory_space<any>> -> memref<1x128xf32, #tpu.memory_space<any>>
    %c44_i32_447 = arith.constant 44 : i32
    %c0_i32_448 = arith.constant 0 : i32
    %570 = tpu.memref_slice %arg4[%c44_i32_447, %c0_i32_448] : memref<56x128xf32, #tpu.memory_space<vmem>> -> memref<1x128xf32, #tpu.memory_space<vmem>>
    %571 = tpu.memref_slice %arg5[%c44_i32_444] : memref<56x!tpu.dma_semaphore, #tpu.memory_space<semaphore_mem>> -> memref<1x!tpu.dma_semaphore, #tpu.memory_space<semaphore_mem>>
    %572 = tpu.memref_squeeze %571 : memref<1x!tpu.dma_semaphore, #tpu.memory_space<semaphore_mem>> -> memref<!tpu.dma_semaphore, #tpu.memory_space<semaphore_mem>>
    tpu.wait_dma2 semaphore(%572 : memref<!tpu.dma_semaphore, #tpu.memory_space<semaphore_mem>>) src(%569 : memref<1x128xf32, #tpu.memory_space<any>>) dst(%570 : memref<1x128xf32, #tpu.memory_space<vmem>>)
    %c45_i32_449 = arith.constant 45 : i32
    %c0_i32_450 = arith.constant 0 : i32
    %c0_i32_451 = arith.constant 0 : i32
    %573 = tpu.memref_slice %arg2[%c0_i32_450, %c0_i32_451] : memref<512x128xf32, #tpu.memory_space<any>> -> memref<1x128xf32, #tpu.memory_space<any>>
    %c45_i32_452 = arith.constant 45 : i32
    %c0_i32_453 = arith.constant 0 : i32
    %574 = tpu.memref_slice %arg4[%c45_i32_452, %c0_i32_453] : memref<56x128xf32, #tpu.memory_space<vmem>> -> memref<1x128xf32, #tpu.memory_space<vmem>>
    %575 = tpu.memref_slice %arg5[%c45_i32_449] : memref<56x!tpu.dma_semaphore, #tpu.memory_space<semaphore_mem>> -> memref<1x!tpu.dma_semaphore, #tpu.memory_space<semaphore_mem>>
    %576 = tpu.memref_squeeze %575 : memref<1x!tpu.dma_semaphore, #tpu.memory_space<semaphore_mem>> -> memref<!tpu.dma_semaphore, #tpu.memory_space<semaphore_mem>>
    tpu.wait_dma2 semaphore(%576 : memref<!tpu.dma_semaphore, #tpu.memory_space<semaphore_mem>>) src(%573 : memref<1x128xf32, #tpu.memory_space<any>>) dst(%574 : memref<1x128xf32, #tpu.memory_space<vmem>>)
    %c46_i32_454 = arith.constant 46 : i32
    %c0_i32_455 = arith.constant 0 : i32
    %c0_i32_456 = arith.constant 0 : i32
    %577 = tpu.memref_slice %arg2[%c0_i32_455, %c0_i32_456] : memref<512x128xf32, #tpu.memory_space<any>> -> memref<1x128xf32, #tpu.memory_space<any>>
    %c46_i32_457 = arith.constant 46 : i32
    %c0_i32_458 = arith.constant 0 : i32
    %578 = tpu.memref_slice %arg4[%c46_i32_457, %c0_i32_458] : memref<56x128xf32, #tpu.memory_space<vmem>> -> memref<1x128xf32, #tpu.memory_space<vmem>>
    %579 = tpu.memref_slice %arg5[%c46_i32_454] : memref<56x!tpu.dma_semaphore, #tpu.memory_space<semaphore_mem>> -> memref<1x!tpu.dma_semaphore, #tpu.memory_space<semaphore_mem>>
    %580 = tpu.memref_squeeze %579 : memref<1x!tpu.dma_semaphore, #tpu.memory_space<semaphore_mem>> -> memref<!tpu.dma_semaphore, #tpu.memory_space<semaphore_mem>>
    tpu.wait_dma2 semaphore(%580 : memref<!tpu.dma_semaphore, #tpu.memory_space<semaphore_mem>>) src(%577 : memref<1x128xf32, #tpu.memory_space<any>>) dst(%578 : memref<1x128xf32, #tpu.memory_space<vmem>>)
    %c47_i32_459 = arith.constant 47 : i32
    %c0_i32_460 = arith.constant 0 : i32
    %c0_i32_461 = arith.constant 0 : i32
    %581 = tpu.memref_slice %arg2[%c0_i32_460, %c0_i32_461] : memref<512x128xf32, #tpu.memory_space<any>> -> memref<1x128xf32, #tpu.memory_space<any>>
    %c47_i32_462 = arith.constant 47 : i32
    %c0_i32_463 = arith.constant 0 : i32
    %582 = tpu.memref_slice %arg4[%c47_i32_462, %c0_i32_463] : memref<56x128xf32, #tpu.memory_space<vmem>> -> memref<1x128xf32, #tpu.memory_space<vmem>>
    %583 = tpu.memref_slice %arg5[%c47_i32_459] : memref<56x!tpu.dma_semaphore, #tpu.memory_space<semaphore_mem>> -> memref<1x!tpu.dma_semaphore, #tpu.memory_space<semaphore_mem>>
    %584 = tpu.memref_squeeze %583 : memref<1x!tpu.dma_semaphore, #tpu.memory_space<semaphore_mem>> -> memref<!tpu.dma_semaphore, #tpu.memory_space<semaphore_mem>>
    tpu.wait_dma2 semaphore(%584 : memref<!tpu.dma_semaphore, #tpu.memory_space<semaphore_mem>>) src(%581 : memref<1x128xf32, #tpu.memory_space<any>>) dst(%582 : memref<1x128xf32, #tpu.memory_space<vmem>>)
    %c48_i32_464 = arith.constant 48 : i32
    %c0_i32_465 = arith.constant 0 : i32
    %c0_i32_466 = arith.constant 0 : i32
    %585 = tpu.memref_slice %arg2[%c0_i32_465, %c0_i32_466] : memref<512x128xf32, #tpu.memory_space<any>> -> memref<1x128xf32, #tpu.memory_space<any>>
    %c48_i32_467 = arith.constant 48 : i32
    %c0_i32_468 = arith.constant 0 : i32
    %586 = tpu.memref_slice %arg4[%c48_i32_467, %c0_i32_468] : memref<56x128xf32, #tpu.memory_space<vmem>> -> memref<1x128xf32, #tpu.memory_space<vmem>>
    %587 = tpu.memref_slice %arg5[%c48_i32_464] : memref<56x!tpu.dma_semaphore, #tpu.memory_space<semaphore_mem>> -> memref<1x!tpu.dma_semaphore, #tpu.memory_space<semaphore_mem>>
    %588 = tpu.memref_squeeze %587 : memref<1x!tpu.dma_semaphore, #tpu.memory_space<semaphore_mem>> -> memref<!tpu.dma_semaphore, #tpu.memory_space<semaphore_mem>>
    tpu.wait_dma2 semaphore(%588 : memref<!tpu.dma_semaphore, #tpu.memory_space<semaphore_mem>>) src(%585 : memref<1x128xf32, #tpu.memory_space<any>>) dst(%586 : memref<1x128xf32, #tpu.memory_space<vmem>>)
    %c49_i32_469 = arith.constant 49 : i32
    %c0_i32_470 = arith.constant 0 : i32
    %c0_i32_471 = arith.constant 0 : i32
    %589 = tpu.memref_slice %arg2[%c0_i32_470, %c0_i32_471] : memref<512x128xf32, #tpu.memory_space<any>> -> memref<1x128xf32, #tpu.memory_space<any>>
    %c49_i32_472 = arith.constant 49 : i32
    %c0_i32_473 = arith.constant 0 : i32
    %590 = tpu.memref_slice %arg4[%c49_i32_472, %c0_i32_473] : memref<56x128xf32, #tpu.memory_space<vmem>> -> memref<1x128xf32, #tpu.memory_space<vmem>>
    %591 = tpu.memref_slice %arg5[%c49_i32_469] : memref<56x!tpu.dma_semaphore, #tpu.memory_space<semaphore_mem>> -> memref<1x!tpu.dma_semaphore, #tpu.memory_space<semaphore_mem>>
    %592 = tpu.memref_squeeze %591 : memref<1x!tpu.dma_semaphore, #tpu.memory_space<semaphore_mem>> -> memref<!tpu.dma_semaphore, #tpu.memory_space<semaphore_mem>>
    tpu.wait_dma2 semaphore(%592 : memref<!tpu.dma_semaphore, #tpu.memory_space<semaphore_mem>>) src(%589 : memref<1x128xf32, #tpu.memory_space<any>>) dst(%590 : memref<1x128xf32, #tpu.memory_space<vmem>>)
    %c50_i32_474 = arith.constant 50 : i32
    %c0_i32_475 = arith.constant 0 : i32
    %c0_i32_476 = arith.constant 0 : i32
    %593 = tpu.memref_slice %arg2[%c0_i32_475, %c0_i32_476] : memref<512x128xf32, #tpu.memory_space<any>> -> memref<1x128xf32, #tpu.memory_space<any>>
    %c50_i32_477 = arith.constant 50 : i32
    %c0_i32_478 = arith.constant 0 : i32
    %594 = tpu.memref_slice %arg4[%c50_i32_477, %c0_i32_478] : memref<56x128xf32, #tpu.memory_space<vmem>> -> memref<1x128xf32, #tpu.memory_space<vmem>>
    %595 = tpu.memref_slice %arg5[%c50_i32_474] : memref<56x!tpu.dma_semaphore, #tpu.memory_space<semaphore_mem>> -> memref<1x!tpu.dma_semaphore, #tpu.memory_space<semaphore_mem>>
    %596 = tpu.memref_squeeze %595 : memref<1x!tpu.dma_semaphore, #tpu.memory_space<semaphore_mem>> -> memref<!tpu.dma_semaphore, #tpu.memory_space<semaphore_mem>>
    tpu.wait_dma2 semaphore(%596 : memref<!tpu.dma_semaphore, #tpu.memory_space<semaphore_mem>>) src(%593 : memref<1x128xf32, #tpu.memory_space<any>>) dst(%594 : memref<1x128xf32, #tpu.memory_space<vmem>>)
    %c51_i32_479 = arith.constant 51 : i32
    %c0_i32_480 = arith.constant 0 : i32
    %c0_i32_481 = arith.constant 0 : i32
    %597 = tpu.memref_slice %arg2[%c0_i32_480, %c0_i32_481] : memref<512x128xf32, #tpu.memory_space<any>> -> memref<1x128xf32, #tpu.memory_space<any>>
    %c51_i32_482 = arith.constant 51 : i32
    %c0_i32_483 = arith.constant 0 : i32
    %598 = tpu.memref_slice %arg4[%c51_i32_482, %c0_i32_483] : memref<56x128xf32, #tpu.memory_space<vmem>> -> memref<1x128xf32, #tpu.memory_space<vmem>>
    %599 = tpu.memref_slice %arg5[%c51_i32_479] : memref<56x!tpu.dma_semaphore, #tpu.memory_space<semaphore_mem>> -> memref<1x!tpu.dma_semaphore, #tpu.memory_space<semaphore_mem>>
    %600 = tpu.memref_squeeze %599 : memref<1x!tpu.dma_semaphore, #tpu.memory_space<semaphore_mem>> -> memref<!tpu.dma_semaphore, #tpu.memory_space<semaphore_mem>>
    tpu.wait_dma2 semaphore(%600 : memref<!tpu.dma_semaphore, #tpu.memory_space<semaphore_mem>>) src(%597 : memref<1x128xf32, #tpu.memory_space<any>>) dst(%598 : memref<1x128xf32, #tpu.memory_space<vmem>>)
    %c52_i32_484 = arith.constant 52 : i32
    %c0_i32_485 = arith.constant 0 : i32
    %c0_i32_486 = arith.constant 0 : i32
    %601 = tpu.memref_slice %arg2[%c0_i32_485, %c0_i32_486] : memref<512x128xf32, #tpu.memory_space<any>> -> memref<1x128xf32, #tpu.memory_space<any>>
    %c52_i32_487 = arith.constant 52 : i32
    %c0_i32_488 = arith.constant 0 : i32
    %602 = tpu.memref_slice %arg4[%c52_i32_487, %c0_i32_488] : memref<56x128xf32, #tpu.memory_space<vmem>> -> memref<1x128xf32, #tpu.memory_space<vmem>>
    %603 = tpu.memref_slice %arg5[%c52_i32_484] : memref<56x!tpu.dma_semaphore, #tpu.memory_space<semaphore_mem>> -> memref<1x!tpu.dma_semaphore, #tpu.memory_space<semaphore_mem>>
    %604 = tpu.memref_squeeze %603 : memref<1x!tpu.dma_semaphore, #tpu.memory_space<semaphore_mem>> -> memref<!tpu.dma_semaphore, #tpu.memory_space<semaphore_mem>>
    tpu.wait_dma2 semaphore(%604 : memref<!tpu.dma_semaphore, #tpu.memory_space<semaphore_mem>>) src(%601 : memref<1x128xf32, #tpu.memory_space<any>>) dst(%602 : memref<1x128xf32, #tpu.memory_space<vmem>>)
    %c53_i32_489 = arith.constant 53 : i32
    %c0_i32_490 = arith.constant 0 : i32
    %c0_i32_491 = arith.constant 0 : i32
    %605 = tpu.memref_slice %arg2[%c0_i32_490, %c0_i32_491] : memref<512x128xf32, #tpu.memory_space<any>> -> memref<1x128xf32, #tpu.memory_space<any>>
    %c53_i32_492 = arith.constant 53 : i32
    %c0_i32_493 = arith.constant 0 : i32
    %606 = tpu.memref_slice %arg4[%c53_i32_492, %c0_i32_493] : memref<56x128xf32, #tpu.memory_space<vmem>> -> memref<1x128xf32, #tpu.memory_space<vmem>>
    %607 = tpu.memref_slice %arg5[%c53_i32_489] : memref<56x!tpu.dma_semaphore, #tpu.memory_space<semaphore_mem>> -> memref<1x!tpu.dma_semaphore, #tpu.memory_space<semaphore_mem>>
    %608 = tpu.memref_squeeze %607 : memref<1x!tpu.dma_semaphore, #tpu.memory_space<semaphore_mem>> -> memref<!tpu.dma_semaphore, #tpu.memory_space<semaphore_mem>>
    tpu.wait_dma2 semaphore(%608 : memref<!tpu.dma_semaphore, #tpu.memory_space<semaphore_mem>>) src(%605 : memref<1x128xf32, #tpu.memory_space<any>>) dst(%606 : memref<1x128xf32, #tpu.memory_space<vmem>>)
    %c54_i32_494 = arith.constant 54 : i32
    %c0_i32_495 = arith.constant 0 : i32
    %c0_i32_496 = arith.constant 0 : i32
    %609 = tpu.memref_slice %arg2[%c0_i32_495, %c0_i32_496] : memref<512x128xf32, #tpu.memory_space<any>> -> memref<1x128xf32, #tpu.memory_space<any>>
    %c54_i32_497 = arith.constant 54 : i32
    %c0_i32_498 = arith.constant 0 : i32
    %610 = tpu.memref_slice %arg4[%c54_i32_497, %c0_i32_498] : memref<56x128xf32, #tpu.memory_space<vmem>> -> memref<1x128xf32, #tpu.memory_space<vmem>>
    %611 = tpu.memref_slice %arg5[%c54_i32_494] : memref<56x!tpu.dma_semaphore, #tpu.memory_space<semaphore_mem>> -> memref<1x!tpu.dma_semaphore, #tpu.memory_space<semaphore_mem>>
    %612 = tpu.memref_squeeze %611 : memref<1x!tpu.dma_semaphore, #tpu.memory_space<semaphore_mem>> -> memref<!tpu.dma_semaphore, #tpu.memory_space<semaphore_mem>>
    tpu.wait_dma2 semaphore(%612 : memref<!tpu.dma_semaphore, #tpu.memory_space<semaphore_mem>>) src(%609 : memref<1x128xf32, #tpu.memory_space<any>>) dst(%610 : memref<1x128xf32, #tpu.memory_space<vmem>>)
    %c55_i32_499 = arith.constant 55 : i32
    %c0_i32_500 = arith.constant 0 : i32
    %c0_i32_501 = arith.constant 0 : i32
    %613 = tpu.memref_slice %arg2[%c0_i32_500, %c0_i32_501] : memref<512x128xf32, #tpu.memory_space<any>> -> memref<1x128xf32, #tpu.memory_space<any>>
    %c55_i32_502 = arith.constant 55 : i32
    %c0_i32_503 = arith.constant 0 : i32
    %614 = tpu.memref_slice %arg4[%c55_i32_502, %c0_i32_503] : memref<56x128xf32, #tpu.memory_space<vmem>> -> memref<1x128xf32, #tpu.memory_space<vmem>>
    %615 = tpu.memref_slice %arg5[%c55_i32_499] : memref<56x!tpu.dma_semaphore, #tpu.memory_space<semaphore_mem>> -> memref<1x!tpu.dma_semaphore, #tpu.memory_space<semaphore_mem>>
    %616 = tpu.memref_squeeze %615 : memref<1x!tpu.dma_semaphore, #tpu.memory_space<semaphore_mem>> -> memref<!tpu.dma_semaphore, #tpu.memory_space<semaphore_mem>>
    tpu.wait_dma2 semaphore(%616 : memref<!tpu.dma_semaphore, #tpu.memory_space<semaphore_mem>>) src(%613 : memref<1x128xf32, #tpu.memory_space<any>>) dst(%614 : memref<1x128xf32, #tpu.memory_space<vmem>>)
    %c0 = arith.constant 0 : index
    %c0_504 = arith.constant 0 : index
    %617 = vector.load %arg4[%c0, %c0_504] : memref<56x128xf32, #tpu.memory_space<vmem>>, vector<7x128xf32>
    %cst = arith.constant dense<0.000000e+00> : vector<128xf32>
    %618 = vector.multi_reduction <add>, %617, %cst [0] : vector<7x128xf32> to vector<128xf32>
    %619 = vector.shape_cast %618 : vector<128xf32> to vector<1x128xf32>
    %cst_505 = arith.constant 0.142857149 : f32
    %620 = vector.broadcast %cst_505 : f32 to vector<1x128xf32>
    %621 = arith.mulf %619, %620 : vector<1x128xf32>
    %c0_506 = arith.constant 0 : index
    %c0_507 = arith.constant 0 : index
    %622 = vector.load %arg3[%c0_506, %c0_507] : memref<8x128xf32, #tpu.memory_space<vmem>>, vector<1x128xf32>
    tpu.vector_store %arg3[%c0_506, %c0_507], %621 {strides = array<i32>} : memref<8x128xf32, #tpu.memory_space<vmem>>, vector<1x128xf32>,
    %c7 = arith.constant 7 : index
    %c0_508 = arith.constant 0 : index
    %623 = vector.load %arg4[%c7, %c0_508] : memref<56x128xf32, #tpu.memory_space<vmem>>, vector<7x128xf32>
    %cst_509 = arith.constant dense<0.000000e+00> : vector<128xf32>
    %624 = vector.multi_reduction <add>, %623, %cst_509 [0] : vector<7x128xf32> to vector<128xf32>
    %625 = vector.shape_cast %624 : vector<128xf32> to vector<1x128xf32>
    %cst_510 = arith.constant 0.142857149 : f32
    %626 = vector.broadcast %cst_510 : f32 to vector<1x128xf32>
    %627 = arith.mulf %625, %626 : vector<1x128xf32>
    %c1 = arith.constant 1 : index
    %c0_511 = arith.constant 0 : index
    %628 = vector.load %arg3[%c1, %c0_511] : memref<8x128xf32, #tpu.memory_space<vmem>>, vector<1x128xf32>
    tpu.vector_store %arg3[%c1, %c0_511], %627 {strides = array<i32>} : memref<8x128xf32, #tpu.memory_space<vmem>>, vector<1x128xf32>,
    %c14 = arith.constant 14 : index
    %c0_512 = arith.constant 0 : index
    %629 = vector.load %arg4[%c14, %c0_512] : memref<56x128xf32, #tpu.memory_space<vmem>>, vector<7x128xf32>
    %cst_513 = arith.constant dense<0.000000e+00> : vector<128xf32>
    %630 = vector.multi_reduction <add>, %629, %cst_513 [0] : vector<7x128xf32> to vector<128xf32>
    %631 = vector.shape_cast %630 : vector<128xf32> to vector<1x128xf32>
    %cst_514 = arith.constant 0.142857149 : f32
    %632 = vector.broadcast %cst_514 : f32 to vector<1x128xf32>
    %633 = arith.mulf %631, %632 : vector<1x128xf32>
    %c2 = arith.constant 2 : index
    %c0_515 = arith.constant 0 : index
    %634 = vector.load %arg3[%c2, %c0_515] : memref<8x128xf32, #tpu.memory_space<vmem>>, vector<1x128xf32>
    tpu.vector_store %arg3[%c2, %c0_515], %633 {strides = array<i32>} : memref<8x128xf32, #tpu.memory_space<vmem>>, vector<1x128xf32>,
    %c21 = arith.constant 21 : index
    %c0_516 = arith.constant 0 : index
    %635 = vector.load %arg4[%c21, %c0_516] : memref<56x128xf32, #tpu.memory_space<vmem>>, vector<7x128xf32>
    %cst_517 = arith.constant dense<0.000000e+00> : vector<128xf32>
    %636 = vector.multi_reduction <add>, %635, %cst_517 [0] : vector<7x128xf32> to vector<128xf32>
    %637 = vector.shape_cast %636 : vector<128xf32> to vector<1x128xf32>
    %cst_518 = arith.constant 0.142857149 : f32
    %638 = vector.broadcast %cst_518 : f32 to vector<1x128xf32>
    %639 = arith.mulf %637, %638 : vector<1x128xf32>
    %c3 = arith.constant 3 : index
    %c0_519 = arith.constant 0 : index
    %640 = vector.load %arg3[%c3, %c0_519] : memref<8x128xf32, #tpu.memory_space<vmem>>, vector<1x128xf32>
    tpu.vector_store %arg3[%c3, %c0_519], %639 {strides = array<i32>} : memref<8x128xf32, #tpu.memory_space<vmem>>, vector<1x128xf32>,
    %c28 = arith.constant 28 : index
    %c0_520 = arith.constant 0 : index
    %641 = vector.load %arg4[%c28, %c0_520] : memref<56x128xf32, #tpu.memory_space<vmem>>, vector<7x128xf32>
    %cst_521 = arith.constant dense<0.000000e+00> : vector<128xf32>
    %642 = vector.multi_reduction <add>, %641, %cst_521 [0] : vector<7x128xf32> to vector<128xf32>
    %643 = vector.shape_cast %642 : vector<128xf32> to vector<1x128xf32>
    %cst_522 = arith.constant 0.142857149 : f32
    %644 = vector.broadcast %cst_522 : f32 to vector<1x128xf32>
    %645 = arith.mulf %643, %644 : vector<1x128xf32>
    %c4 = arith.constant 4 : index
    %c0_523 = arith.constant 0 : index
    %646 = vector.load %arg3[%c4, %c0_523] : memref<8x128xf32, #tpu.memory_space<vmem>>, vector<1x128xf32>
    tpu.vector_store %arg3[%c4, %c0_523], %645 {strides = array<i32>} : memref<8x128xf32, #tpu.memory_space<vmem>>, vector<1x128xf32>,
    %c35 = arith.constant 35 : index
    %c0_524 = arith.constant 0 : index
    %647 = vector.load %arg4[%c35, %c0_524] : memref<56x128xf32, #tpu.memory_space<vmem>>, vector<7x128xf32>
    %cst_525 = arith.constant dense<0.000000e+00> : vector<128xf32>
    %648 = vector.multi_reduction <add>, %647, %cst_525 [0] : vector<7x128xf32> to vector<128xf32>
    %649 = vector.shape_cast %648 : vector<128xf32> to vector<1x128xf32>
    %cst_526 = arith.constant 0.142857149 : f32
    %650 = vector.broadcast %cst_526 : f32 to vector<1x128xf32>
    %651 = arith.mulf %649, %650 : vector<1x128xf32>
    %c5 = arith.constant 5 : index
    %c0_527 = arith.constant 0 : index
    %652 = vector.load %arg3[%c5, %c0_527] : memref<8x128xf32, #tpu.memory_space<vmem>>, vector<1x128xf32>
    tpu.vector_store %arg3[%c5, %c0_527], %651 {strides = array<i32>} : memref<8x128xf32, #tpu.memory_space<vmem>>, vector<1x128xf32>,
    %c42 = arith.constant 42 : index
    %c0_528 = arith.constant 0 : index
    %653 = vector.load %arg4[%c42, %c0_528] : memref<56x128xf32, #tpu.memory_space<vmem>>, vector<7x128xf32>
    %cst_529 = arith.constant dense<0.000000e+00> : vector<128xf32>
    %654 = vector.multi_reduction <add>, %653, %cst_529 [0] : vector<7x128xf32> to vector<128xf32>
    %655 = vector.shape_cast %654 : vector<128xf32> to vector<1x128xf32>
    %cst_530 = arith.constant 0.142857149 : f32
    %656 = vector.broadcast %cst_530 : f32 to vector<1x128xf32>
    %657 = arith.mulf %655, %656 : vector<1x128xf32>
    %c6 = arith.constant 6 : index
    %c0_531 = arith.constant 0 : index
    %658 = vector.load %arg3[%c6, %c0_531] : memref<8x128xf32, #tpu.memory_space<vmem>>, vector<1x128xf32>
    tpu.vector_store %arg3[%c6, %c0_531], %657 {strides = array<i32>} : memref<8x128xf32, #tpu.memory_space<vmem>>, vector<1x128xf32>,
    %c49 = arith.constant 49 : index
    %c0_532 = arith.constant 0 : index
    %659 = vector.load %arg4[%c49, %c0_532] : memref<56x128xf32, #tpu.memory_space<vmem>>, vector<7x128xf32>
    %cst_533 = arith.constant dense<0.000000e+00> : vector<128xf32>
    %660 = vector.multi_reduction <add>, %659, %cst_533 [0] : vector<7x128xf32> to vector<128xf32>
    %661 = vector.shape_cast %660 : vector<128xf32> to vector<1x128xf32>
    %cst_534 = arith.constant 0.142857149 : f32
    %662 = vector.broadcast %cst_534 : f32 to vector<1x128xf32>
    %663 = arith.mulf %661, %662 : vector<1x128xf32>
    %c7_535 = arith.constant 7 : index
    %c0_536 = arith.constant 0 : index
    %664 = vector.load %arg3[%c7_535, %c0_536] : memref<8x128xf32, #tpu.memory_space<vmem>>, vector<1x128xf32>
    tpu.vector_store %arg3[%c7_535, %c0_536], %663 {strides = array<i32>} : memref<8x128xf32, #tpu.memory_space<vmem>>, vector<1x128xf32>,
    return
  }
  func.func @transform_1(%arg0: i32, %arg1: memref<112xi32, #tpu.memory_space<smem>>) -> (i32, i32) {
    %c0_i32 = arith.constant 0 : i32
    %c0_i32_0 = arith.constant 0 : i32
    return %arg0, %c0_i32 : i32, i32
  }
}

</mosaic_0001>

<llo_original>
// kernel: embedding_unit_layer.1
$region0: #{embedding_unit_layer.1}
  #allocation0 [shape = 'u32[]', space=smem, size = 0x4, offset = 0x4, fixed_abs, tag = 'smem constant byte address 0x4 - core index']
  #allocation1 [shape = 'u32[144,128]{1,0:T(1,128)}', space=vmem, size = 0x12000, scoped, tag = 'internal scratch']
  #allocation2 [shape = 'f32[56,128]{1,0:T(8,128)}', space=vmem, size = 0x7000, scoped, tag = 'scratch operand']
  #allocation3 [shape = 's32[56]{0}', space=sflag, size = 0xe0, scoped, tag = 'scratch operand']
  #allocation4 [shape = 's32[1]{0}', space=sflag, size = 0x4, scoped, tag = 'scoped memory for embedding_unit_layer.1']
  #allocation5 [shape = 'u8[512]{0}', space=smem, size = 0x200, scoped, tag = 'prefetched SMEM operand 0']
  #allocation8 [shape = 's32[]', space=sflag, size = 0x4, offset = 0, fixed_abs, tag = 'sflag constant byte address 0x0 - dummy sync flag']
  #allocation9 [shape = 's32[]', space=sflag, size = 0x4, offset = 0, fixed_abs, tag = 'sflag constant byte address 0x0 - dummy sync flag']
  #allocation10 [shape = 'u32[]', space=smem, size = 0x4, offset = 0x44, fixed_abs, tag = 'smem constant byte address 0x44 - assertion arg 0']
  #allocation11 [shape = 'u32[]', space=smem, size = 0x4, offset = 0x48, fixed_abs, tag = 'smem constant byte address 0x48 - assertion arg 1']
  #allocation12 [shape = 's32[]', space=sflag, size = 0x4, offset = 0, fixed_abs, tag = 'sflag constant byte address 0x0 - dummy sync flag']
  #allocation13 [shape = 's32[]', space=sflag, size = 0x4, offset = 0, fixed_abs, tag = 'sflag constant byte address 0x0 - dummy sync flag']
  #allocation14 [shape = 's32[]', space=sflag, size = 0x4, offset = 0, fixed_abs, tag = 'sflag constant byte address 0x0 - dummy sync flag']
  #allocation15 [shape = 's32[]', space=sflag, size = 0x4, offset = 0, fixed_abs, tag = 'sflag constant byte address 0x0 - dummy sync flag']
  #allocation16 [shape = 's32[]', space=sflag, size = 0x4, offset = 0, fixed_abs, tag = 'sflag constant byte address 0x0 - dummy sync flag']
  #allocation17 [shape = 's32[]', space=sflag, size = 0x4, offset = 0, fixed_abs, tag = 'sflag constant byte address 0x0 - dummy sync flag']
  #allocation18 [shape = 's32[]', space=sflag, size = 0x4, offset = 0, fixed_abs, tag = 'sflag constant byte address 0x0 - dummy sync flag']
  #allocation19 [shape = 's32[]', space=sflag, size = 0x4, offset = 0, fixed_abs, tag = 'sflag constant byte address 0x0 - dummy sync flag']
  #allocation20 [shape = 's32[]', space=sflag, size = 0x4, offset = 0, fixed_abs, tag = 'sflag constant byte address 0x0 - dummy sync flag']
  #allocation21 [shape = 's32[]', space=sflag, size = 0x4, offset = 0, fixed_abs, tag = 'sflag constant byte address 0x0 - dummy sync flag']
  #allocation22 [shape = 's32[]', space=sflag, size = 0x4, offset = 0, fixed_abs, tag = 'sflag constant byte address 0x0 - dummy sync flag']
  #allocation23 [shape = 's32[]', space=sflag, size = 0x4, offset = 0, fixed_abs, tag = 'sflag constant byte address 0x0 - dummy sync flag']
  #allocation24 [shape = 's32[]', space=sflag, size = 0x4, offset = 0, fixed_abs, tag = 'sflag constant byte address 0x0 - dummy sync flag']
  #allocation25 [shape = 's32[]', space=sflag, size = 0x4, offset = 0, fixed_abs, tag = 'sflag constant byte address 0x0 - dummy sync flag']
  #allocation26 [shape = 's32[]', space=sflag, size = 0x4, offset = 0, fixed_abs, tag = 'sflag constant byte address 0x0 - dummy sync flag']
  #allocation27 [shape = 's32[]', space=sflag, size = 0x4, offset = 0, fixed_abs, tag = 'sflag constant byte address 0x0 - dummy sync flag']
  #allocation28 [shape = 's32[]', space=sflag, size = 0x4, offset = 0, fixed_abs, tag = 'sflag constant byte address 0x0 - dummy sync flag']
  #allocation29 [shape = 's32[]', space=sflag, size = 0x4, offset = 0, fixed_abs, tag = 'sflag constant byte address 0x0 - dummy sync flag']
  #allocation30 [shape = 's32[]', space=sflag, size = 0x4, offset = 0, fixed_abs, tag = 'sflag constant byte address 0x0 - dummy sync flag']
  #allocation31 [shape = 's32[]', space=sflag, size = 0x4, offset = 0, fixed_abs, tag = 'sflag constant byte address 0x0 - dummy sync flag']
  #allocation32 [shape = 's32[]', space=sflag, size = 0x4, offset = 0, fixed_abs, tag = 'sflag constant byte address 0x0 - dummy sync flag']
  #allocation33 [shape = 's32[]', space=sflag, size = 0x4, offset = 0, fixed_abs, tag = 'sflag constant byte address 0x0 - dummy sync flag']
  #allocation34 [shape = 's32[]', space=sflag, size = 0x4, offset = 0, fixed_abs, tag = 'sflag constant byte address 0x0 - dummy sync flag']
  #allocation35 [shape = 's32[]', space=sflag, size = 0x4, offset = 0, fixed_abs, tag = 'sflag constant byte address 0x0 - dummy sync flag']
  #allocation36 [shape = 's32[]', space=sflag, size = 0x4, offset = 0, fixed_abs, tag = 'sflag constant byte address 0x0 - dummy sync flag']
  #allocation37 [shape = 's32[]', space=sflag, size = 0x4, offset = 0, fixed_abs, tag = 'sflag constant byte address 0x0 - dummy sync flag']
  #allocation38 [shape = 's32[]', space=sflag, size = 0x4, offset = 0, fixed_abs, tag = 'sflag constant byte address 0x0 - dummy sync flag']
  #allocation39 [shape = 's32[]', space=sflag, size = 0x4, offset = 0, fixed_abs, tag = 'sflag constant byte address 0x0 - dummy sync flag']
  #allocation40 [shape = 's32[]', space=sflag, size = 0x4, offset = 0, fixed_abs, tag = 'sflag constant byte address 0x0 - dummy sync flag']
  #allocation41 [shape = 's32[]', space=sflag, size = 0x4, offset = 0, fixed_abs, tag = 'sflag constant byte address 0x0 - dummy sync flag']
  #allocation42 [shape = 's32[]', space=sflag, size = 0x4, offset = 0, fixed_abs, tag = 'sflag constant byte address 0x0 - dummy sync flag']
  #allocation43 [shape = 's32[]', space=sflag, size = 0x4, offset = 0, fixed_abs, tag = 'sflag constant byte address 0x0 - dummy sync flag']
  #allocation44 [shape = 's32[]', space=sflag, size = 0x4, offset = 0, fixed_abs, tag = 'sflag constant byte address 0x0 - dummy sync flag']
  #allocation45 [shape = 's32[]', space=sflag, size = 0x4, offset = 0, fixed_abs, tag = 'sflag constant byte address 0x0 - dummy sync flag']
  #allocation46 [shape = 's32[]', space=sflag, size = 0x4, offset = 0, fixed_abs, tag = 'sflag constant byte address 0x0 - dummy sync flag']
  #allocation47 [shape = 's32[]', space=sflag, size = 0x4, offset = 0, fixed_abs, tag = 'sflag constant byte address 0x0 - dummy sync flag']
  #allocation48 [shape = 's32[]', space=sflag, size = 0x4, offset = 0, fixed_abs, tag = 'sflag constant byte address 0x0 - dummy sync flag']
  #allocation49 [shape = 's32[]', space=sflag, size = 0x4, offset = 0, fixed_abs, tag = 'sflag constant byte address 0x0 - dummy sync flag']
  #allocation50 [shape = 's32[]', space=sflag, size = 0x4, offset = 0, fixed_abs, tag = 'sflag constant byte address 0x0 - dummy sync flag']
  #allocation51 [shape = 's32[]', space=sflag, size = 0x4, offset = 0, fixed_abs, tag = 'sflag constant byte address 0x0 - dummy sync flag']
  #allocation52 [shape = 's32[]', space=sflag, size = 0x4, offset = 0, fixed_abs, tag = 'sflag constant byte address 0x0 - dummy sync flag']
  #allocation53 [shape = 's32[]', space=sflag, size = 0x4, offset = 0, fixed_abs, tag = 'sflag constant byte address 0x0 - dummy sync flag']
  #allocation54 [shape = 's32[]', space=sflag, size = 0x4, offset = 0, fixed_abs, tag = 'sflag constant byte address 0x0 - dummy sync flag']
  #allocation55 [shape = 's32[]', space=sflag, size = 0x4, offset = 0, fixed_abs, tag = 'sflag constant byte address 0x0 - dummy sync flag']
  #allocation56 [shape = 's32[]', space=sflag, size = 0x4, offset = 0, fixed_abs, tag = 'sflag constant byte address 0x0 - dummy sync flag']
  #allocation57 [shape = 's32[]', space=sflag, size = 0x4, offset = 0, fixed_abs, tag = 'sflag constant byte address 0x0 - dummy sync flag']
  #allocation58 [shape = 's32[]', space=sflag, size = 0x4, offset = 0, fixed_abs, tag = 'sflag constant byte address 0x0 - dummy sync flag']
  #allocation59 [shape = 's32[]', space=sflag, size = 0x4, offset = 0, fixed_abs, tag = 'sflag constant byte address 0x0 - dummy sync flag']
  #allocation60 [shape = 's32[]', space=sflag, size = 0x4, offset = 0, fixed_abs, tag = 'sflag constant byte address 0x0 - dummy sync flag']
  #allocation61 [shape = 's32[]', space=sflag, size = 0x4, offset = 0, fixed_abs, tag = 'sflag constant byte address 0x0 - dummy sync flag']
  #allocation62 [shape = 's32[]', space=sflag, size = 0x4, offset = 0, fixed_abs, tag = 'sflag constant byte address 0x0 - dummy sync flag']
  #allocation63 [shape = 's32[]', space=sflag, size = 0x4, offset = 0, fixed_abs, tag = 'sflag constant byte address 0x0 - dummy sync flag']
  #allocation64 [shape = 's32[]', space=sflag, size = 0x4, offset = 0, fixed_abs, tag = 'sflag constant byte address 0x0 - dummy sync flag']
  #allocation65 [shape = 's32[]', space=sflag, size = 0x4, offset = 0, fixed_abs, tag = 'sflag constant byte address 0x0 - dummy sync flag']
  #allocation66 [shape = 's32[]', space=sflag, size = 0x4, offset = 0, fixed_abs, tag = 'sflag constant byte address 0x0 - dummy sync flag']
  #allocation67 [shape = 's32[]', space=sflag, size = 0x4, offset = 0, fixed_abs, tag = 'sflag constant byte address 0x0 - dummy sync flag']
  #allocation68 [shape = 's32[]', space=sflag, size = 0x4, offset = 0, fixed_abs, tag = 'sflag constant byte address 0x0 - dummy sync flag']
  #allocation69 [shape = 's32[]', space=sflag, size = 0x4, offset = 0, fixed_abs, tag = 'sflag constant byte address 0x0 - dummy sync flag']
  #allocation70 [shape = 's32[]', space=sflag, size = 0x4, offset = 0, fixed_abs, tag = 'sflag constant byte address 0x0 - dummy sync flag']
  #allocation71 [shape = 's32[]', space=sflag, size = 0x4, offset = 0, fixed_abs, tag = 'sflag constant byte address 0x0 - dummy sync flag']
  #allocation72 [shape = 's32[]', space=sflag, size = 0x4, offset = 0, fixed_abs, tag = 'sflag constant byte address 0x0 - dummy sync flag']
  #allocation73 [shape = 's32[]', space=sflag, size = 0x4, offset = 0, fixed_abs, tag = 'sflag constant byte address 0x0 - dummy sync flag']
  #allocation74 [shape = 's32[]', space=sflag, size = 0x4, offset = 0, fixed_abs, tag = 'sflag constant byte address 0x0 - dummy sync flag']
  #allocation75 [shape = 's32[]', space=sflag, size = 0x4, offset = 0, fixed_abs, tag = 'sflag constant byte address 0x0 - dummy sync flag']
  #allocation76 [shape = 's32[]', space=sflag, size = 0x4, offset = 0, fixed_abs, tag = 'sflag constant byte address 0x0 - dummy sync flag']
  #allocation77 [shape = 's32[]', space=sflag, size = 0x4, offset = 0, fixed_abs, tag = 'sflag constant byte address 0x0 - dummy sync flag']
  #allocation78 [shape = 's32[]', space=sflag, size = 0x4, offset = 0, fixed_abs, tag = 'sflag constant byte address 0x0 - dummy sync flag']
  #allocation79 [shape = 's32[]', space=sflag, size = 0x4, offset = 0, fixed_abs, tag = 'sflag constant byte address 0x0 - dummy sync flag']
  #allocation80 [shape = 's32[]', space=sflag, size = 0x4, offset = 0, fixed_abs, tag = 'sflag constant byte address 0x0 - dummy sync flag']
  #allocation81 [shape = 's32[]', space=sflag, size = 0x4, offset = 0, fixed_abs, tag = 'sflag constant byte address 0x0 - dummy sync flag']
  #allocation82 [shape = 's32[]', space=sflag, size = 0x4, offset = 0, fixed_abs, tag = 'sflag constant byte address 0x0 - dummy sync flag']
  #allocation83 [shape = 's32[]', space=sflag, size = 0x4, offset = 0, fixed_abs, tag = 'sflag constant byte address 0x0 - dummy sync flag']
  #allocation84 [shape = 's32[]', space=sflag, size = 0x4, offset = 0, fixed_abs, tag = 'sflag constant byte address 0x0 - dummy sync flag']
  #allocation85 [shape = 's32[]', space=sflag, size = 0x4, offset = 0, fixed_abs, tag = 'sflag constant byte address 0x0 - dummy sync flag']
  #allocation86 [shape = 's32[]', space=sflag, size = 0x4, offset = 0, fixed_abs, tag = 'sflag constant byte address 0x0 - dummy sync flag']
  #allocation87 [shape = 's32[]', space=sflag, size = 0x4, offset = 0, fixed_abs, tag = 'sflag constant byte address 0x0 - dummy sync flag']
  #allocation88 [shape = 's32[]', space=sflag, size = 0x4, offset = 0, fixed_abs, tag = 'sflag constant byte address 0x0 - dummy sync flag']
  #allocation89 [shape = 's32[]', space=sflag, size = 0x4, offset = 0, fixed_abs, tag = 'sflag constant byte address 0x0 - dummy sync flag']
  #allocation90 [shape = 's32[]', space=sflag, size = 0x4, offset = 0, fixed_abs, tag = 'sflag constant byte address 0x0 - dummy sync flag']
  #allocation91 [shape = 's32[]', space=sflag, size = 0x4, offset = 0, fixed_abs, tag = 'sflag constant byte address 0x0 - dummy sync flag']
  #allocation92 [shape = 's32[]', space=sflag, size = 0x4, offset = 0, fixed_abs, tag = 'sflag constant byte address 0x0 - dummy sync flag']
  #allocation93 [shape = 's32[]', space=sflag, size = 0x4, offset = 0, fixed_abs, tag = 'sflag constant byte address 0x0 - dummy sync flag']
  #allocation94 [shape = 's32[]', space=sflag, size = 0x4, offset = 0, fixed_abs, tag = 'sflag constant byte address 0x0 - dummy sync flag']
  #allocation95 [shape = 's32[]', space=sflag, size = 0x4, offset = 0, fixed_abs, tag = 'sflag constant byte address 0x0 - dummy sync flag']
  #allocation96 [shape = 's32[]', space=sflag, size = 0x4, offset = 0, fixed_abs, tag = 'sflag constant byte address 0x0 - dummy sync flag']
  #allocation97 [shape = 's32[]', space=sflag, size = 0x4, offset = 0, fixed_abs, tag = 'sflag constant byte address 0x0 - dummy sync flag']
  #allocation98 [shape = 's32[]', space=sflag, size = 0x4, offset = 0, fixed_abs, tag = 'sflag constant byte address 0x0 - dummy sync flag']
  #allocation99 [shape = 's32[]', space=sflag, size = 0x4, offset = 0, fixed_abs, tag = 'sflag constant byte address 0x0 - dummy sync flag']
  #allocation100 [shape = 's32[]', space=sflag, size = 0x4, offset = 0, fixed_abs, tag = 'sflag constant byte address 0x0 - dummy sync flag']
  #allocation101 [shape = 's32[]', space=sflag, size = 0x4, offset = 0, fixed_abs, tag = 'sflag constant byte address 0x0 - dummy sync flag']
  #allocation102 [shape = 's32[]', space=sflag, size = 0x4, offset = 0, fixed_abs, tag = 'sflag constant byte address 0x0 - dummy sync flag']
  #allocation103 [shape = 's32[]', space=sflag, size = 0x4, offset = 0, fixed_abs, tag = 'sflag constant byte address 0x0 - dummy sync flag']
  #allocation104 [shape = 's32[]', space=sflag, size = 0x4, offset = 0, fixed_abs, tag = 'sflag constant byte address 0x0 - dummy sync flag']
  #allocation105 [shape = 's32[]', space=sflag, size = 0x4, offset = 0, fixed_abs, tag = 'sflag constant byte address 0x0 - dummy sync flag']
  #allocation106 [shape = 's32[]', space=sflag, size = 0x4, offset = 0, fixed_abs, tag = 'sflag constant byte address 0x0 - dummy sync flag']
  #allocation107 [shape = 's32[]', space=sflag, size = 0x4, offset = 0, fixed_abs, tag = 'sflag constant byte address 0x0 - dummy sync flag']
  #allocation108 [shape = 's32[]', space=sflag, size = 0x4, offset = 0, fixed_abs, tag = 'sflag constant byte address 0x0 - dummy sync flag']
  #allocation109 [shape = 's32[]', space=sflag, size = 0x4, offset = 0, fixed_abs, tag = 'sflag constant byte address 0x0 - dummy sync flag']
  #allocation110 [shape = 's32[]', space=sflag, size = 0x4, offset = 0, fixed_abs, tag = 'sflag constant byte address 0x0 - dummy sync flag']
  #allocation111 [shape = 's32[]', space=sflag, size = 0x4, offset = 0, fixed_abs, tag = 'sflag constant byte address 0x0 - dummy sync flag']
  #allocation112 [shape = 's32[]', space=sflag, size = 0x4, offset = 0, fixed_abs, tag = 'sflag constant byte address 0x0 - dummy sync flag']
  #allocation113 [shape = 's32[]', space=sflag, size = 0x4, offset = 0, fixed_abs, tag = 'sflag constant byte address 0x0 - dummy sync flag']
  #allocation114 [shape = 's32[]', space=sflag, size = 0x4, offset = 0, fixed_abs, tag = 'sflag constant byte address 0x0 - dummy sync flag']
  #allocation115 [shape = 's32[]', space=sflag, size = 0x4, offset = 0, fixed_abs, tag = 'sflag constant byte address 0x0 - dummy sync flag']
  #allocation116 [shape = 's32[]', space=sflag, size = 0x4, offset = 0, fixed_abs, tag = 'sflag constant byte address 0x0 - dummy sync flag']
  #allocation117 [shape = 's32[]', space=sflag, size = 0x4, offset = 0, fixed_abs, tag = 'sflag constant byte address 0x0 - dummy sync flag']
  #allocation118 [shape = 's32[]', space=sflag, size = 0x4, offset = 0, fixed_abs, tag = 'sflag constant byte address 0x0 - dummy sync flag']
  #allocation119 [shape = 's32[]', space=sflag, size = 0x4, offset = 0, fixed_abs, tag = 'sflag constant byte address 0x0 - dummy sync flag']
  #allocation120 [shape = 's32[]', space=sflag, size = 0x4, offset = 0, fixed_abs, tag = 'sflag constant byte address 0x0 - dummy sync flag']
  #allocation121 [shape = 's32[]', space=sflag, size = 0x4, offset = 0, fixed_abs, tag = 'sflag constant byte address 0x0 - dummy sync flag']
  %s0 = inlined_call_operand.vmem [shape: s32[112], index: 0, kind: input, shape index: {}]
  %s1 = inlined_call_operand.hbm [shape: f32[512,128], index: 1, kind: input, shape index: {}]
  %s2 = inlined_call_operand.hbm [shape: f32[16,128], index: 2, kind: output, shape index: {}]
  %s3 = sld [smem:[#allocation0]]
  $region249: #{embedding_unit_layer.1} parent=0
    _
  %s5 = ssub.s32 1, %s3
  %s6 = scalar_select 0, %s5, %s3
  %s7 = sshll.u32 %s0, 4
  %s8 = int_to_ptr.vmem [resolvable:$true] %s7
  %10 = dma.vmem_to_smem %s8, 16, [#allocation5], [#allocation4]
  %11 = dma.done [#allocation4], 16
  %12 = sfence
  $region1: #{embedding_unit_layer.1} parent=0
    #allocation6 [shape = 'u8[8192]{0}', space=vmem, size = 0x2000, scoped, tag = 'output window, operand 0']
    #allocation7 [shape = 's32[2]{0}', space=sflag, size = 0x8, scoped, tag = 'scoped memory for embedding_unit_layer.1']
    %13 = vsyncpa [#allocation7], 0
    %s14 = scalar_lea.sflag [#allocation7], 1
    %15 = vsyncpa %s14, 0
    loop: start=0, step=1, limit=3
    $region2: #{embedding_unit_layer.1} parent=1 // loop_pre_header
      _
    $region3: #{embedding_unit_layer.1} parent=1 // loop_header
      %s17 = sphi 0, %s21
      %p18 = scmp.ge.s32.totalorder %s17, 3
      %s26 = sphi 0, %s28
      %s29 = sphi 0, %s26
      %s39 = sphi 0, %s29
    $region4: #{embedding_unit_layer.1} parent=1 // loop_header_branch
      %20 = sbr.rel (%p18) target = $region8
    $region5: #{embedding_unit_layer.1} parent=1 // loop_body
      %s22 = ssub.s32 %s17, 1
      %s23 = sadd.s32 %s17, 1
      %s24 = ssub.s32 %s17, %s23
      %p25 = scmp.eq.s32.totalorder %s24, 0
      %s27 = sadd.s32 %s26, 1
      %s28 = scalar_select %p25, %s26, %s27
      %p30 = pneg %p25
      %p31 = scmp.eq.s32.totalorder %s17, 1
      %p32 = por %p30, %p31
      %p33 = scmp.ne.s32.totalorder %s26, %s29
      %p34 = scmp.eq.s32.totalorder %s17, 0
      %p35 = por %p33, %p34
      %p36 = scmp.ne.s32.totalorder %s26, %s29
      %p37 = scmp.eq.s32.totalorder %s22, 1
      %p38 = por %p36, %p37
      %p40 = scmp.ne.s32.totalorder %s29, %s39
      %p41 = scmp.eq.s32.totalorder %s22, 0
      %p42 = por %p40, %p41
      %p43 = scmp.lt.s32.totalorder %s17, 2
      // Predicated region
      $region9: #{embedding_unit_layer.1} parent=5 // pred_check
        %p44 = pneg %p43
      $region10: #{embedding_unit_layer.1} parent=5 // pred_check_branch
        %46 = sbr.rel (%p44) target = $region12
      $region11: #{embedding_unit_layer.1} parent=5 // pred_region
        %p47 = pneg %p35
        %p48 = pneg %p32
        %s49 = sand.u32 %s26, 1
        %s50 = scalar_lea.sflag [#allocation7], %s49
        %s51 = sand.u32 %s26, 1
        %s52 = smul.addr %s51, 8
        %s53 = scalar_lea.vmem [#allocation6], %s52
        %s54 = smul.u32 %s17, 56
        %s55 = sld [smem:[#allocation5 + %s54]]
        %s56 = smul.addr %s55, 16
        %s57 = scalar_lea.hbm %s1, %s56
        // Predicated region
        $region13: #{embedding_unit_layer.1} parent=11 // pred_check
          _
        $region14: #{embedding_unit_layer.1} parent=11 // pred_check_branch
          %59 = sbr.rel target = $region16
        $region15: #{embedding_unit_layer.1} parent=11 // pred_region
          %60 = sst [smem:[#allocation10]] [#allocation9]
          %61 = sst [smem:[#allocation11]] [#allocation8]
        $region16: #{embedding_unit_layer.1} parent=11 // pred_fallthru
          _
        %63 = shalt.err (0)
        %s65 = sshll.u32 [#allocation2], 4
        %s66 = int_to_ptr.vmem [resolvable:$true] %s65
        %68 = dma.hbm_to_vmem [thread:$0]  %s57, 16, %s66, [#allocation3]
        %s69 = sadd.s32 %s54, 1
        %s70 = sld [smem:[#allocation5 + %s69]]
        %s71 = smul.addr %s70, 16
        %s72 = scalar_lea.hbm %s1, %s71
        %s73 = scalar_lea.vmem [#allocation2], 1
        %s74 = scalar_lea.sflag [#allocation3], 1
        // Predicated region
        $region17: #{embedding_unit_layer.1} parent=11 // pred_check
          _
        $region18: #{embedding_unit_layer.1} parent=11 // pred_check_branch
          %76 = sbr.rel target = $region20
        $region19: #{embedding_unit_layer.1} parent=11 // pred_region
          %77 = sst [smem:[#allocation10]] [#allocation13]
          %78 = sst [smem:[#allocation11]] [#allocation12]
        $region20: #{embedding_unit_layer.1} parent=11 // pred_fallthru
          _
        %80 = shalt.err (0)
        %s82 = sshll.u32 %s73, 4
        %s83 = int_to_ptr.vmem [resolvable:$true] %s82
        %85 = dma.hbm_to_vmem [thread:$0]  %s72, 16, %s83, %s74
        %s86 = sadd.s32 %s54, 2
        %s87 = sld [smem:[#allocation5 + %s86]]
        %s88 = smul.addr %s87, 16
        %s89 = scalar_lea.hbm %s1, %s88
        %s90 = scalar_lea.vmem [#allocation2], 2
        %s91 = scalar_lea.sflag [#allocation3], 2
        // Predicated region
        $region21: #{embedding_unit_layer.1} parent=11 // pred_check
          _
        $region22: #{embedding_unit_layer.1} parent=11 // pred_check_branch
          %93 = sbr.rel target = $region24
        $region23: #{embedding_unit_layer.1} parent=11 // pred_region
          %94 = sst [smem:[#allocation10]] [#allocation15]
          %95 = sst [smem:[#allocation11]] [#allocation14]
        $region24: #{embedding_unit_layer.1} parent=11 // pred_fallthru
          _
        %97 = shalt.err (0)
        %s99 = sshll.u32 %s90, 4
        %s100 = int_to_ptr.vmem [resolvable:$true] %s99
        %102 = dma.hbm_to_vmem [thread:$0]  %s89, 16, %s100, %s91
        %s103 = sadd.s32 %s54, 3
        %s104 = sld [smem:[#allocation5 + %s103]]
        %s105 = smul.addr %s104, 16
        %s106 = scalar_lea.hbm %s1, %s105
        %s107 = scalar_lea.vmem [#allocation2], 3
        %s108 = scalar_lea.sflag [#allocation3], 3
        // Predicated region
        $region25: #{embedding_unit_layer.1} parent=11 // pred_check
          _
        $region26: #{embedding_unit_layer.1} parent=11 // pred_check_branch
          %110 = sbr.rel target = $region28
        $region27: #{embedding_unit_layer.1} parent=11 // pred_region
          %111 = sst [smem:[#allocation10]] [#allocation17]
          %112 = sst [smem:[#allocation11]] [#allocation16]
        $region28: #{embedding_unit_layer.1} parent=11 // pred_fallthru
          _
        %114 = shalt.err (0)
        %s116 = sshll.u32 %s107, 4
        %s117 = int_to_ptr.vmem [resolvable:$true] %s116
        %119 = dma.hbm_to_vmem [thread:$0]  %s106, 16, %s117, %s108
        %s120 = sadd.s32 %s54, 4
        %s121 = sld [smem:[#allocation5 + %s120]]
        %s122 = smul.addr %s121, 16
        %s123 = scalar_lea.hbm %s1, %s122
        %s124 = scalar_lea.vmem [#allocation2], 4
        %s125 = scalar_lea.sflag [#allocation3], 4
        // Predicated region
        $region29: #{embedding_unit_layer.1} parent=11 // pred_check
          _
        $region30: #{embedding_unit_layer.1} parent=11 // pred_check_branch
          %127 = sbr.rel target = $region32
        $region31: #{embedding_unit_layer.1} parent=11 // pred_region
          %128 = sst [smem:[#allocation10]] [#allocation19]
          %129 = sst [smem:[#allocation11]] [#allocation18]
        $region32: #{embedding_unit_layer.1} parent=11 // pred_fallthru
          _
        %131 = shalt.err (0)
        %s133 = sshll.u32 %s124, 4
        %s134 = int_to_ptr.vmem [resolvable:$true] %s133
        %136 = dma.hbm_to_vmem [thread:$0]  %s123, 16, %s134, %s125
        %s137 = sadd.s32 %s54, 5
        %s138 = sld [smem:[#allocation5 + %s137]]
        %s139 = smul.addr %s138, 16
        %s140 = scalar_lea.hbm %s1, %s139
        %s141 = scalar_lea.vmem [#allocation2], 5
        %s142 = scalar_lea.sflag [#allocation3], 5
        // Predicated region
        $region33: #{embedding_unit_layer.1} parent=11 // pred_check
          _
        $region34: #{embedding_unit_layer.1} parent=11 // pred_check_branch
          %144 = sbr.rel target = $region36
        $region35: #{embedding_unit_layer.1} parent=11 // pred_region
          %145 = sst [smem:[#allocation10]] [#allocation21]
          %146 = sst [smem:[#allocation11]] [#allocation20]
        $region36: #{embedding_unit_layer.1} parent=11 // pred_fallthru
          _
        %148 = shalt.err (0)
        %s150 = sshll.u32 %s141, 4
        %s151 = int_to_ptr.vmem [resolvable:$true] %s150
        %153 = dma.hbm_to_vmem [thread:$0]  %s140, 16, %s151, %s142
        %s154 = sadd.s32 %s54, 6
        %s155 = sld [smem:[#allocation5 + %s154]]
        %s156 = smul.addr %s155, 16
        %s157 = scalar_lea.hbm %s1, %s156
        %s158 = scalar_lea.vmem [#allocation2], 6
        %s159 = scalar_lea.sflag [#allocation3], 6
        // Predicated region
        $region37: #{embedding_unit_layer.1} parent=11 // pred_check
          _
        $region38: #{embedding_unit_layer.1} parent=11 // pred_check_branch
          %161 = sbr.rel target = $region40
        $region39: #{embedding_unit_layer.1} parent=11 // pred_region
          %162 = sst [smem:[#allocation10]] [#allocation23]
          %163 = sst [smem:[#allocation11]] [#allocation22]
        $region40: #{embedding_unit_layer.1} parent=11 // pred_fallthru
          _
        %165 = shalt.err (0)
        %s167 = sshll.u32 %s158, 4
        %s168 = int_to_ptr.vmem [resolvable:$true] %s167
        %170 = dma.hbm_to_vmem [thread:$0]  %s157, 16, %s168, %s159
        %s171 = sadd.s32 %s54, 7
        %s172 = sld [smem:[#allocation5 + %s171]]
        %s173 = smul.addr %s172, 16
        %s174 = scalar_lea.hbm %s1, %s173
        %s175 = scalar_lea.vmem [#allocation2], 7
        %s176 = scalar_lea.sflag [#allocation3], 7
        // Predicated region
        $region41: #{embedding_unit_layer.1} parent=11 // pred_check
          _
        $region42: #{embedding_unit_layer.1} parent=11 // pred_check_branch
          %178 = sbr.rel target = $region44
        $region43: #{embedding_unit_layer.1} parent=11 // pred_region
          %179 = sst [smem:[#allocation10]] [#allocation25]
          %180 = sst [smem:[#allocation11]] [#allocation24]
        $region44: #{embedding_unit_layer.1} parent=11 // pred_fallthru
          _
        %182 = shalt.err (0)
        %s184 = sshll.u32 %s175, 4
        %s185 = int_to_ptr.vmem [resolvable:$true] %s184
        %187 = dma.hbm_to_vmem [thread:$0]  %s174, 16, %s185, %s176
        %s188 = sadd.s32 %s54, 8
        %s189 = sld [smem:[#allocation5 + %s188]]
        %s190 = smul.addr %s189, 16
        %s191 = scalar_lea.hbm %s1, %s190
        %s192 = scalar_lea.vmem [#allocation2], 8
        %s193 = scalar_lea.sflag [#allocation3], 8
        // Predicated region
        $region45: #{embedding_unit_layer.1} parent=11 // pred_check
          _
        $region46: #{embedding_unit_layer.1} parent=11 // pred_check_branch
          %195 = sbr.rel target = $region48
        $region47: #{embedding_unit_layer.1} parent=11 // pred_region
          %196 = sst [smem:[#allocation10]] [#allocation27]
          %197 = sst [smem:[#allocation11]] [#allocation26]
        $region48: #{embedding_unit_layer.1} parent=11 // pred_fallthru
          _
        %199 = shalt.err (0)
        %s201 = sshll.u32 %s192, 4
        %s202 = int_to_ptr.vmem [resolvable:$true] %s201
        %204 = dma.hbm_to_vmem [thread:$0]  %s191, 16, %s202, %s193
        %s205 = sadd.s32 %s54, 9
        %s206 = sld [smem:[#allocation5 + %s205]]
        %s207 = smul.addr %s206, 16
        %s208 = scalar_lea.hbm %s1, %s207
        %s209 = scalar_lea.vmem [#allocation2], 9
        %s210 = scalar_lea.sflag [#allocation3], 9
        // Predicated region
        $region49: #{embedding_unit_layer.1} parent=11 // pred_check
          _
        $region50: #{embedding_unit_layer.1} parent=11 // pred_check_branch
          %212 = sbr.rel target = $region52
        $region51: #{embedding_unit_layer.1} parent=11 // pred_region
          %213 = sst [smem:[#allocation10]] [#allocation29]
          %214 = sst [smem:[#allocation11]] [#allocation28]
        $region52: #{embedding_unit_layer.1} parent=11 // pred_fallthru
          _
        %216 = shalt.err (0)
        %s218 = sshll.u32 %s209, 4
        %s219 = int_to_ptr.vmem [resolvable:$true] %s218
        %221 = dma.hbm_to_vmem [thread:$0]  %s208, 16, %s219, %s210
        %s222 = sadd.s32 %s54, 10
        %s223 = sld [smem:[#allocation5 + %s222]]
        %s224 = smul.addr %s223, 16
        %s225 = scalar_lea.hbm %s1, %s224
        %s226 = scalar_lea.vmem [#allocation2], 10
        %s227 = scalar_lea.sflag [#allocation3], 10
        // Predicated region
        $region53: #{embedding_unit_layer.1} parent=11 // pred_check
          _
        $region54: #{embedding_unit_layer.1} parent=11 // pred_check_branch
          %229 = sbr.rel target = $region56
        $region55: #{embedding_unit_layer.1} parent=11 // pred_region
          %230 = sst [smem:[#allocation10]] [#allocation31]
          %231 = sst [smem:[#allocation11]] [#allocation30]
        $region56: #{embedding_unit_layer.1} parent=11 // pred_fallthru
          _
        %233 = shalt.err (0)
        %s235 = sshll.u32 %s226, 4
        %s236 = int_to_ptr.vmem [resolvable:$true] %s235
        %238 = dma.hbm_to_vmem [thread:$0]  %s225, 16, %s236, %s227
        %s239 = sadd.s32 %s54, 11
        %s240 = sld [smem:[#allocation5 + %s239]]
        %s241 = smul.addr %s240, 16
        %s242 = scalar_lea.hbm %s1, %s241
        %s243 = scalar_lea.vmem [#allocation2], 11
        %s244 = scalar_lea.sflag [#allocation3], 11
        // Predicated region
        $region57: #{embedding_unit_layer.1} parent=11 // pred_check
          _
        $region58: #{embedding_unit_layer.1} parent=11 // pred_check_branch
          %246 = sbr.rel target = $region60
        $region59: #{embedding_unit_layer.1} parent=11 // pred_region
          %247 = sst [smem:[#allocation10]] [#allocation33]
          %248 = sst [smem:[#allocation11]] [#allocation32]
        $region60: #{embedding_unit_layer.1} parent=11 // pred_fallthru
          _
        %250 = shalt.err (0)
        %s252 = sshll.u32 %s243, 4
        %s253 = int_to_ptr.vmem [resolvable:$true] %s252
        %255 = dma.hbm_to_vmem [thread:$0]  %s242, 16, %s253, %s244
        %s256 = sadd.s32 %s54, 12
        %s257 = sld [smem:[#allocation5 + %s256]]
        %s258 = smul.addr %s257, 16
        %s259 = scalar_lea.hbm %s1, %s258
        %s260 = scalar_lea.vmem [#allocation2], 12
        %s261 = scalar_lea.sflag [#allocation3], 12
        // Predicated region
        $region61: #{embedding_unit_layer.1} parent=11 // pred_check
          _
        $region62: #{embedding_unit_layer.1} parent=11 // pred_check_branch
          %263 = sbr.rel target = $region64
        $region63: #{embedding_unit_layer.1} parent=11 // pred_region
          %264 = sst [smem:[#allocation10]] [#allocation35]
          %265 = sst [smem:[#allocation11]] [#allocation34]
        $region64: #{embedding_unit_layer.1} parent=11 // pred_fallthru
          _
        %267 = shalt.err (0)
        %s269 = sshll.u32 %s260, 4
        %s270 = int_to_ptr.vmem [resolvable:$true] %s269
        %272 = dma.hbm_to_vmem [thread:$0]  %s259, 16, %s270, %s261
        %s273 = sadd.s32 %s54, 13
        %s274 = sld [smem:[#allocation5 + %s273]]
        %s275 = smul.addr %s274, 16
        %s276 = scalar_lea.hbm %s1, %s275
        %s277 = scalar_lea.vmem [#allocation2], 13
        %s278 = scalar_lea.sflag [#allocation3], 13
        // Predicated region
        $region65: #{embedding_unit_layer.1} parent=11 // pred_check
          _
        $region66: #{embedding_unit_layer.1} parent=11 // pred_check_branch
          %280 = sbr.rel target = $region68
        $region67: #{embedding_unit_layer.1} parent=11 // pred_region
          %281 = sst [smem:[#allocation10]] [#allocation37]
          %282 = sst [smem:[#allocation11]] [#allocation36]
        $region68: #{embedding_unit_layer.1} parent=11 // pred_fallthru
          _
        %284 = shalt.err (0)
        %s286 = sshll.u32 %s277, 4
        %s287 = int_to_ptr.vmem [resolvable:$true] %s286
        %289 = dma.hbm_to_vmem [thread:$0]  %s276, 16, %s287, %s278
        %s290 = sadd.s32 %s54, 14
        %s291 = sld [smem:[#allocation5 + %s290]]
        %s292 = smul.addr %s291, 16
        %s293 = scalar_lea.hbm %s1, %s292
        %s294 = scalar_lea.vmem [#allocation2], 14
        %s295 = scalar_lea.sflag [#allocation3], 14
        // Predicated region
        $region69: #{embedding_unit_layer.1} parent=11 // pred_check
          _
        $region70: #{embedding_unit_layer.1} parent=11 // pred_check_branch
          %297 = sbr.rel target = $region72
        $region71: #{embedding_unit_layer.1} parent=11 // pred_region
          %298 = sst [smem:[#allocation10]] [#allocation39]
          %299 = sst [smem:[#allocation11]] [#allocation38]
        $region72: #{embedding_unit_layer.1} parent=11 // pred_fallthru
          _
        %301 = shalt.err (0)
        %s303 = sshll.u32 %s294, 4
        %s304 = int_to_ptr.vmem [resolvable:$true] %s303
        %306 = dma.hbm_to_vmem [thread:$0]  %s293, 16, %s304, %s295
        %s307 = sadd.s32 %s54, 15
        %s308 = sld [smem:[#allocation5 + %s307]]
        %s309 = smul.addr %s308, 16
        %s310 = scalar_lea.hbm %s1, %s309
        %s311 = scalar_lea.vmem [#allocation2], 15
        %s312 = scalar_lea.sflag [#allocation3], 15
        // Predicated region
        $region73: #{embedding_unit_layer.1} parent=11 // pred_check
          _
        $region74: #{embedding_unit_layer.1} parent=11 // pred_check_branch
          %314 = sbr.rel target = $region76
        $region75: #{embedding_unit_layer.1} parent=11 // pred_region
          %315 = sst [smem:[#allocation10]] [#allocation41]
          %316 = sst [smem:[#allocation11]] [#allocation40]
        $region76: #{embedding_unit_layer.1} parent=11 // pred_fallthru
          _
        %318 = shalt.err (0)
        %s320 = sshll.u32 %s311, 4
        %s321 = int_to_ptr.vmem [resolvable:$true] %s320
        %323 = dma.hbm_to_vmem [thread:$0]  %s310, 16, %s321, %s312
        %s324 = sadd.s32 %s54, 16
        %s325 = sld [smem:[#allocation5 + %s324]]
        %s326 = smul.addr %s325, 16
        %s327 = scalar_lea.hbm %s1, %s326
        %s328 = scalar_lea.vmem [#allocation2], 16
        %s329 = scalar_lea.sflag [#allocation3], 16
        // Predicated region
        $region77: #{embedding_unit_layer.1} parent=11 // pred_check
          _
        $region78: #{embedding_unit_layer.1} parent=11 // pred_check_branch
          %331 = sbr.rel target = $region80
        $region79: #{embedding_unit_layer.1} parent=11 // pred_region
          %332 = sst [smem:[#allocation10]] [#allocation43]
          %333 = sst [smem:[#allocation11]] [#allocation42]
        $region80: #{embedding_unit_layer.1} parent=11 // pred_fallthru
          _
        %335 = shalt.err (0)
        %s337 = sshll.u32 %s328, 4
        %s338 = int_to_ptr.vmem [resolvable:$true] %s337
        %340 = dma.hbm_to_vmem [thread:$0]  %s327, 16, %s338, %s329
        %s341 = sadd.s32 %s54, 17
        %s342 = sld [smem:[#allocation5 + %s341]]
        %s343 = smul.addr %s342, 16
        %s344 = scalar_lea.hbm %s1, %s343
        %s345 = scalar_lea.vmem [#allocation2], 17
        %s346 = scalar_lea.sflag [#allocation3], 17
        // Predicated region
        $region81: #{embedding_unit_layer.1} parent=11 // pred_check
          _
        $region82: #{embedding_unit_layer.1} parent=11 // pred_check_branch
          %348 = sbr.rel target = $region84
        $region83: #{embedding_unit_layer.1} parent=11 // pred_region
          %349 = sst [smem:[#allocation10]] [#allocation45]
          %350 = sst [smem:[#allocation11]] [#allocation44]
        $region84: #{embedding_unit_layer.1} parent=11 // pred_fallthru
          _
        %352 = shalt.err (0)
        %s354 = sshll.u32 %s345, 4
        %s355 = int_to_ptr.vmem [resolvable:$true] %s354
        %357 = dma.hbm_to_vmem [thread:$0]  %s344, 16, %s355, %s346
        %s358 = sadd.s32 %s54, 18
        %s359 = sld [smem:[#allocation5 + %s358]]
        %s360 = smul.addr %s359, 16
        %s361 = scalar_lea.hbm %s1, %s360
        %s362 = scalar_lea.vmem [#allocation2], 18
        %s363 = scalar_lea.sflag [#allocation3], 18
        // Predicated region
        $region85: #{embedding_unit_layer.1} parent=11 // pred_check
          _
        $region86: #{embedding_unit_layer.1} parent=11 // pred_check_branch
          %365 = sbr.rel target = $region88
        $region87: #{embedding_unit_layer.1} parent=11 // pred_region
          %366 = sst [smem:[#allocation10]] [#allocation47]
          %367 = sst [smem:[#allocation11]] [#allocation46]
        $region88: #{embedding_unit_layer.1} parent=11 // pred_fallthru
          _
        %369 = shalt.err (0)
        %s371 = sshll.u32 %s362, 4
        %s372 = int_to_ptr.vmem [resolvable:$true] %s371
        %374 = dma.hbm_to_vmem [thread:$0]  %s361, 16, %s372, %s363
        %s375 = sadd.s32 %s54, 19
        %s376 = sld [smem:[#allocation5 + %s375]]
        %s377 = smul.addr %s376, 16
        %s378 = scalar_lea.hbm %s1, %s377
        %s379 = scalar_lea.vmem [#allocation2], 19
        %s380 = scalar_lea.sflag [#allocation3], 19
        // Predicated region
        $region89: #{embedding_unit_layer.1} parent=11 // pred_check
          _
        $region90: #{embedding_unit_layer.1} parent=11 // pred_check_branch
          %382 = sbr.rel target = $region92
        $region91: #{embedding_unit_layer.1} parent=11 // pred_region
          %383 = sst [smem:[#allocation10]] [#allocation49]
          %384 = sst [smem:[#allocation11]] [#allocation48]
        $region92: #{embedding_unit_layer.1} parent=11 // pred_fallthru
          _
        %386 = shalt.err (0)
        %s388 = sshll.u32 %s379, 4
        %s389 = int_to_ptr.vmem [resolvable:$true] %s388
        %391 = dma.hbm_to_vmem [thread:$0]  %s378, 16, %s389, %s380
        %s392 = sadd.s32 %s54, 20
        %s393 = sld [smem:[#allocation5 + %s392]]
        %s394 = smul.addr %s393, 16
        %s395 = scalar_lea.hbm %s1, %s394
        %s396 = scalar_lea.vmem [#allocation2], 20
        %s397 = scalar_lea.sflag [#allocation3], 20
        // Predicated region
        $region93: #{embedding_unit_layer.1} parent=11 // pred_check
          _
        $region94: #{embedding_unit_layer.1} parent=11 // pred_check_branch
          %399 = sbr.rel target = $region96
        $region95: #{embedding_unit_layer.1} parent=11 // pred_region
          %400 = sst [smem:[#allocation10]] [#allocation51]
          %401 = sst [smem:[#allocation11]] [#allocation50]
        $region96: #{embedding_unit_layer.1} parent=11 // pred_fallthru
          _
        %403 = shalt.err (0)
        %s405 = sshll.u32 %s396, 4
        %s406 = int_to_ptr.vmem [resolvable:$true] %s405
        %408 = dma.hbm_to_vmem [thread:$0]  %s395, 16, %s406, %s397
        %s409 = sadd.s32 %s54, 21
        %s410 = sld [smem:[#allocation5 + %s409]]
        %s411 = smul.addr %s410, 16
        %s412 = scalar_lea.hbm %s1, %s411
        %s413 = scalar_lea.vmem [#allocation2], 21
        %s414 = scalar_lea.sflag [#allocation3], 21
        // Predicated region
        $region97: #{embedding_unit_layer.1} parent=11 // pred_check
          _
        $region98: #{embedding_unit_layer.1} parent=11 // pred_check_branch
          %416 = sbr.rel target = $region100
        $region99: #{embedding_unit_layer.1} parent=11 // pred_region
          %417 = sst [smem:[#allocation10]] [#allocation53]
          %418 = sst [smem:[#allocation11]] [#allocation52]
        $region100: #{embedding_unit_layer.1} parent=11 // pred_fallthru
          _
        %420 = shalt.err (0)
        %s422 = sshll.u32 %s413, 4
        %s423 = int_to_ptr.vmem [resolvable:$true] %s422
        %425 = dma.hbm_to_vmem [thread:$0]  %s412, 16, %s423, %s414
        %s426 = sadd.s32 %s54, 22
        %s427 = sld [smem:[#allocation5 + %s426]]
        %s428 = smul.addr %s427, 16
        %s429 = scalar_lea.hbm %s1, %s428
        %s430 = scalar_lea.vmem [#allocation2], 22
        %s431 = scalar_lea.sflag [#allocation3], 22
        // Predicated region
        $region101: #{embedding_unit_layer.1} parent=11 // pred_check
          _
        $region102: #{embedding_unit_layer.1} parent=11 // pred_check_branch
          %433 = sbr.rel target = $region104
        $region103: #{embedding_unit_layer.1} parent=11 // pred_region
          %434 = sst [smem:[#allocation10]] [#allocation55]
          %435 = sst [smem:[#allocation11]] [#allocation54]
        $region104: #{embedding_unit_layer.1} parent=11 // pred_fallthru
          _
        %437 = shalt.err (0)
        %s439 = sshll.u32 %s430, 4
        %s440 = int_to_ptr.vmem [resolvable:$true] %s439
        %442 = dma.hbm_to_vmem [thread:$0]  %s429, 16, %s440, %s431
        %s443 = sadd.s32 %s54, 23
        %s444 = sld [smem:[#allocation5 + %s443]]
        %s445 = smul.addr %s444, 16
        %s446 = scalar_lea.hbm %s1, %s445
        %s447 = scalar_lea.vmem [#allocation2], 23
        %s448 = scalar_lea.sflag [#allocation3], 23
        // Predicated region
        $region105: #{embedding_unit_layer.1} parent=11 // pred_check
          _
        $region106: #{embedding_unit_layer.1} parent=11 // pred_check_branch
          %450 = sbr.rel target = $region108
        $region107: #{embedding_unit_layer.1} parent=11 // pred_region
          %451 = sst [smem:[#allocation10]] [#allocation57]
          %452 = sst [smem:[#allocation11]] [#allocation56]
        $region108: #{embedding_unit_layer.1} parent=11 // pred_fallthru
          _
        %454 = shalt.err (0)
        %s456 = sshll.u32 %s447, 4
        %s457 = int_to_ptr.vmem [resolvable:$true] %s456
        %459 = dma.hbm_to_vmem [thread:$0]  %s446, 16, %s457, %s448
        %s460 = sadd.s32 %s54, 24
        %s461 = sld [smem:[#allocation5 + %s460]]
        %s462 = smul.addr %s461, 16
        %s463 = scalar_lea.hbm %s1, %s462
        %s464 = scalar_lea.vmem [#allocation2], 24
        %s465 = scalar_lea.sflag [#allocation3], 24
        // Predicated region
        $region109: #{embedding_unit_layer.1} parent=11 // pred_check
          _
        $region110: #{embedding_unit_layer.1} parent=11 // pred_check_branch
          %467 = sbr.rel target = $region112
        $region111: #{embedding_unit_layer.1} parent=11 // pred_region
          %468 = sst [smem:[#allocation10]] [#allocation59]
          %469 = sst [smem:[#allocation11]] [#allocation58]
        $region112: #{embedding_unit_layer.1} parent=11 // pred_fallthru
          _
        %471 = shalt.err (0)
        %s473 = sshll.u32 %s464, 4
        %s474 = int_to_ptr.vmem [resolvable:$true] %s473
        %476 = dma.hbm_to_vmem [thread:$0]  %s463, 16, %s474, %s465
        %s477 = sadd.s32 %s54, 25
        %s478 = sld [smem:[#allocation5 + %s477]]
        %s479 = smul.addr %s478, 16
        %s480 = scalar_lea.hbm %s1, %s479
        %s481 = scalar_lea.vmem [#allocation2], 25
        %s482 = scalar_lea.sflag [#allocation3], 25
        // Predicated region
        $region113: #{embedding_unit_layer.1} parent=11 // pred_check
          _
        $region114: #{embedding_unit_layer.1} parent=11 // pred_check_branch
          %484 = sbr.rel target = $region116
        $region115: #{embedding_unit_layer.1} parent=11 // pred_region
          %485 = sst [smem:[#allocation10]] [#allocation61]
          %486 = sst [smem:[#allocation11]] [#allocation60]
        $region116: #{embedding_unit_layer.1} parent=11 // pred_fallthru
          _
        %488 = shalt.err (0)
        %s490 = sshll.u32 %s481, 4
        %s491 = int_to_ptr.vmem [resolvable:$true] %s490
        %493 = dma.hbm_to_vmem [thread:$0]  %s480, 16, %s491, %s482
        %s494 = sadd.s32 %s54, 26
        %s495 = sld [smem:[#allocation5 + %s494]]
        %s496 = smul.addr %s495, 16
        %s497 = scalar_lea.hbm %s1, %s496
        %s498 = scalar_lea.vmem [#allocation2], 26
        %s499 = scalar_lea.sflag [#allocation3], 26
        // Predicated region
        $region117: #{embedding_unit_layer.1} parent=11 // pred_check
          _
        $region118: #{embedding_unit_layer.1} parent=11 // pred_check_branch
          %501 = sbr.rel target = $region120
        $region119: #{embedding_unit_layer.1} parent=11 // pred_region
          %502 = sst [smem:[#allocation10]] [#allocation63]
          %503 = sst [smem:[#allocation11]] [#allocation62]
        $region120: #{embedding_unit_layer.1} parent=11 // pred_fallthru
          _
        %505 = shalt.err (0)
        %s507 = sshll.u32 %s498, 4
        %s508 = int_to_ptr.vmem [resolvable:$true] %s507
        %510 = dma.hbm_to_vmem [thread:$0]  %s497, 16, %s508, %s499
        %s511 = sadd.s32 %s54, 27
        %s512 = sld [smem:[#allocation5 + %s511]]
        %s513 = smul.addr %s512, 16
        %s514 = scalar_lea.hbm %s1, %s513
        %s515 = scalar_lea.vmem [#allocation2], 27
        %s516 = scalar_lea.sflag [#allocation3], 27
        // Predicated region
        $region121: #{embedding_unit_layer.1} parent=11 // pred_check
          _
        $region122: #{embedding_unit_layer.1} parent=11 // pred_check_branch
          %518 = sbr.rel target = $region124
        $region123: #{embedding_unit_layer.1} parent=11 // pred_region
          %519 = sst [smem:[#allocation10]] [#allocation65]
          %520 = sst [smem:[#allocation11]] [#allocation64]
        $region124: #{embedding_unit_layer.1} parent=11 // pred_fallthru
          _
        %522 = shalt.err (0)
        %s524 = sshll.u32 %s515, 4
        %s525 = int_to_ptr.vmem [resolvable:$true] %s524
        %527 = dma.hbm_to_vmem [thread:$0]  %s514, 16, %s525, %s516
        %s528 = sadd.s32 %s54, 28
        %s529 = sld [smem:[#allocation5 + %s528]]
        %s530 = smul.addr %s529, 16
        %s531 = scalar_lea.hbm %s1, %s530
        %s532 = scalar_lea.vmem [#allocation2], 28
        %s533 = scalar_lea.sflag [#allocation3], 28
        // Predicated region
        $region125: #{embedding_unit_layer.1} parent=11 // pred_check
          _
        $region126: #{embedding_unit_layer.1} parent=11 // pred_check_branch
          %535 = sbr.rel target = $region128
        $region127: #{embedding_unit_layer.1} parent=11 // pred_region
          %536 = sst [smem:[#allocation10]] [#allocation67]
          %537 = sst [smem:[#allocation11]] [#allocation66]
        $region128: #{embedding_unit_layer.1} parent=11 // pred_fallthru
          _
        %539 = shalt.err (0)
        %s541 = sshll.u32 %s532, 4
        %s542 = int_to_ptr.vmem [resolvable:$true] %s541
        %544 = dma.hbm_to_vmem [thread:$0]  %s531, 16, %s542, %s533
        %s545 = sadd.s32 %s54, 29
        %s546 = sld [smem:[#allocation5 + %s545]]
        %s547 = smul.addr %s546, 16
        %s548 = scalar_lea.hbm %s1, %s547
        %s549 = scalar_lea.vmem [#allocation2], 29
        %s550 = scalar_lea.sflag [#allocation3], 29
        // Predicated region
        $region129: #{embedding_unit_layer.1} parent=11 // pred_check
          _
        $region130: #{embedding_unit_layer.1} parent=11 // pred_check_branch
          %552 = sbr.rel target = $region132
        $region131: #{embedding_unit_layer.1} parent=11 // pred_region
          %553 = sst [smem:[#allocation10]] [#allocation69]
          %554 = sst [smem:[#allocation11]] [#allocation68]
        $region132: #{embedding_unit_layer.1} parent=11 // pred_fallthru
          _
        %556 = shalt.err (0)
        %s558 = sshll.u32 %s549, 4
        %s559 = int_to_ptr.vmem [resolvable:$true] %s558
        %561 = dma.hbm_to_vmem [thread:$0]  %s548, 16, %s559, %s550
        %s562 = sadd.s32 %s54, 30
        %s563 = sld [smem:[#allocation5 + %s562]]
        %s564 = smul.addr %s563, 16
        %s565 = scalar_lea.hbm %s1, %s564
        %s566 = scalar_lea.vmem [#allocation2], 30
        %s567 = scalar_lea.sflag [#allocation3], 30
        // Predicated region
        $region133: #{embedding_unit_layer.1} parent=11 // pred_check
          _
        $region134: #{embedding_unit_layer.1} parent=11 // pred_check_branch
          %569 = sbr.rel target = $region136
        $region135: #{embedding_unit_layer.1} parent=11 // pred_region
          %570 = sst [smem:[#allocation10]] [#allocation71]
          %571 = sst [smem:[#allocation11]] [#allocation70]
        $region136: #{embedding_unit_layer.1} parent=11 // pred_fallthru
          _
        %573 = shalt.err (0)
        %s575 = sshll.u32 %s566, 4
        %s576 = int_to_ptr.vmem [resolvable:$true] %s575
        %578 = dma.hbm_to_vmem [thread:$0]  %s565, 16, %s576, %s567
        %s579 = sadd.s32 %s54, 31
        %s580 = sld [smem:[#allocation5 + %s579]]
        %s581 = smul.addr %s580, 16
        %s582 = scalar_lea.hbm %s1, %s581
        %s583 = scalar_lea.vmem [#allocation2], 31
        %s584 = scalar_lea.sflag [#allocation3], 31
        // Predicated region
        $region137: #{embedding_unit_layer.1} parent=11 // pred_check
          _
        $region138: #{embedding_unit_layer.1} parent=11 // pred_check_branch
          %586 = sbr.rel target = $region140
        $region139: #{embedding_unit_layer.1} parent=11 // pred_region
          %587 = sst [smem:[#allocation10]] [#allocation73]
          %588 = sst [smem:[#allocation11]] [#allocation72]
        $region140: #{embedding_unit_layer.1} parent=11 // pred_fallthru
          _
        %590 = shalt.err (0)
        %s592 = sshll.u32 %s583, 4
        %s593 = int_to_ptr.vmem [resolvable:$true] %s592
        %595 = dma.hbm_to_vmem [thread:$0]  %s582, 16, %s593, %s584
        %s596 = sadd.s32 %s54, 32
        %s597 = sld [smem:[#allocation5 + %s596]]
        %s598 = smul.addr %s597, 16
        %s599 = scalar_lea.hbm %s1, %s598
        %s600 = scalar_lea.vmem [#allocation2], 32
        %s601 = scalar_lea.sflag [#allocation3], 32
        // Predicated region
        $region141: #{embedding_unit_layer.1} parent=11 // pred_check
          _
        $region142: #{embedding_unit_layer.1} parent=11 // pred_check_branch
          %603 = sbr.rel target = $region144
        $region143: #{embedding_unit_layer.1} parent=11 // pred_region
          %604 = sst [smem:[#allocation10]] [#allocation75]
          %605 = sst [smem:[#allocation11]] [#allocation74]
        $region144: #{embedding_unit_layer.1} parent=11 // pred_fallthru
          _
        %607 = shalt.err (0)
        %s609 = sshll.u32 %s600, 4
        %s610 = int_to_ptr.vmem [resolvable:$true] %s609
        %612 = dma.hbm_to_vmem [thread:$0]  %s599, 16, %s610, %s601
        %s613 = sadd.s32 %s54, 33
        %s614 = sld [smem:[#allocation5 + %s613]]
        %s615 = smul.addr %s614, 16
        %s616 = scalar_lea.hbm %s1, %s615
        %s617 = scalar_lea.vmem [#allocation2], 33
        %s618 = scalar_lea.sflag [#allocation3], 33
        // Predicated region
        $region145: #{embedding_unit_layer.1} parent=11 // pred_check
          _
        $region146: #{embedding_unit_layer.1} parent=11 // pred_check_branch
          %620 = sbr.rel target = $region148
        $region147: #{embedding_unit_layer.1} parent=11 // pred_region
          %621 = sst [smem:[#allocation10]] [#allocation77]
          %622 = sst [smem:[#allocation11]] [#allocation76]
        $region148: #{embedding_unit_layer.1} parent=11 // pred_fallthru
          _
        %624 = shalt.err (0)
        %s626 = sshll.u32 %s617, 4
        %s627 = int_to_ptr.vmem [resolvable:$true] %s626
        %629 = dma.hbm_to_vmem [thread:$0]  %s616, 16, %s627, %s618
        %s630 = sadd.s32 %s54, 34
        %s631 = sld [smem:[#allocation5 + %s630]]
        %s632 = smul.addr %s631, 16
        %s633 = scalar_lea.hbm %s1, %s632
        %s634 = scalar_lea.vmem [#allocation2], 34
        %s635 = scalar_lea.sflag [#allocation3], 34
        // Predicated region
        $region149: #{embedding_unit_layer.1} parent=11 // pred_check
          _
        $region150: #{embedding_unit_layer.1} parent=11 // pred_check_branch
          %637 = sbr.rel target = $region152
        $region151: #{embedding_unit_layer.1} parent=11 // pred_region
          %638 = sst [smem:[#allocation10]] [#allocation79]
          %639 = sst [smem:[#allocation11]] [#allocation78]
        $region152: #{embedding_unit_layer.1} parent=11 // pred_fallthru
          _
        %641 = shalt.err (0)
        %s643 = sshll.u32 %s634, 4
        %s644 = int_to_ptr.vmem [resolvable:$true] %s643
        %646 = dma.hbm_to_vmem [thread:$0]  %s633, 16, %s644, %s635
        %s647 = sadd.s32 %s54, 35
        %s648 = sld [smem:[#allocation5 + %s647]]
        %s649 = smul.addr %s648, 16
        %s650 = scalar_lea.hbm %s1, %s649
        %s651 = scalar_lea.vmem [#allocation2], 35
        %s652 = scalar_lea.sflag [#allocation3], 35
        // Predicated region
        $region153: #{embedding_unit_layer.1} parent=11 // pred_check
          _
        $region154: #{embedding_unit_layer.1} parent=11 // pred_check_branch
          %654 = sbr.rel target = $region156
        $region155: #{embedding_unit_layer.1} parent=11 // pred_region
          %655 = sst [smem:[#allocation10]] [#allocation81]
          %656 = sst [smem:[#allocation11]] [#allocation80]
        $region156: #{embedding_unit_layer.1} parent=11 // pred_fallthru
          _
        %658 = shalt.err (0)
        %s660 = sshll.u32 %s651, 4
        %s661 = int_to_ptr.vmem [resolvable:$true] %s660
        %663 = dma.hbm_to_vmem [thread:$0]  %s650, 16, %s661, %s652
        %s664 = sadd.s32 %s54, 36
        %s665 = sld [smem:[#allocation5 + %s664]]
        %s666 = smul.addr %s665, 16
        %s667 = scalar_lea.hbm %s1, %s666
        %s668 = scalar_lea.vmem [#allocation2], 36
        %s669 = scalar_lea.sflag [#allocation3], 36
        // Predicated region
        $region157: #{embedding_unit_layer.1} parent=11 // pred_check
          _
        $region158: #{embedding_unit_layer.1} parent=11 // pred_check_branch
          %671 = sbr.rel target = $region160
        $region159: #{embedding_unit_layer.1} parent=11 // pred_region
          %672 = sst [smem:[#allocation10]] [#allocation83]
          %673 = sst [smem:[#allocation11]] [#allocation82]
        $region160: #{embedding_unit_layer.1} parent=11 // pred_fallthru
          _
        %675 = shalt.err (0)
        %s677 = sshll.u32 %s668, 4
        %s678 = int_to_ptr.vmem [resolvable:$true] %s677
        %680 = dma.hbm_to_vmem [thread:$0]  %s667, 16, %s678, %s669
        %s681 = sadd.s32 %s54, 37
        %s682 = sld [smem:[#allocation5 + %s681]]
        %s683 = smul.addr %s682, 16
        %s684 = scalar_lea.hbm %s1, %s683
        %s685 = scalar_lea.vmem [#allocation2], 37
        %s686 = scalar_lea.sflag [#allocation3], 37
        // Predicated region
        $region161: #{embedding_unit_layer.1} parent=11 // pred_check
          _
        $region162: #{embedding_unit_layer.1} parent=11 // pred_check_branch
          %688 = sbr.rel target = $region164
        $region163: #{embedding_unit_layer.1} parent=11 // pred_region
          %689 = sst [smem:[#allocation10]] [#allocation85]
          %690 = sst [smem:[#allocation11]] [#allocation84]
        $region164: #{embedding_unit_layer.1} parent=11 // pred_fallthru
          _
        %692 = shalt.err (0)
        %s694 = sshll.u32 %s685, 4
        %s695 = int_to_ptr.vmem [resolvable:$true] %s694
        %697 = dma.hbm_to_vmem [thread:$0]  %s684, 16, %s695, %s686
        %s698 = sadd.s32 %s54, 38
        %s699 = sld [smem:[#allocation5 + %s698]]
        %s700 = smul.addr %s699, 16
        %s701 = scalar_lea.hbm %s1, %s700
        %s702 = scalar_lea.vmem [#allocation2], 38
        %s703 = scalar_lea.sflag [#allocation3], 38
        // Predicated region
        $region165: #{embedding_unit_layer.1} parent=11 // pred_check
          _
        $region166: #{embedding_unit_layer.1} parent=11 // pred_check_branch
          %705 = sbr.rel target = $region168
        $region167: #{embedding_unit_layer.1} parent=11 // pred_region
          %706 = sst [smem:[#allocation10]] [#allocation87]
          %707 = sst [smem:[#allocation11]] [#allocation86]
        $region168: #{embedding_unit_layer.1} parent=11 // pred_fallthru
          _
        %709 = shalt.err (0)
        %s711 = sshll.u32 %s702, 4
        %s712 = int_to_ptr.vmem [resolvable:$true] %s711
        %714 = dma.hbm_to_vmem [thread:$0]  %s701, 16, %s712, %s703
        %s715 = sadd.s32 %s54, 39
        %s716 = sld [smem:[#allocation5 + %s715]]
        %s717 = smul.addr %s716, 16
        %s718 = scalar_lea.hbm %s1, %s717
        %s719 = scalar_lea.vmem [#allocation2], 39
        %s720 = scalar_lea.sflag [#allocation3], 39
        // Predicated region
        $region169: #{embedding_unit_layer.1} parent=11 // pred_check
          _
        $region170: #{embedding_unit_layer.1} parent=11 // pred_check_branch
          %722 = sbr.rel target = $region172
        $region171: #{embedding_unit_layer.1} parent=11 // pred_region
          %723 = sst [smem:[#allocation10]] [#allocation89]
          %724 = sst [smem:[#allocation11]] [#allocation88]
        $region172: #{embedding_unit_layer.1} parent=11 // pred_fallthru
          _
        %726 = shalt.err (0)
        %s728 = sshll.u32 %s719, 4
        %s729 = int_to_ptr.vmem [resolvable:$true] %s728
        %731 = dma.hbm_to_vmem [thread:$0]  %s718, 16, %s729, %s720
        %s732 = sadd.s32 %s54, 40
        %s733 = sld [smem:[#allocation5 + %s732]]
        %s734 = smul.addr %s733, 16
        %s735 = scalar_lea.hbm %s1, %s734
        %s736 = scalar_lea.vmem [#allocation2], 40
        %s737 = scalar_lea.sflag [#allocation3], 40
        // Predicated region
        $region173: #{embedding_unit_layer.1} parent=11 // pred_check
          _
        $region174: #{embedding_unit_layer.1} parent=11 // pred_check_branch
          %739 = sbr.rel target = $region176
        $region175: #{embedding_unit_layer.1} parent=11 // pred_region
          %740 = sst [smem:[#allocation10]] [#allocation91]
          %741 = sst [smem:[#allocation11]] [#allocation90]
        $region176: #{embedding_unit_layer.1} parent=11 // pred_fallthru
          _
        %743 = shalt.err (0)
        %s745 = sshll.u32 %s736, 4
        %s746 = int_to_ptr.vmem [resolvable:$true] %s745
        %748 = dma.hbm_to_vmem [thread:$0]  %s735, 16, %s746, %s737
        %s749 = sadd.s32 %s54, 41
        %s750 = sld [smem:[#allocation5 + %s749]]
        %s751 = smul.addr %s750, 16
        %s752 = scalar_lea.hbm %s1, %s751
        %s753 = scalar_lea.vmem [#allocation2], 41
        %s754 = scalar_lea.sflag [#allocation3], 41
        // Predicated region
        $region177: #{embedding_unit_layer.1} parent=11 // pred_check
          _
        $region178: #{embedding_unit_layer.1} parent=11 // pred_check_branch
          %756 = sbr.rel target = $region180
        $region179: #{embedding_unit_layer.1} parent=11 // pred_region
          %757 = sst [smem:[#allocation10]] [#allocation93]
          %758 = sst [smem:[#allocation11]] [#allocation92]
        $region180: #{embedding_unit_layer.1} parent=11 // pred_fallthru
          _
        %760 = shalt.err (0)
        %s762 = sshll.u32 %s753, 4
        %s763 = int_to_ptr.vmem [resolvable:$true] %s762
        %765 = dma.hbm_to_vmem [thread:$0]  %s752, 16, %s763, %s754
        %s766 = sadd.s32 %s54, 42
        %s767 = sld [smem:[#allocation5 + %s766]]
        %s768 = smul.addr %s767, 16
        %s769 = scalar_lea.hbm %s1, %s768
        %s770 = scalar_lea.vmem [#allocation2], 42
        %s771 = scalar_lea.sflag [#allocation3], 42
        // Predicated region
        $region181: #{embedding_unit_layer.1} parent=11 // pred_check
          _
        $region182: #{embedding_unit_layer.1} parent=11 // pred_check_branch
          %773 = sbr.rel target = $region184
        $region183: #{embedding_unit_layer.1} parent=11 // pred_region
          %774 = sst [smem:[#allocation10]] [#allocation95]
          %775 = sst [smem:[#allocation11]] [#allocation94]
        $region184: #{embedding_unit_layer.1} parent=11 // pred_fallthru
          _
        %777 = shalt.err (0)
        %s779 = sshll.u32 %s770, 4
        %s780 = int_to_ptr.vmem [resolvable:$true] %s779
        %782 = dma.hbm_to_vmem [thread:$0]  %s769, 16, %s780, %s771
        %s783 = sadd.s32 %s54, 43
        %s784 = sld [smem:[#allocation5 + %s783]]
        %s785 = smul.addr %s784, 16
        %s786 = scalar_lea.hbm %s1, %s785
        %s787 = scalar_lea.vmem [#allocation2], 43
        %s788 = scalar_lea.sflag [#allocation3], 43
        // Predicated region
        $region185: #{embedding_unit_layer.1} parent=11 // pred_check
          _
        $region186: #{embedding_unit_layer.1} parent=11 // pred_check_branch
          %790 = sbr.rel target = $region188
        $region187: #{embedding_unit_layer.1} parent=11 // pred_region
          %791 = sst [smem:[#allocation10]] [#allocation97]
          %792 = sst [smem:[#allocation11]] [#allocation96]
        $region188: #{embedding_unit_layer.1} parent=11 // pred_fallthru
          _
        %794 = shalt.err (0)
        %s796 = sshll.u32 %s787, 4
        %s797 = int_to_ptr.vmem [resolvable:$true] %s796
        %799 = dma.hbm_to_vmem [thread:$0]  %s786, 16, %s797, %s788
        %s800 = sadd.s32 %s54, 44
        %s801 = sld [smem:[#allocation5 + %s800]]
        %s802 = smul.addr %s801, 16
        %s803 = scalar_lea.hbm %s1, %s802
        %s804 = scalar_lea.vmem [#allocation2], 44
        %s805 = scalar_lea.sflag [#allocation3], 44
        // Predicated region
        $region189: #{embedding_unit_layer.1} parent=11 // pred_check
          _
        $region190: #{embedding_unit_layer.1} parent=11 // pred_check_branch
          %807 = sbr.rel target = $region192
        $region191: #{embedding_unit_layer.1} parent=11 // pred_region
          %808 = sst [smem:[#allocation10]] [#allocation99]
          %809 = sst [smem:[#allocation11]] [#allocation98]
        $region192: #{embedding_unit_layer.1} parent=11 // pred_fallthru
          _
        %811 = shalt.err (0)
        %s813 = sshll.u32 %s804, 4
        %s814 = int_to_ptr.vmem [resolvable:$true] %s813
        %816 = dma.hbm_to_vmem [thread:$0]  %s803, 16, %s814, %s805
        %s817 = sadd.s32 %s54, 45
        %s818 = sld [smem:[#allocation5 + %s817]]
        %s819 = smul.addr %s818, 16
        %s820 = scalar_lea.hbm %s1, %s819
        %s821 = scalar_lea.vmem [#allocation2], 45
        %s822 = scalar_lea.sflag [#allocation3], 45
        // Predicated region
        $region193: #{embedding_unit_layer.1} parent=11 // pred_check
          _
        $region194: #{embedding_unit_layer.1} parent=11 // pred_check_branch
          %824 = sbr.rel target = $region196
        $region195: #{embedding_unit_layer.1} parent=11 // pred_region
          %825 = sst [smem:[#allocation10]] [#allocation101]
          %826 = sst [smem:[#allocation11]] [#allocation100]
        $region196: #{embedding_unit_layer.1} parent=11 // pred_fallthru
          _
        %828 = shalt.err (0)
        %s830 = sshll.u32 %s821, 4
        %s831 = int_to_ptr.vmem [resolvable:$true] %s830
        %833 = dma.hbm_to_vmem [thread:$0]  %s820, 16, %s831, %s822
        %s834 = sadd.s32 %s54, 46
        %s835 = sld [smem:[#allocation5 + %s834]]
        %s836 = smul.addr %s835, 16
        %s837 = scalar_lea.hbm %s1, %s836
        %s838 = scalar_lea.vmem [#allocation2], 46
        %s839 = scalar_lea.sflag [#allocation3], 46
        // Predicated region
        $region197: #{embedding_unit_layer.1} parent=11 // pred_check
          _
        $region198: #{embedding_unit_layer.1} parent=11 // pred_check_branch
          %841 = sbr.rel target = $region200
        $region199: #{embedding_unit_layer.1} parent=11 // pred_region
          %842 = sst [smem:[#allocation10]] [#allocation103]
          %843 = sst [smem:[#allocation11]] [#allocation102]
        $region200: #{embedding_unit_layer.1} parent=11 // pred_fallthru
          _
        %845 = shalt.err (0)
        %s847 = sshll.u32 %s838, 4
        %s848 = int_to_ptr.vmem [resolvable:$true] %s847
        %850 = dma.hbm_to_vmem [thread:$0]  %s837, 16, %s848, %s839
        %s851 = sadd.s32 %s54, 47
        %s852 = sld [smem:[#allocation5 + %s851]]
        %s853 = smul.addr %s852, 16
        %s854 = scalar_lea.hbm %s1, %s853
        %s855 = scalar_lea.vmem [#allocation2], 47
        %s856 = scalar_lea.sflag [#allocation3], 47
        // Predicated region
        $region201: #{embedding_unit_layer.1} parent=11 // pred_check
          _
        $region202: #{embedding_unit_layer.1} parent=11 // pred_check_branch
          %858 = sbr.rel target = $region204
        $region203: #{embedding_unit_layer.1} parent=11 // pred_region
          %859 = sst [smem:[#allocation10]] [#allocation105]
          %860 = sst [smem:[#allocation11]] [#allocation104]
        $region204: #{embedding_unit_layer.1} parent=11 // pred_fallthru
          _
        %862 = shalt.err (0)
        %s864 = sshll.u32 %s855, 4
        %s865 = int_to_ptr.vmem [resolvable:$true] %s864
        %867 = dma.hbm_to_vmem [thread:$0]  %s854, 16, %s865, %s856
        %s868 = sadd.s32 %s54, 48
        %s869 = sld [smem:[#allocation5 + %s868]]
        %s870 = smul.addr %s869, 16
        %s871 = scalar_lea.hbm %s1, %s870
        %s872 = scalar_lea.vmem [#allocation2], 48
        %s873 = scalar_lea.sflag [#allocation3], 48
        // Predicated region
        $region205: #{embedding_unit_layer.1} parent=11 // pred_check
          _
        $region206: #{embedding_unit_layer.1} parent=11 // pred_check_branch
          %875 = sbr.rel target = $region208
        $region207: #{embedding_unit_layer.1} parent=11 // pred_region
          %876 = sst [smem:[#allocation10]] [#allocation107]
          %877 = sst [smem:[#allocation11]] [#allocation106]
        $region208: #{embedding_unit_layer.1} parent=11 // pred_fallthru
          _
        %879 = shalt.err (0)
        %s881 = sshll.u32 %s872, 4
        %s882 = int_to_ptr.vmem [resolvable:$true] %s881
        %884 = dma.hbm_to_vmem [thread:$0]  %s871, 16, %s882, %s873
        %s885 = sadd.s32 %s54, 49
        %s886 = sld [smem:[#allocation5 + %s885]]
        %s887 = smul.addr %s886, 16
        %s888 = scalar_lea.hbm %s1, %s887
        %s889 = scalar_lea.vmem [#allocation2], 49
        %s890 = scalar_lea.sflag [#allocation3], 49
        // Predicated region
        $region209: #{embedding_unit_layer.1} parent=11 // pred_check
          _
        $region210: #{embedding_unit_layer.1} parent=11 // pred_check_branch
          %892 = sbr.rel target = $region212
        $region211: #{embedding_unit_layer.1} parent=11 // pred_region
          %893 = sst [smem:[#allocation10]] [#allocation109]
          %894 = sst [smem:[#allocation11]] [#allocation108]
        $region212: #{embedding_unit_layer.1} parent=11 // pred_fallthru
          _
        %896 = shalt.err (0)
        %s898 = sshll.u32 %s889, 4
        %s899 = int_to_ptr.vmem [resolvable:$true] %s898
        %901 = dma.hbm_to_vmem [thread:$0]  %s888, 16, %s899, %s890
        %s902 = sadd.s32 %s54, 50
        %s903 = sld [smem:[#allocation5 + %s902]]
        %s904 = smul.addr %s903, 16
        %s905 = scalar_lea.hbm %s1, %s904
        %s906 = scalar_lea.vmem [#allocation2], 50
        %s907 = scalar_lea.sflag [#allocation3], 50
        // Predicated region
        $region213: #{embedding_unit_layer.1} parent=11 // pred_check
          _
        $region214: #{embedding_unit_layer.1} parent=11 // pred_check_branch
          %909 = sbr.rel target = $region216
        $region215: #{embedding_unit_layer.1} parent=11 // pred_region
          %910 = sst [smem:[#allocation10]] [#allocation111]
          %911 = sst [smem:[#allocation11]] [#allocation110]
        $region216: #{embedding_unit_layer.1} parent=11 // pred_fallthru
          _
        %913 = shalt.err (0)
        %s915 = sshll.u32 %s906, 4
        %s916 = int_to_ptr.vmem [resolvable:$true] %s915
        %918 = dma.hbm_to_vmem [thread:$0]  %s905, 16, %s916, %s907
        %s919 = sadd.s32 %s54, 51
        %s920 = sld [smem:[#allocation5 + %s919]]
        %s921 = smul.addr %s920, 16
        %s922 = scalar_lea.hbm %s1, %s921
        %s923 = scalar_lea.vmem [#allocation2], 51
        %s924 = scalar_lea.sflag [#allocation3], 51
        // Predicated region
        $region217: #{embedding_unit_layer.1} parent=11 // pred_check
          _
        $region218: #{embedding_unit_layer.1} parent=11 // pred_check_branch
          %926 = sbr.rel target = $region220
        $region219: #{embedding_unit_layer.1} parent=11 // pred_region
          %927 = sst [smem:[#allocation10]] [#allocation113]
          %928 = sst [smem:[#allocation11]] [#allocation112]
        $region220: #{embedding_unit_layer.1} parent=11 // pred_fallthru
          _
        %930 = shalt.err (0)
        %s932 = sshll.u32 %s923, 4
        %s933 = int_to_ptr.vmem [resolvable:$true] %s932
        %935 = dma.hbm_to_vmem [thread:$0]  %s922, 16, %s933, %s924
        %s936 = sadd.s32 %s54, 52
        %s937 = sld [smem:[#allocation5 + %s936]]
        %s938 = smul.addr %s937, 16
        %s939 = scalar_lea.hbm %s1, %s938
        %s940 = scalar_lea.vmem [#allocation2], 52
        %s941 = scalar_lea.sflag [#allocation3], 52
        // Predicated region
        $region221: #{embedding_unit_layer.1} parent=11 // pred_check
          _
        $region222: #{embedding_unit_layer.1} parent=11 // pred_check_branch
          %943 = sbr.rel target = $region224
        $region223: #{embedding_unit_layer.1} parent=11 // pred_region
          %944 = sst [smem:[#allocation10]] [#allocation115]
          %945 = sst [smem:[#allocation11]] [#allocation114]
        $region224: #{embedding_unit_layer.1} parent=11 // pred_fallthru
          _
        %947 = shalt.err (0)
        %s949 = sshll.u32 %s940, 4
        %s950 = int_to_ptr.vmem [resolvable:$true] %s949
        %952 = dma.hbm_to_vmem [thread:$0]  %s939, 16, %s950, %s941
        %s953 = sadd.s32 %s54, 53
        %s954 = sld [smem:[#allocation5 + %s953]]
        %s955 = smul.addr %s954, 16
        %s956 = scalar_lea.hbm %s1, %s955
        %s957 = scalar_lea.vmem [#allocation2], 53
        %s958 = scalar_lea.sflag [#allocation3], 53
        // Predicated region
        $region225: #{embedding_unit_layer.1} parent=11 // pred_check
          _
        $region226: #{embedding_unit_layer.1} parent=11 // pred_check_branch
          %960 = sbr.rel target = $region228
        $region227: #{embedding_unit_layer.1} parent=11 // pred_region
          %961 = sst [smem:[#allocation10]] [#allocation117]
          %962 = sst [smem:[#allocation11]] [#allocation116]
        $region228: #{embedding_unit_layer.1} parent=11 // pred_fallthru
          _
        %964 = shalt.err (0)
        %s966 = sshll.u32 %s957, 4
        %s967 = int_to_ptr.vmem [resolvable:$true] %s966
        %969 = dma.hbm_to_vmem [thread:$0]  %s956, 16, %s967, %s958
        %s970 = sadd.s32 %s54, 54
        %s971 = sld [smem:[#allocation5 + %s970]]
        %s972 = smul.addr %s971, 16
        %s973 = scalar_lea.hbm %s1, %s972
        %s974 = scalar_lea.vmem [#allocation2], 54
        %s975 = scalar_lea.sflag [#allocation3], 54
        // Predicated region
        $region229: #{embedding_unit_layer.1} parent=11 // pred_check
          _
        $region230: #{embedding_unit_layer.1} parent=11 // pred_check_branch
          %977 = sbr.rel target = $region232
        $region231: #{embedding_unit_layer.1} parent=11 // pred_region
          %978 = sst [smem:[#allocation10]] [#allocation119]
          %979 = sst [smem:[#allocation11]] [#allocation118]
        $region232: #{embedding_unit_layer.1} parent=11 // pred_fallthru
          _
        %981 = shalt.err (0)
        %s983 = sshll.u32 %s974, 4
        %s984 = int_to_ptr.vmem [resolvable:$true] %s983
        %986 = dma.hbm_to_vmem [thread:$0]  %s973, 16, %s984, %s975
        %s987 = sadd.s32 %s54, 55
        %s988 = sld [smem:[#allocation5 + %s987]]
        %s989 = smul.addr %s988, 16
        %s990 = scalar_lea.hbm %s1, %s989
        %s991 = scalar_lea.vmem [#allocation2], 55
        %s992 = scalar_lea.sflag [#allocation3], 55
        // Predicated region
        $region233: #{embedding_unit_layer.1} parent=11 // pred_check
          _
        $region234: #{embedding_unit_layer.1} parent=11 // pred_check_branch
          %994 = sbr.rel target = $region236
        $region235: #{embedding_unit_layer.1} parent=11 // pred_region
          %995 = sst [smem:[#allocation10]] [#allocation121]
          %996 = sst [smem:[#allocation11]] [#allocation120]
        $region236: #{embedding_unit_layer.1} parent=11 // pred_fallthru
          _
        %998 = shalt.err (0)
        %s1000 = sshll.u32 %s991, 4
        %s1001 = int_to_ptr.vmem [resolvable:$true] %s1000
        %1003 = dma.hbm_to_vmem [thread:$0]  %s990, 16, %s1001, %s992
        %s1004 = smul.u32 1, 1
        %s1005 = sshll.u32 %s1004, 4
        %1006 = dma.done [#allocation3], %s1005
        %s1007 = sshll.u32 %s1004, 4
        %1008 = dma.done %s74, %s1007
        %s1009 = sshll.u32 %s1004, 4
        %1010 = dma.done %s91, %s1009
        %s1011 = sshll.u32 %s1004, 4
        %1012 = dma.done %s108, %s1011
        %s1013 = sshll.u32 %s1004, 4
        %1014 = dma.done %s125, %s1013
        %s1015 = sshll.u32 %s1004, 4
        %1016 = dma.done %s142, %s1015
        %s1017 = sshll.u32 %s1004, 4
        %1018 = dma.done %s159, %s1017
        %s1019 = sshll.u32 %s1004, 4
        %1020 = dma.done %s176, %s1019
        %s1021 = sshll.u32 %s1004, 4
        %1022 = dma.done %s193, %s1021
        %s1023 = sshll.u32 %s1004, 4
        %1024 = dma.done %s210, %s1023
        %s1025 = sshll.u32 %s1004, 4
        %1026 = dma.done %s227, %s1025
        %s1027 = sshll.u32 %s1004, 4
        %1028 = dma.done %s244, %s1027
        %s1029 = sshll.u32 %s1004, 4
        %1030 = dma.done %s261, %s1029
        %s1031 = sshll.u32 %s1004, 4
        %1032 = dma.done %s278, %s1031
        %s1033 = sshll.u32 %s1004, 4
        %1034 = dma.done %s295, %s1033
        %s1035 = sshll.u32 %s1004, 4
        %1036 = dma.done %s312, %s1035
        %s1037 = sshll.u32 %s1004, 4
        %1038 = dma.done %s329, %s1037
        %s1039 = sshll.u32 %s1004, 4
        %1040 = dma.done %s346, %s1039
        %s1041 = sshll.u32 %s1004, 4
        %1042 = dma.done %s363, %s1041
        %s1043 = sshll.u32 %s1004, 4
        %1044 = dma.done %s380, %s1043
        %s1045 = sshll.u32 %s1004, 4
        %1046 = dma.done %s397, %s1045
        %s1047 = sshll.u32 %s1004, 4
        %1048 = dma.done %s414, %s1047
        %s1049 = sshll.u32 %s1004, 4
        %1050 = dma.done %s431, %s1049
        %s1051 = sshll.u32 %s1004, 4
        %1052 = dma.done %s448, %s1051
        %s1053 = sshll.u32 %s1004, 4
        %1054 = dma.done %s465, %s1053
        %s1055 = sshll.u32 %s1004, 4
        %1056 = dma.done %s482, %s1055
        %s1057 = sshll.u32 %s1004, 4
        %1058 = dma.done %s499, %s1057
        %s1059 = sshll.u32 %s1004, 4
        %1060 = dma.done %s516, %s1059
        %s1061 = sshll.u32 %s1004, 4
        %1062 = dma.done %s533, %s1061
        %s1063 = sshll.u32 %s1004, 4
        %1064 = dma.done %s550, %s1063
        %s1065 = sshll.u32 %s1004, 4
        %1066 = dma.done %s567, %s1065
        %s1067 = sshll.u32 %s1004, 4
        %1068 = dma.done %s584, %s1067
        %s1069 = sshll.u32 %s1004, 4
        %1070 = dma.done %s601, %s1069
        %s1071 = sshll.u32 %s1004, 4
        %1072 = dma.done %s618, %s1071
        %s1073 = sshll.u32 %s1004, 4
        %1074 = dma.done %s635, %s1073
        %s1075 = sshll.u32 %s1004, 4
        %1076 = dma.done %s652, %s1075
        %s1077 = sshll.u32 %s1004, 4
        %1078 = dma.done %s669, %s1077
        %s1079 = sshll.u32 %s1004, 4
        %1080 = dma.done %s686, %s1079
        %s1081 = sshll.u32 %s1004, 4
        %1082 = dma.done %s703, %s1081
        %s1083 = sshll.u32 %s1004, 4
        %1084 = dma.done %s720, %s1083
        %s1085 = sshll.u32 %s1004, 4
        %1086 = dma.done %s737, %s1085
        %s1087 = sshll.u32 %s1004, 4
        %1088 = dma.done %s754, %s1087
        %s1089 = sshll.u32 %s1004, 4
        %1090 = dma.done %s771, %s1089
        %s1091 = sshll.u32 %s1004, 4
        %1092 = dma.done %s788, %s1091
        %s1093 = sshll.u32 %s1004, 4
        %1094 = dma.done %s805, %s1093
        %s1095 = sshll.u32 %s1004, 4
        %1096 = dma.done %s822, %s1095
        %s1097 = sshll.u32 %s1004, 4
        %1098 = dma.done %s839, %s1097
        %s1099 = sshll.u32 %s1004, 4
        %1100 = dma.done %s856, %s1099
        %s1101 = sshll.u32 %s1004, 4
        %1102 = dma.done %s873, %s1101
        %s1103 = sshll.u32 %s1004, 4
        %1104 = dma.done %s890, %s1103
        %s1105 = sshll.u32 %s1004, 4
        %1106 = dma.done %s907, %s1105
        %s1107 = sshll.u32 %s1004, 4
        %1108 = dma.done %s924, %s1107
        %s1109 = sshll.u32 %s1004, 4
        %1110 = dma.done %s941, %s1109
        %s1111 = sshll.u32 %s1004, 4
        %1112 = dma.done %s958, %s1111
        %s1113 = sshll.u32 %s1004, 4
        %1114 = dma.done %s975, %s1113
        %s1115 = sshll.u32 %s1004, 4
        %1116 = dma.done %s992, %s1115
        %v1117 = vld [vmem:[#allocation2] sm:$0x7f]
        %vm1118 = vcmask 1046528
        %v1119 = vsel %vm1118, %v1117, 0.0
        %v1120 = vrot.slane %v1119, 4
        %v1121 = vadd.f32 %v1119, %v1120
        %v1122 = vrot.slane %v1121, 2
        %v1123 = vadd.f32 %v1121, %v1122
        %v1124 = vrot.slane %v1123, 1
        %v1125 = vadd.f32 %v1123, %v1124
        %v1126 = vmul.f32 %v1125, 0.14285715
        %1127 = vst [vmem:[%s53] sm:$0x1] %v1126
        %v1128 = vld [vmem:[#allocation2 + $0x7] sm:$0x7f]
        %v1129 = vsel %vm1118, %v1128, 0.0
        %v1130 = vrot.slane %v1129, 4
        %v1131 = vadd.f32 %v1129, %v1130
        %v1132 = vrot.slane %v1131, 2
        %v1133 = vadd.f32 %v1131, %v1132
        %v1134 = vrot.slane %v1133, 1
        %v1135 = vadd.f32 %v1133, %v1134
        %v1136 = vmul.f32 %v1135, 0.14285715
        %1137 = vst [vmem:[%s53 + $0x1] sm:$0x1] %v1136
        %v1138 = vld [vmem:[#allocation2 + $0xe] sm:$0x7f]
        %v1139 = vsel %vm1118, %v1138, 0.0
        %v1140 = vrot.slane %v1139, 4
        %v1141 = vadd.f32 %v1139, %v1140
        %v1142 = vrot.slane %v1141, 2
        %v1143 = vadd.f32 %v1141, %v1142
        %v1144 = vrot.slane %v1143, 1
        %v1145 = vadd.f32 %v1143, %v1144
        %v1146 = vmul.f32 %v1145, 0.14285715
        %1147 = vst [vmem:[%s53 + $0x2] sm:$0x1] %v1146
        %v1148 = vld [vmem:[#allocation2 + $0x15] sm:$0x7f]
        %v1149 = vsel %vm1118, %v1148, 0.0
        %v1150 = vrot.slane %v1149, 4
        %v1151 = vadd.f32 %v1149, %v1150
        %v1152 = vrot.slane %v1151, 2
        %v1153 = vadd.f32 %v1151, %v1152
        %v1154 = vrot.slane %v1153, 1
        %v1155 = vadd.f32 %v1153, %v1154
        %v1156 = vmul.f32 %v1155, 0.14285715
        %1157 = vst [vmem:[%s53 + $0x3] sm:$0x1] %v1156
        %v1158 = vld [vmem:[#allocation2 + $0x1c] sm:$0x7f]
        %v1159 = vsel %vm1118, %v1158, 0.0
        %v1160 = vrot.slane %v1159, 4
        %v1161 = vadd.f32 %v1159, %v1160
        %v1162 = vrot.slane %v1161, 2
        %v1163 = vadd.f32 %v1161, %v1162
        %v1164 = vrot.slane %v1163, 1
        %v1165 = vadd.f32 %v1163, %v1164
        %v1166 = vmul.f32 %v1165, 0.14285715
        %1167 = vst [vmem:[%s53 + $0x4] sm:$0x1] %v1166
        %v1168 = vld [vmem:[#allocation2 + $0x23] sm:$0x7f]
        %v1169 = vsel %vm1118, %v1168, 0.0
        %v1170 = vrot.slane %v1169, 4
        %v1171 = vadd.f32 %v1169, %v1170
        %v1172 = vrot.slane %v1171, 2
        %v1173 = vadd.f32 %v1171, %v1172
        %v1174 = vrot.slane %v1173, 1
        %v1175 = vadd.f32 %v1173, %v1174
        %v1176 = vmul.f32 %v1175, 0.14285715
        %1177 = vst [vmem:[%s53 + $0x5] sm:$0x1] %v1176
        %v1178 = vld [vmem:[#allocation2 + $0x2a] sm:$0x7f]
        %v1179 = vsel %vm1118, %v1178, 0.0
        %v1180 = vrot.slane %v1179, 4
        %v1181 = vadd.f32 %v1179, %v1180
        %v1182 = vrot.slane %v1181, 2
        %v1183 = vadd.f32 %v1181, %v1182
        %v1184 = vrot.slane %v1183, 1
        %v1185 = vadd.f32 %v1183, %v1184
        %v1186 = vmul.f32 %v1185, 0.14285715
        %1187 = vst [vmem:[%s53 + $0x6] sm:$0x1] %v1186
        %v1188 = vld [vmem:[#allocation2 + $0x31] sm:$0x7f]
        %v1189 = vsel %vm1118, %v1188, 0.0
        %v1190 = vrot.slane %v1189, 4
        %v1191 = vadd.f32 %v1189, %v1190
        %v1192 = vrot.slane %v1191, 2
        %v1193 = vadd.f32 %v1191, %v1192
        %v1194 = vrot.slane %v1193, 1
        %v1195 = vadd.f32 %v1193, %v1194
        %v1196 = vmul.f32 %v1195, 0.14285715
        %1197 = vst [vmem:[%s53 + $0x7] sm:$0x1] %v1196
        %s1198 = sand.u32 %s26, 1
        %s1199 = scalar_lea.sflag [#allocation7], %s1198
        %s1200 = sand.u32 %s26, 1
        %s1201 = smul.addr %s1200, 8
        %s1202 = scalar_lea.vmem [#allocation6], %s1201
        // Predicated region
        $region237: #{embedding_unit_layer.1} parent=11 // pred_check
          %p1203 = pneg %p32
        $region238: #{embedding_unit_layer.1} parent=11 // pred_check_branch
          %1205 = sbr.rel (%p1203) target = $region240
        $region239: #{embedding_unit_layer.1} parent=11 // pred_region
          %s1207 = ssub.s32 128, 128
          %1208 = vsyncadd %s1199, %s1207
          %s1209 = smul.addr %s17, 128
          %s1210 = scalar_lea.hbm %s2, %s1209
          %s1212 = sshll.u32 %s1202, 4
          %s1213 = int_to_ptr.vmem [resolvable:$true] %s1212
          %1215 = dma.vmem_to_hbm [thread:$0]  %s1213, 128, %s1210, %s1199
        $region240: #{embedding_unit_layer.1} parent=11 // pred_fallthru
          _
      $region12: #{embedding_unit_layer.1} parent=5 // pred_fallthru
        _
      %p1216 = scmp.le.s32.totalorder 1, %s17
      // Predicated region
      $region241: #{embedding_unit_layer.1} parent=5 // pred_check
        %p1217 = pneg %p1216
      $region242: #{embedding_unit_layer.1} parent=5 // pred_check_branch
        %1219 = sbr.rel (%p1217) target = $region244
      $region243: #{embedding_unit_layer.1} parent=5 // pred_region
        %s1220 = ssub.s32 %s17, 1
        // Predicated region
        $region245: #{embedding_unit_layer.1} parent=243 // pred_check
          %p1221 = pneg %p38
        $region246: #{embedding_unit_layer.1} parent=243 // pred_check_branch
          %1223 = sbr.rel (%p1221) target = $region248
        $region247: #{embedding_unit_layer.1} parent=243 // pred_region
          %s1224 = sand.u32 %s29, 1
          %s1225 = scalar_lea.sflag [#allocation7], %s1224
          %s1226 = sand.u32 %s29, 1
          %s1227 = smul.addr %s1226, 8
          %s1228 = scalar_lea.vmem [#allocation6], %s1227
          %1229 = dma.done %s1225, 128
        $region248: #{embedding_unit_layer.1} parent=243 // pred_fallthru
          _
      $region244: #{embedding_unit_layer.1} parent=5 // pred_fallthru
        _
    $region6: #{embedding_unit_layer.1} parent=1 // loop_footer
      %s21 = sadd.s32 1, %s17
    $region7: #{embedding_unit_layer.1} parent=1 // loop_footer_branch
      %16 = sbr.rel target = $region3
    $region8: #{embedding_unit_layer.1} parent=1 // loop_exit
      _
    %1230 = vsyncpa [#allocation7], 1
    %s1231 = scalar_lea.sflag [#allocation7], 1
    %1232 = vsyncpa %s1231, 1
  %1233 = vsyncmov [#allocation3]
  %s1234 = vpop.sfrf %1233
  %p1235 = scmp.eq.s32.totalorder %s1234, 0
  %p1236 = pneg %p1235
  %1238 = shalt.err (%p1236)
  %s1239 = scalar_lea.sflag [#allocation3], 1
  %1240 = vsyncmov %s1239
  %s1241 = vpop.sfrf %1240
  %p1242 = scmp.eq.s32.totalorder %s1241, 0
  %p1243 = pneg %p1242
  %1245 = shalt.err (%p1243)
  %s1246 = scalar_lea.sflag [#allocation3], 2
  %1247 = vsyncmov %s1246
  %s1248 = vpop.sfrf %1247
  %p1249 = scmp.eq.s32.totalorder %s1248, 0
  %p1250 = pneg %p1249
  %1252 = shalt.err (%p1250)
  %s1253 = scalar_lea.sflag [#allocation3], 3
  %1254 = vsyncmov %s1253
  %s1255 = vpop.sfrf %1254
  %p1256 = scmp.eq.s32.totalorder %s1255, 0
  %p1257 = pneg %p1256
  %1259 = shalt.err (%p1257)
  %s1260 = scalar_lea.sflag [#allocation3], 4
  %1261 = vsyncmov %s1260
  %s1262 = vpop.sfrf %1261
  %p1263 = scmp.eq.s32.totalorder %s1262, 0
  %p1264 = pneg %p1263
  %1266 = shalt.err (%p1264)
  %s1267 = scalar_lea.sflag [#allocation3], 5
  %1268 = vsyncmov %s1267
  %s1269 = vpop.sfrf %1268
  %p1270 = scmp.eq.s32.totalorder %s1269, 0
  %p1271 = pneg %p1270
  %1273 = shalt.err (%p1271)
  %s1274 = scalar_lea.sflag [#allocation3], 6
  %1275 = vsyncmov %s1274
  %s1276 = vpop.sfrf %1275
  %p1277 = scmp.eq.s32.totalorder %s1276, 0
  %p1278 = pneg %p1277
  %1280 = shalt.err (%p1278)
  %s1281 = scalar_lea.sflag [#allocation3], 7
  %1282 = vsyncmov %s1281
  %s1283 = vpop.sfrf %1282
  %p1284 = scmp.eq.s32.totalorder %s1283, 0
  %p1285 = pneg %p1284
  %1287 = shalt.err (%p1285)
  %s1288 = scalar_lea.sflag [#allocation3], 8
  %1289 = vsyncmov %s1288
  %s1290 = vpop.sfrf %1289
  %p1291 = scmp.eq.s32.totalorder %s1290, 0
  %p1292 = pneg %p1291
  %1294 = shalt.err (%p1292)
  %s1295 = scalar_lea.sflag [#allocation3], 9
  %1296 = vsyncmov %s1295
  %s1297 = vpop.sfrf %1296
  %p1298 = scmp.eq.s32.totalorder %s1297, 0
  %p1299 = pneg %p1298
  %1301 = shalt.err (%p1299)
  %s1302 = scalar_lea.sflag [#allocation3], 10
  %1303 = vsyncmov %s1302
  %s1304 = vpop.sfrf %1303
  %p1305 = scmp.eq.s32.totalorder %s1304, 0
  %p1306 = pneg %p1305
  %1308 = shalt.err (%p1306)
  %s1309 = scalar_lea.sflag [#allocation3], 11
  %1310 = vsyncmov %s1309
  %s1311 = vpop.sfrf %1310
  %p1312 = scmp.eq.s32.totalorder %s1311, 0
  %p1313 = pneg %p1312
  %1315 = shalt.err (%p1313)
  %s1316 = scalar_lea.sflag [#allocation3], 12
  %1317 = vsyncmov %s1316
  %s1318 = vpop.sfrf %1317
  %p1319 = scmp.eq.s32.totalorder %s1318, 0
  %p1320 = pneg %p1319
  %1322 = shalt.err (%p1320)
  %s1323 = scalar_lea.sflag [#allocation3], 13
  %1324 = vsyncmov %s1323
  %s1325 = vpop.sfrf %1324
  %p1326 = scmp.eq.s32.totalorder %s1325, 0
  %p1327 = pneg %p1326
  %1329 = shalt.err (%p1327)
  %s1330 = scalar_lea.sflag [#allocation3], 14
  %1331 = vsyncmov %s1330
  %s1332 = vpop.sfrf %1331
  %p1333 = scmp.eq.s32.totalorder %s1332, 0
  %p1334 = pneg %p1333
  %1336 = shalt.err (%p1334)
  %s1337 = scalar_lea.sflag [#allocation3], 15
  %1338 = vsyncmov %s1337
  %s1339 = vpop.sfrf %1338
  %p1340 = scmp.eq.s32.totalorder %s1339, 0
  %p1341 = pneg %p1340
  %1343 = shalt.err (%p1341)
  %s1344 = scalar_lea.sflag [#allocation3], 16
  %1345 = vsyncmov %s1344
  %s1346 = vpop.sfrf %1345
  %p1347 = scmp.eq.s32.totalorder %s1346, 0
  %p1348 = pneg %p1347
  %1350 = shalt.err (%p1348)
  %s1351 = scalar_lea.sflag [#allocation3], 17
  %1352 = vsyncmov %s1351
  %s1353 = vpop.sfrf %1352
  %p1354 = scmp.eq.s32.totalorder %s1353, 0
  %p1355 = pneg %p1354
  %1357 = shalt.err (%p1355)
  %s1358 = scalar_lea.sflag [#allocation3], 18
  %1359 = vsyncmov %s1358
  %s1360 = vpop.sfrf %1359
  %p1361 = scmp.eq.s32.totalorder %s1360, 0
  %p1362 = pneg %p1361
  %1364 = shalt.err (%p1362)
  %s1365 = scalar_lea.sflag [#allocation3], 19
  %1366 = vsyncmov %s1365
  %s1367 = vpop.sfrf %1366
  %p1368 = scmp.eq.s32.totalorder %s1367, 0
  %p1369 = pneg %p1368
  %1371 = shalt.err (%p1369)
  %s1372 = scalar_lea.sflag [#allocation3], 20
  %1373 = vsyncmov %s1372
  %s1374 = vpop.sfrf %1373
  %p1375 = scmp.eq.s32.totalorder %s1374, 0
  %p1376 = pneg %p1375
  %1378 = shalt.err (%p1376)
  %s1379 = scalar_lea.sflag [#allocation3], 21
  %1380 = vsyncmov %s1379
  %s1381 = vpop.sfrf %1380
  %p1382 = scmp.eq.s32.totalorder %s1381, 0
  %p1383 = pneg %p1382
  %1385 = shalt.err (%p1383)
  %s1386 = scalar_lea.sflag [#allocation3], 22
  %1387 = vsyncmov %s1386
  %s1388 = vpop.sfrf %1387
  %p1389 = scmp.eq.s32.totalorder %s1388, 0
  %p1390 = pneg %p1389
  %1392 = shalt.err (%p1390)
  %s1393 = scalar_lea.sflag [#allocation3], 23
  %1394 = vsyncmov %s1393
  %s1395 = vpop.sfrf %1394
  %p1396 = scmp.eq.s32.totalorder %s1395, 0
  %p1397 = pneg %p1396
  %1399 = shalt.err (%p1397)
  %s1400 = scalar_lea.sflag [#allocation3], 24
  %1401 = vsyncmov %s1400
  %s1402 = vpop.sfrf %1401
  %p1403 = scmp.eq.s32.totalorder %s1402, 0
  %p1404 = pneg %p1403
  %1406 = shalt.err (%p1404)
  %s1407 = scalar_lea.sflag [#allocation3], 25
  %1408 = vsyncmov %s1407
  %s1409 = vpop.sfrf %1408
  %p1410 = scmp.eq.s32.totalorder %s1409, 0
  %p1411 = pneg %p1410
  %1413 = shalt.err (%p1411)
  %s1414 = scalar_lea.sflag [#allocation3], 26
  %1415 = vsyncmov %s1414
  %s1416 = vpop.sfrf %1415
  %p1417 = scmp.eq.s32.totalorder %s1416, 0
  %p1418 = pneg %p1417
  %1420 = shalt.err (%p1418)
  %s1421 = scalar_lea.sflag [#allocation3], 27
  %1422 = vsyncmov %s1421
  %s1423 = vpop.sfrf %1422
  %p1424 = scmp.eq.s32.totalorder %s1423, 0
  %p1425 = pneg %p1424
  %1427 = shalt.err (%p1425)
  %s1428 = scalar_lea.sflag [#allocation3], 28
  %1429 = vsyncmov %s1428
  %s1430 = vpop.sfrf %1429
  %p1431 = scmp.eq.s32.totalorder %s1430, 0
  %p1432 = pneg %p1431
  %1434 = shalt.err (%p1432)
  %s1435 = scalar_lea.sflag [#allocation3], 29
  %1436 = vsyncmov %s1435
  %s1437 = vpop.sfrf %1436
  %p1438 = scmp.eq.s32.totalorder %s1437, 0
  %p1439 = pneg %p1438
  %1441 = shalt.err (%p1439)
  %s1442 = scalar_lea.sflag [#allocation3], 30
  %1443 = vsyncmov %s1442
  %s1444 = vpop.sfrf %1443
  %p1445 = scmp.eq.s32.totalorder %s1444, 0
  %p1446 = pneg %p1445
  %1448 = shalt.err (%p1446)
  %s1449 = scalar_lea.sflag [#allocation3], 31
  %1450 = vsyncmov %s1449
  %s1451 = vpop.sfrf %1450
  %p1452 = scmp.eq.s32.totalorder %s1451, 0
  %p1453 = pneg %p1452
  %1455 = shalt.err (%p1453)
  %s1456 = scalar_lea.sflag [#allocation3], 32
  %1457 = vsyncmov %s1456
  %s1458 = vpop.sfrf %1457
  %p1459 = scmp.eq.s32.totalorder %s1458, 0
  %p1460 = pneg %p1459
  %1462 = shalt.err (%p1460)
  %s1463 = scalar_lea.sflag [#allocation3], 33
  %1464 = vsyncmov %s1463
  %s1465 = vpop.sfrf %1464
  %p1466 = scmp.eq.s32.totalorder %s1465, 0
  %p1467 = pneg %p1466
  %1469 = shalt.err (%p1467)
  %s1470 = scalar_lea.sflag [#allocation3], 34
  %1471 = vsyncmov %s1470
  %s1472 = vpop.sfrf %1471
  %p1473 = scmp.eq.s32.totalorder %s1472, 0
  %p1474 = pneg %p1473
  %1476 = shalt.err (%p1474)
  %s1477 = scalar_lea.sflag [#allocation3], 35
  %1478 = vsyncmov %s1477
  %s1479 = vpop.sfrf %1478
  %p1480 = scmp.eq.s32.totalorder %s1479, 0
  %p1481 = pneg %p1480
  %1483 = shalt.err (%p1481)
  %s1484 = scalar_lea.sflag [#allocation3], 36
  %1485 = vsyncmov %s1484
  %s1486 = vpop.sfrf %1485
  %p1487 = scmp.eq.s32.totalorder %s1486, 0
  %p1488 = pneg %p1487
  %1490 = shalt.err (%p1488)
  %s1491 = scalar_lea.sflag [#allocation3], 37
  %1492 = vsyncmov %s1491
  %s1493 = vpop.sfrf %1492
  %p1494 = scmp.eq.s32.totalorder %s1493, 0
  %p1495 = pneg %p1494
  %1497 = shalt.err (%p1495)
  %s1498 = scalar_lea.sflag [#allocation3], 38
  %1499 = vsyncmov %s1498
  %s1500 = vpop.sfrf %1499
  %p1501 = scmp.eq.s32.totalorder %s1500, 0
  %p1502 = pneg %p1501
  %1504 = shalt.err (%p1502)
  %s1505 = scalar_lea.sflag [#allocation3], 39
  %1506 = vsyncmov %s1505
  %s1507 = vpop.sfrf %1506
  %p1508 = scmp.eq.s32.totalorder %s1507, 0
  %p1509 = pneg %p1508
  %1511 = shalt.err (%p1509)
  %s1512 = scalar_lea.sflag [#allocation3], 40
  %1513 = vsyncmov %s1512
  %s1514 = vpop.sfrf %1513
  %p1515 = scmp.eq.s32.totalorder %s1514, 0
  %p1516 = pneg %p1515
  %1518 = shalt.err (%p1516)
  %s1519 = scalar_lea.sflag [#allocation3], 41
  %1520 = vsyncmov %s1519
  %s1521 = vpop.sfrf %1520
  %p1522 = scmp.eq.s32.totalorder %s1521, 0
  %p1523 = pneg %p1522
  %1525 = shalt.err (%p1523)
  %s1526 = scalar_lea.sflag [#allocation3], 42
  %1527 = vsyncmov %s1526
  %s1528 = vpop.sfrf %1527
  %p1529 = scmp.eq.s32.totalorder %s1528, 0
  %p1530 = pneg %p1529
  %1532 = shalt.err (%p1530)
  %s1533 = scalar_lea.sflag [#allocation3], 43
  %1534 = vsyncmov %s1533
  %s1535 = vpop.sfrf %1534
  %p1536 = scmp.eq.s32.totalorder %s1535, 0
  %p1537 = pneg %p1536
  %1539 = shalt.err (%p1537)
  %s1540 = scalar_lea.sflag [#allocation3], 44
  %1541 = vsyncmov %s1540
  %s1542 = vpop.sfrf %1541
  %p1543 = scmp.eq.s32.totalorder %s1542, 0
  %p1544 = pneg %p1543
  %1546 = shalt.err (%p1544)
  %s1547 = scalar_lea.sflag [#allocation3], 45
  %1548 = vsyncmov %s1547
  %s1549 = vpop.sfrf %1548
  %p1550 = scmp.eq.s32.totalorder %s1549, 0
  %p1551 = pneg %p1550
  %1553 = shalt.err (%p1551)
  %s1554 = scalar_lea.sflag [#allocation3], 46
  %1555 = vsyncmov %s1554
  %s1556 = vpop.sfrf %1555
  %p1557 = scmp.eq.s32.totalorder %s1556, 0
  %p1558 = pneg %p1557
  %1560 = shalt.err (%p1558)
  %s1561 = scalar_lea.sflag [#allocation3], 47
  %1562 = vsyncmov %s1561
  %s1563 = vpop.sfrf %1562
  %p1564 = scmp.eq.s32.totalorder %s1563, 0
  %p1565 = pneg %p1564
  %1567 = shalt.err (%p1565)
  %s1568 = scalar_lea.sflag [#allocation3], 48
  %1569 = vsyncmov %s1568
  %s1570 = vpop.sfrf %1569
  %p1571 = scmp.eq.s32.totalorder %s1570, 0
  %p1572 = pneg %p1571
  %1574 = shalt.err (%p1572)
  %s1575 = scalar_lea.sflag [#allocation3], 49
  %1576 = vsyncmov %s1575
  %s1577 = vpop.sfrf %1576
  %p1578 = scmp.eq.s32.totalorder %s1577, 0
  %p1579 = pneg %p1578
  %1581 = shalt.err (%p1579)
  %s1582 = scalar_lea.sflag [#allocation3], 50
  %1583 = vsyncmov %s1582
  %s1584 = vpop.sfrf %1583
  %p1585 = scmp.eq.s32.totalorder %s1584, 0
  %p1586 = pneg %p1585
  %1588 = shalt.err (%p1586)
  %s1589 = scalar_lea.sflag [#allocation3], 51
  %1590 = vsyncmov %s1589
  %s1591 = vpop.sfrf %1590
  %p1592 = scmp.eq.s32.totalorder %s1591, 0
  %p1593 = pneg %p1592
  %1595 = shalt.err (%p1593)
  %s1596 = scalar_lea.sflag [#allocation3], 52
  %1597 = vsyncmov %s1596
  %s1598 = vpop.sfrf %1597
  %p1599 = scmp.eq.s32.totalorder %s1598, 0
  %p1600 = pneg %p1599
  %1602 = shalt.err (%p1600)
  %s1603 = scalar_lea.sflag [#allocation3], 53
  %1604 = vsyncmov %s1603
  %s1605 = vpop.sfrf %1604
  %p1606 = scmp.eq.s32.totalorder %s1605, 0
  %p1607 = pneg %p1606
  %1609 = shalt.err (%p1607)
  %s1610 = scalar_lea.sflag [#allocation3], 54
  %1611 = vsyncmov %s1610
  %s1612 = vpop.sfrf %1611
  %p1613 = scmp.eq.s32.totalorder %s1612, 0
  %p1614 = pneg %p1613
  %1616 = shalt.err (%p1614)
  %s1617 = scalar_lea.sflag [#allocation3], 55
  %1618 = vsyncmov %s1617
  %s1619 = vpop.sfrf %1618
  %p1620 = scmp.eq.s32.totalorder %s1619, 0
  %p1621 = pneg %p1620
  %1623 = shalt.err (%p1621)

</llo_original>
